<compile_context>
chip_gen: v7x
topology: tpu7x:2x2x1
jax: 0.10.0
libtpu: 0.0.40
codegen_flags: <defaults>
</compile_context>

<pallas_src>
import functools

import jax
import jax.numpy as jnp
import numpy as np
from jax import lax
from jax.experimental import pallas as pl
from jax.experimental.pallas import tpu as pltpu


def _round_up(n, m):
    return ((n + m - 1) // m) * m


def _pool2x2_cols(y, hh, hw, r_scr, store_col):
    """2x2 / stride-2 max-pool of the (2*hh, 2*hw) value `y`.

    Row pairs are reduced into r_scr[0:hh, 0:2*hw] first, then column pairs are
    reduced and handed to store_col(j, col) with col of shape (hh, 1) holding
    pooled[:, j].  Only unit-stride static slices + elementwise max (VPU); no
    MXU selection matmuls, no strided/lane-gather ops, no reshapes.
    """
    W = 2 * hw
    for i in range(hh):
        r_scr[i:i + 1, 0:W] = jnp.maximum(y[2 * i:2 * i + 1, :],
                                          y[2 * i + 1:2 * i + 2, :])
    for j in range(hw):
        col = jnp.maximum(r_scr[0:hh, 2 * j:2 * j + 1],
                          r_scr[0:hh, 2 * j + 1:2 * j + 2])
        store_col(j, col)


def cnn_embedder_kernel(x_ref, w1_ref, b1_ref, w2_ref, b2_ref, mfc_ref, bfc_ref,
                        o_ref, xp1, h1p, r_scr, pall, *, H, W, C1, C2, E):
    """One batch element per grid step; everything stays in VMEM/SMEM."""
    f32 = jnp.float32
    H1, W1 = H // 2, W // 2        # after pool1
    H2, W2 = H1 // 2, W1 // 2      # after pool2

    # ---- stage 0: in-kernel zero padding of the input (replaces jnp.pad) ----
    xp1[...] = jnp.zeros((H + 2, W + 2), f32)
    xp1[1:H + 1, 1:W + 1] = x_ref[0, 0]
    h1p[...] = jnp.zeros((C1, H1 + 2, W1 + 2), f32)
    pall[...] = jnp.zeros(pall.shape, f32)

    xp = xp1[...]                  # (H+2, W+2) value, read once

    # ---- conv1 (1 -> C1, 3x3, pad 1) + bias + ReLU + 2x2 max-pool ----------
    for co in range(C1):
        acc = jnp.zeros((H, W), f32)
        for kh in range(3):
            for kw in range(3):
                wv = w1_ref[co * 9 + kh * 3 + kw]          # SMEM scalar tap
                acc = acc + wv * xp[kh:kh + H, kw:kw + W]  # cross-correlation
        y = jnp.maximum(acc + b1_ref[co], 0.0)

        def store1(j, col, co=co):
            # pooled1[:, j] goes straight into the (pre-zeroed) padded conv2
            # input -> no separate "pad" stage for layer 2.
            h1p[co, 1:1 + H1, 1 + j:2 + j] = col

        _pool2x2_cols(y, H1, W1, r_scr, store1)

    # ---- conv2 (C1 -> C2, 3x3, pad 1) + bias + ReLU + 2x2 max-pool ---------
    for co in range(C2):
        acc = jnp.zeros((H1, W1), f32)
        for ci in range(C1):
            xc = h1p[ci]                                    # (H1+2, W1+2)
            base = (co * C1 + ci) * 9
            for kh in range(3):
                for kw in range(3):
                    wv = w2_ref[base + kh * 3 + kw]
                    acc = acc + wv * xc[kh:kh + H1, kw:kw + W1]
        y = jnp.maximum(acc + b2_ref[co], 0.0)

        def store2(j, col, co=co):
            # pall[h, co*W2 + j] = pooled2[h, j]  (flatten handled via the
            # host-side permutation of the FC weight, see wrapper).
            pall[0:H2, co * W2 + j:co * W2 + j + 1] = col

        _pool2x2_cols(y, H2, W2, r_scr, store2)

    # ---- flatten + fc as a single MXU matmul --------------------------------
    # mfc[c*W2 + w, h*E + e] = wfc[c*H2*W2 + h*W2 + w, e]  (rows >= C2*W2 are
    # zero padding; pall rows >= H2 / cols >= C2*W2 are zero), so
    #   sum_h (pall @ mfc)[h, h*E:(h+1)*E]  ==  flatten(pooled2) @ wfc.
    t = jnp.dot(pall[...], mfc_ref[...], preferred_element_type=f32)
    out = bfc_ref[...]                                      # (1, E)
    for h in range(H2):
        out = out + t[h:h + 1, h * E:(h + 1) * E]
    o_ref[0] = out


def cnn_embedder_forward(x, params):
    """Fused forward: conv1->relu->pool->conv2->relu->pool->flatten->fc."""
    B, Cin, H, W = x.shape
    assert Cin == 1 and H % 4 == 0 and W % 4 == 0
    C1 = params["w1"].shape[0]
    C2 = params["w2"].shape[0]
    E = params["bfc"].shape[0]
    H1, W1, H2, W2 = H // 2, W // 2, H // 4, W // 4

    f32 = jnp.float32
    # Host-side (free) weight re-layouts so the kernel never reshapes tensors.
    w1f = params["w1"].reshape(-1).astype(f32)              # (C1*1*9,)
    w2f = params["w2"].reshape(-1).astype(f32)              # (C2*C1*9,)
    k = C2 * W2
    kpad = _round_up(k, 8)
    mfc = (params["wfc"].astype(f32)
           .reshape(C2, H2, W2, E).transpose(0, 2, 1, 3).reshape(k, H2 * E))
    mfc = jnp.concatenate([mfc, jnp.zeros((kpad - k, H2 * E), f32)], axis=0)
    bfc = params["bfc"].reshape(1, E).astype(f32)

    kernel = functools.partial(cnn_embedder_kernel, H=H, W=W, C1=C1, C2=C2, E=E)
    out = pl.pallas_call(
        kernel,
        out_shape=jax.ShapeDtypeStruct((B, 1, E), f32),
        grid=(B,),
        in_specs=[
            pl.BlockSpec((1, 1, H, W), lambda b: (b, 0, 0, 0)),   # image
            pl.BlockSpec(memory_space=pltpu.MemorySpace.SMEM),    # w1 taps
            pl.BlockSpec(memory_space=pltpu.MemorySpace.SMEM),    # b1
            pl.BlockSpec(memory_space=pltpu.MemorySpace.SMEM),    # w2 taps
            pl.BlockSpec(memory_space=pltpu.MemorySpace.SMEM),    # b2
            pl.BlockSpec((kpad, H2 * E), lambda b: (0, 0)),       # fc weight
            pl.BlockSpec((1, E), lambda b: (0, 0)),               # fc bias
        ],
        out_specs=pl.BlockSpec((1, 1, E), lambda b: (b, 0, 0)),
        scratch_shapes=[
            pltpu.VMEM((H + 2, W + 2), f32),                      # padded input
            pltpu.VMEM((C1, H1 + 2, W1 + 2), f32),                # padded pool1
            pltpu.VMEM((H1, W), f32),                             # row-pool tmp
            pltpu.VMEM((_round_up(H2, 8), kpad), f32),            # flat features
        ],
        compiler_params=pltpu.CompilerParams(
            dimension_semantics=("parallel",)),
    )(x.astype(f32), w1f, params["b1"].astype(f32),
      w2f, params["b2"].astype(f32), mfc, bfc)
    return out.reshape(B, E)


# Pure-JAX reference (XLA ops) used only for a correctness check.
def reference_forward(x, params):
    dn = ("NCHW", "OIHW", "NCHW")
    y = lax.conv_general_dilated(x, params["w1"], (1, 1), "SAME",
                                 dimension_numbers=dn)
    y = jnp.maximum(y + params["b1"][None, :, None, None], 0.0)
    y = lax.reduce_window(y, -jnp.inf, lax.max, (1, 1, 2, 2), (1, 1, 2, 2), "VALID")
    y = lax.conv_general_dilated(y, params["w2"], (1, 1), "SAME",
                                 dimension_numbers=dn)
    y = jnp.maximum(y + params["b2"][None, :, None, None], 0.0)
    y = lax.reduce_window(y, -jnp.inf, lax.max, (1, 1, 2, 2), (1, 1, 2, 2), "VALID")
    y = y.reshape(y.shape[0], -1)
    return y @ params["wfc"] + params["bfc"]


if __name__ == "__main__":
    # Small shapes consistent with the module:
    #   batch=2, 1 input channel, 16x16 persistence image, embedding_dim=128.
    B, H, W = 2, 16, 16
    embedding_dim = 128
    flat_feats = 3 * (H // 4) * (W // 4)   # after two 2x2 pools with 3 channels

    key = jax.random.PRNGKey(0)
    k = jax.random.split(key, 7)
    params = {
        "w1": 0.2 * jax.random.normal(k[0], (3, 1, 3, 3), jnp.float32),
        "b1": 0.1 * jax.random.normal(k[1], (3,), jnp.float32),
        "w2": 0.2 * jax.random.normal(k[2], (3, 3, 3, 3), jnp.float32),
        "b2": 0.1 * jax.random.normal(k[3], (3,), jnp.float32),
        "wfc": 0.1 * jax.random.normal(k[4], (flat_feats, embedding_dim), jnp.float32),
        "bfc": 0.1 * jax.random.normal(k[5], (embedding_dim,), jnp.float32),
    }
    x = jax.random.uniform(k[6], (B, 1, H, W), jnp.float32)

    fwd = jax.jit(cnn_embedder_forward)
    out = jax.block_until_ready(fwd(x, params))
    assert out.shape == (B, embedding_dim), out.shape

    ref = jax.block_until_ready(reference_forward(x, params))
    np.testing.assert_allclose(np.asarray(out), np.asarray(ref), rtol=1e-4, atol=1e-4)

    print("KERNEL_OK")
</pallas_src>

<mosaic_0001>
module attributes {stable_mosaic.version = 11 : i64} {
  func.func @cnn_embedder_kernel(%arg0: i32, %arg1: memref<1x1x16x16xf32, #tpu.memory_space<vmem>>, %arg2: memref<27xf32, #tpu.memory_space<smem>>, %arg3: memref<3xf32, #tpu.memory_space<smem>>, %arg4: memref<81xf32, #tpu.memory_space<smem>>, %arg5: memref<3xf32, #tpu.memory_space<smem>>, %arg6: memref<16x512xf32, #tpu.memory_space<vmem>>, %arg7: memref<1x128xf32, #tpu.memory_space<vmem>>, %arg8: memref<1x1x128xf32, #tpu.memory_space<vmem>>, %arg9: memref<18x18xf32, #tpu.memory_space<vmem>>, %arg10: memref<3x10x10xf32, #tpu.memory_space<vmem>>, %arg11: memref<8x16xf32, #tpu.memory_space<vmem>>, %arg12: memref<8x16xf32, #tpu.memory_space<vmem>>) attributes {dimension_semantics = [#tpu.dimension_semantics<parallel>], iteration_bounds = array<i64: 2>, scalar_prefetch = 0 : i64, scratch_operands = 4 : i64, tpu.core_type = #tpu.core_type<tc>, window_params = [{transform_indices = @transform_0, window_bounds = array<i64: 1, 1, 16, 16>}, {transform_indices = @transform_1, window_bounds = array<i64: 27>}, {transform_indices = @transform_2, window_bounds = array<i64: 3>}, {transform_indices = @transform_3, window_bounds = array<i64: 81>}, {transform_indices = @transform_4, window_bounds = array<i64: 3>}, {pipeline_mode = #tpu.pipeline_mode<synchronous>, transform_indices = @transform_5, window_bounds = array<i64: 16, 512>}, {pipeline_mode = #tpu.pipeline_mode<synchronous>, transform_indices = @transform_6, window_bounds = array<i64: 1, 128>}, {transform_indices = @transform_7, window_bounds = array<i64: 1, 1, 128>}]} {
    %cst = arith.constant 0.000000e+00 : f32
    %0 = vector.broadcast %cst : f32 to vector<18x18xf32>
    %c0 = arith.constant 0 : index
    %c0_0 = arith.constant 0 : index
    %1 = vector.load %arg9[%c0, %c0_0] : memref<18x18xf32, #tpu.memory_space<vmem>>, vector<18x18xf32>
    tpu.vector_store %arg9[%c0, %c0_0], %0 {strides = array<i32>} : memref<18x18xf32, #tpu.memory_space<vmem>>, vector<18x18xf32>,
    %c0_1 = arith.constant 0 : index
    %c0_2 = arith.constant 0 : index
    %c0_3 = arith.constant 0 : index
    %c0_4 = arith.constant 0 : index
    %2 = vector.load %arg1[%c0_1, %c0_2, %c0_3, %c0_4] : memref<1x1x16x16xf32, #tpu.memory_space<vmem>>, vector<1x1x16x16xf32>
    %3 = vector.shape_cast %2 : vector<1x1x16x16xf32> to vector<16x16xf32>
    %c1 = arith.constant 1 : index
    %c1_5 = arith.constant 1 : index
    %4 = vector.load %arg9[%c1, %c1_5] : memref<18x18xf32, #tpu.memory_space<vmem>>, vector<16x16xf32>
    tpu.vector_store %arg9[%c1, %c1_5], %3 {strides = array<i32>} : memref<18x18xf32, #tpu.memory_space<vmem>>, vector<16x16xf32>,
    %cst_6 = arith.constant 0.000000e+00 : f32
    %5 = vector.broadcast %cst_6 : f32 to vector<3x10x10xf32>
    %c0_7 = arith.constant 0 : index
    %c0_8 = arith.constant 0 : index
    %c0_9 = arith.constant 0 : index
    %6 = vector.load %arg10[%c0_7, %c0_8, %c0_9] : memref<3x10x10xf32, #tpu.memory_space<vmem>>, vector<3x10x10xf32>
    tpu.vector_store %arg10[%c0_7, %c0_8, %c0_9], %5 {strides = array<i32>} : memref<3x10x10xf32, #tpu.memory_space<vmem>>, vector<3x10x10xf32>,
    %cst_10 = arith.constant 0.000000e+00 : f32
    %7 = vector.broadcast %cst_10 : f32 to vector<8x16xf32>
    %c0_11 = arith.constant 0 : index
    %c0_12 = arith.constant 0 : index
    %8 = vector.load %arg12[%c0_11, %c0_12] : memref<8x16xf32, #tpu.memory_space<vmem>>, vector<8x16xf32>
    tpu.vector_store %arg12[%c0_11, %c0_12], %7 {strides = array<i32>} : memref<8x16xf32, #tpu.memory_space<vmem>>, vector<8x16xf32>,
    %c0_13 = arith.constant 0 : index
    %c0_14 = arith.constant 0 : index
    %9 = vector.load %arg9[%c0_13, %c0_14] : memref<18x18xf32, #tpu.memory_space<vmem>>, vector<18x18xf32>
    %cst_15 = arith.constant 0.000000e+00 : f32
    %10 = vector.broadcast %cst_15 : f32 to vector<16x16xf32>
    %c0_16 = arith.constant 0 : index
    %11 = memref.load %arg2[%c0_16] : memref<27xf32, #tpu.memory_space<smem>>
    %12 = vector.extract_strided_slice %9 {offsets = [0, 0], sizes = [16, 16], strides = [1, 1]} : vector<18x18xf32> to vector<16x16xf32>
    %13 = vector.broadcast %11 : f32 to vector<16x16xf32>
    %14 = arith.mulf %13, %12 : vector<16x16xf32>
    %15 = arith.addf %10, %14 : vector<16x16xf32>
    %c1_17 = arith.constant 1 : index
    %16 = memref.load %arg2[%c1_17] : memref<27xf32, #tpu.memory_space<smem>>
    %17 = vector.extract_strided_slice %9 {offsets = [0, 1], sizes = [16, 16], strides = [1, 1]} : vector<18x18xf32> to vector<16x16xf32>
    %18 = vector.broadcast %16 : f32 to vector<16x16xf32>
    %19 = arith.mulf %18, %17 : vector<16x16xf32>
    %20 = arith.addf %15, %19 : vector<16x16xf32>
    %c2 = arith.constant 2 : index
    %21 = memref.load %arg2[%c2] : memref<27xf32, #tpu.memory_space<smem>>
    %22 = vector.extract_strided_slice %9 {offsets = [0, 2], sizes = [16, 16], strides = [1, 1]} : vector<18x18xf32> to vector<16x16xf32>
    %23 = vector.broadcast %21 : f32 to vector<16x16xf32>
    %24 = arith.mulf %23, %22 : vector<16x16xf32>
    %25 = arith.addf %20, %24 : vector<16x16xf32>
    %c3 = arith.constant 3 : index
    %26 = memref.load %arg2[%c3] : memref<27xf32, #tpu.memory_space<smem>>
    %27 = vector.extract_strided_slice %9 {offsets = [1, 0], sizes = [16, 16], strides = [1, 1]} : vector<18x18xf32> to vector<16x16xf32>
    %28 = vector.broadcast %26 : f32 to vector<16x16xf32>
    %29 = arith.mulf %28, %27 : vector<16x16xf32>
    %30 = arith.addf %25, %29 : vector<16x16xf32>
    %c4 = arith.constant 4 : index
    %31 = memref.load %arg2[%c4] : memref<27xf32, #tpu.memory_space<smem>>
    %32 = vector.extract_strided_slice %9 {offsets = [1, 1], sizes = [16, 16], strides = [1, 1]} : vector<18x18xf32> to vector<16x16xf32>
    %33 = vector.broadcast %31 : f32 to vector<16x16xf32>
    %34 = arith.mulf %33, %32 : vector<16x16xf32>
    %35 = arith.addf %30, %34 : vector<16x16xf32>
    %c5 = arith.constant 5 : index
    %36 = memref.load %arg2[%c5] : memref<27xf32, #tpu.memory_space<smem>>
    %37 = vector.extract_strided_slice %9 {offsets = [1, 2], sizes = [16, 16], strides = [1, 1]} : vector<18x18xf32> to vector<16x16xf32>
    %38 = vector.broadcast %36 : f32 to vector<16x16xf32>
    %39 = arith.mulf %38, %37 : vector<16x16xf32>
    %40 = arith.addf %35, %39 : vector<16x16xf32>
    %c6 = arith.constant 6 : index
    %41 = memref.load %arg2[%c6] : memref<27xf32, #tpu.memory_space<smem>>
    %42 = vector.extract_strided_slice %9 {offsets = [2, 0], sizes = [16, 16], strides = [1, 1]} : vector<18x18xf32> to vector<16x16xf32>
    %43 = vector.broadcast %41 : f32 to vector<16x16xf32>
    %44 = arith.mulf %43, %42 : vector<16x16xf32>
    %45 = arith.addf %40, %44 : vector<16x16xf32>
    %c7 = arith.constant 7 : index
    %46 = memref.load %arg2[%c7] : memref<27xf32, #tpu.memory_space<smem>>
    %47 = vector.extract_strided_slice %9 {offsets = [2, 1], sizes = [16, 16], strides = [1, 1]} : vector<18x18xf32> to vector<16x16xf32>
    %48 = vector.broadcast %46 : f32 to vector<16x16xf32>
    %49 = arith.mulf %48, %47 : vector<16x16xf32>
    %50 = arith.addf %45, %49 : vector<16x16xf32>
    %c8 = arith.constant 8 : index
    %51 = memref.load %arg2[%c8] : memref<27xf32, #tpu.memory_space<smem>>
    %52 = vector.extract_strided_slice %9 {offsets = [2, 2], sizes = [16, 16], strides = [1, 1]} : vector<18x18xf32> to vector<16x16xf32>
    %53 = vector.broadcast %51 : f32 to vector<16x16xf32>
    %54 = arith.mulf %53, %52 : vector<16x16xf32>
    %55 = arith.addf %50, %54 : vector<16x16xf32>
    %c0_18 = arith.constant 0 : index
    %56 = memref.load %arg3[%c0_18] : memref<3xf32, #tpu.memory_space<smem>>
    %57 = vector.broadcast %56 : f32 to vector<16x16xf32>
    %58 = arith.addf %55, %57 : vector<16x16xf32>
    %cst_19 = arith.constant 0.000000e+00 : f32
    %59 = vector.broadcast %cst_19 : f32 to vector<16x16xf32>
    %60 = arith.maximumf %58, %59 : vector<16x16xf32>
    %61 = vector.extract_strided_slice %60 {offsets = [0, 0], sizes = [1, 16], strides = [1, 1]} : vector<16x16xf32> to vector<1x16xf32>
    %62 = vector.extract_strided_slice %60 {offsets = [1, 0], sizes = [1, 16], strides = [1, 1]} : vector<16x16xf32> to vector<1x16xf32>
    %63 = arith.maximumf %61, %62 : vector<1x16xf32>
    %c0_20 = arith.constant 0 : index
    %c0_21 = arith.constant 0 : index
    %64 = vector.load %arg11[%c0_20, %c0_21] : memref<8x16xf32, #tpu.memory_space<vmem>>, vector<1x16xf32>
    tpu.vector_store %arg11[%c0_20, %c0_21], %63 {strides = array<i32>} : memref<8x16xf32, #tpu.memory_space<vmem>>, vector<1x16xf32>,
    %65 = vector.extract_strided_slice %60 {offsets = [2, 0], sizes = [1, 16], strides = [1, 1]} : vector<16x16xf32> to vector<1x16xf32>
    %66 = vector.extract_strided_slice %60 {offsets = [3, 0], sizes = [1, 16], strides = [1, 1]} : vector<16x16xf32> to vector<1x16xf32>
    %67 = arith.maximumf %65, %66 : vector<1x16xf32>
    %c1_22 = arith.constant 1 : index
    %c0_23 = arith.constant 0 : index
    %68 = vector.load %arg11[%c1_22, %c0_23] : memref<8x16xf32, #tpu.memory_space<vmem>>, vector<1x16xf32>
    tpu.vector_store %arg11[%c1_22, %c0_23], %67 {strides = array<i32>} : memref<8x16xf32, #tpu.memory_space<vmem>>, vector<1x16xf32>,
    %69 = vector.extract_strided_slice %60 {offsets = [4, 0], sizes = [1, 16], strides = [1, 1]} : vector<16x16xf32> to vector<1x16xf32>
    %70 = vector.extract_strided_slice %60 {offsets = [5, 0], sizes = [1, 16], strides = [1, 1]} : vector<16x16xf32> to vector<1x16xf32>
    %71 = arith.maximumf %69, %70 : vector<1x16xf32>
    %c2_24 = arith.constant 2 : index
    %c0_25 = arith.constant 0 : index
    %72 = vector.load %arg11[%c2_24, %c0_25] : memref<8x16xf32, #tpu.memory_space<vmem>>, vector<1x16xf32>
    tpu.vector_store %arg11[%c2_24, %c0_25], %71 {strides = array<i32>} : memref<8x16xf32, #tpu.memory_space<vmem>>, vector<1x16xf32>,
    %73 = vector.extract_strided_slice %60 {offsets = [6, 0], sizes = [1, 16], strides = [1, 1]} : vector<16x16xf32> to vector<1x16xf32>
    %74 = vector.extract_strided_slice %60 {offsets = [7, 0], sizes = [1, 16], strides = [1, 1]} : vector<16x16xf32> to vector<1x16xf32>
    %75 = arith.maximumf %73, %74 : vector<1x16xf32>
    %c3_26 = arith.constant 3 : index
    %c0_27 = arith.constant 0 : index
    %76 = vector.load %arg11[%c3_26, %c0_27] : memref<8x16xf32, #tpu.memory_space<vmem>>, vector<1x16xf32>
    tpu.vector_store %arg11[%c3_26, %c0_27], %75 {strides = array<i32>} : memref<8x16xf32, #tpu.memory_space<vmem>>, vector<1x16xf32>,
    %77 = vector.extract_strided_slice %60 {offsets = [8, 0], sizes = [1, 16], strides = [1, 1]} : vector<16x16xf32> to vector<1x16xf32>
    %78 = vector.extract_strided_slice %60 {offsets = [9, 0], sizes = [1, 16], strides = [1, 1]} : vector<16x16xf32> to vector<1x16xf32>
    %79 = arith.maximumf %77, %78 : vector<1x16xf32>
    %c4_28 = arith.constant 4 : index
    %c0_29 = arith.constant 0 : index
    %80 = vector.load %arg11[%c4_28, %c0_29] : memref<8x16xf32, #tpu.memory_space<vmem>>, vector<1x16xf32>
    tpu.vector_store %arg11[%c4_28, %c0_29], %79 {strides = array<i32>} : memref<8x16xf32, #tpu.memory_space<vmem>>, vector<1x16xf32>,
    %81 = vector.extract_strided_slice %60 {offsets = [10, 0], sizes = [1, 16], strides = [1, 1]} : vector<16x16xf32> to vector<1x16xf32>
    %82 = vector.extract_strided_slice %60 {offsets = [11, 0], sizes = [1, 16], strides = [1, 1]} : vector<16x16xf32> to vector<1x16xf32>
    %83 = arith.maximumf %81, %82 : vector<1x16xf32>
    %c5_30 = arith.constant 5 : index
    %c0_31 = arith.constant 0 : index
    %84 = vector.load %arg11[%c5_30, %c0_31] : memref<8x16xf32, #tpu.memory_space<vmem>>, vector<1x16xf32>
    tpu.vector_store %arg11[%c5_30, %c0_31], %83 {strides = array<i32>} : memref<8x16xf32, #tpu.memory_space<vmem>>, vector<1x16xf32>,
    %85 = vector.extract_strided_slice %60 {offsets = [12, 0], sizes = [1, 16], strides = [1, 1]} : vector<16x16xf32> to vector<1x16xf32>
    %86 = vector.extract_strided_slice %60 {offsets = [13, 0], sizes = [1, 16], strides = [1, 1]} : vector<16x16xf32> to vector<1x16xf32>
    %87 = arith.maximumf %85, %86 : vector<1x16xf32>
    %c6_32 = arith.constant 6 : index
    %c0_33 = arith.constant 0 : index
    %88 = vector.load %arg11[%c6_32, %c0_33] : memref<8x16xf32, #tpu.memory_space<vmem>>, vector<1x16xf32>
    tpu.vector_store %arg11[%c6_32, %c0_33], %87 {strides = array<i32>} : memref<8x16xf32, #tpu.memory_space<vmem>>, vector<1x16xf32>,
    %89 = vector.extract_strided_slice %60 {offsets = [14, 0], sizes = [1, 16], strides = [1, 1]} : vector<16x16xf32> to vector<1x16xf32>
    %90 = vector.extract_strided_slice %60 {offsets = [15, 0], sizes = [1, 16], strides = [1, 1]} : vector<16x16xf32> to vector<1x16xf32>
    %91 = arith.maximumf %89, %90 : vector<1x16xf32>
    %c7_34 = arith.constant 7 : index
    %c0_35 = arith.constant 0 : index
    %92 = vector.load %arg11[%c7_34, %c0_35] : memref<8x16xf32, #tpu.memory_space<vmem>>, vector<1x16xf32>
    tpu.vector_store %arg11[%c7_34, %c0_35], %91 {strides = array<i32>} : memref<8x16xf32, #tpu.memory_space<vmem>>, vector<1x16xf32>,
    %c0_36 = arith.constant 0 : index
    %c0_37 = arith.constant 0 : index
    %93 = vector.load %arg11[%c0_36, %c0_37] : memref<8x16xf32, #tpu.memory_space<vmem>>, vector<8x1xf32>
    %c0_38 = arith.constant 0 : index
    %c1_39 = arith.constant 1 : index
    %94 = vector.load %arg11[%c0_38, %c1_39] : memref<8x16xf32, #tpu.memory_space<vmem>>, vector<8x1xf32>
    %95 = arith.maximumf %93, %94 : vector<8x1xf32>
    %c0_40 = arith.constant 0 : index
    %c1_41 = arith.constant 1 : index
    %c1_42 = arith.constant 1 : index
    %96 = vector.load %arg10[%c0_40, %c1_41, %c1_42] : memref<3x10x10xf32, #tpu.memory_space<vmem>>, vector<1x8x1xf32>
    %97 = vector.shape_cast %96 : vector<1x8x1xf32> to vector<8x1xf32>
    %98 = vector.shape_cast %95 : vector<8x1xf32> to vector<1x8x1xf32>
    tpu.vector_store %arg10[%c0_40, %c1_41, %c1_42], %98 {strides = array<i32>} : memref<3x10x10xf32, #tpu.memory_space<vmem>>, vector<1x8x1xf32>,
    %c0_43 = arith.constant 0 : index
    %c2_44 = arith.constant 2 : index
    %99 = vector.load %arg11[%c0_43, %c2_44] : memref<8x16xf32, #tpu.memory_space<vmem>>, vector<8x1xf32>
    %c0_45 = arith.constant 0 : index
    %c3_46 = arith.constant 3 : index
    %100 = vector.load %arg11[%c0_45, %c3_46] : memref<8x16xf32, #tpu.memory_space<vmem>>, vector<8x1xf32>
    %101 = arith.maximumf %99, %100 : vector<8x1xf32>
    %c0_47 = arith.constant 0 : index
    %c1_48 = arith.constant 1 : index
    %c2_49 = arith.constant 2 : index
    %102 = vector.load %arg10[%c0_47, %c1_48, %c2_49] : memref<3x10x10xf32, #tpu.memory_space<vmem>>, vector<1x8x1xf32>
    %103 = vector.shape_cast %102 : vector<1x8x1xf32> to vector<8x1xf32>
    %104 = vector.shape_cast %101 : vector<8x1xf32> to vector<1x8x1xf32>
    tpu.vector_store %arg10[%c0_47, %c1_48, %c2_49], %104 {strides = array<i32>} : memref<3x10x10xf32, #tpu.memory_space<vmem>>, vector<1x8x1xf32>,
    %c0_50 = arith.constant 0 : index
    %c4_51 = arith.constant 4 : index
    %105 = vector.load %arg11[%c0_50, %c4_51] : memref<8x16xf32, #tpu.memory_space<vmem>>, vector<8x1xf32>
    %c0_52 = arith.constant 0 : index
    %c5_53 = arith.constant 5 : index
    %106 = vector.load %arg11[%c0_52, %c5_53] : memref<8x16xf32, #tpu.memory_space<vmem>>, vector<8x1xf32>
    %107 = arith.maximumf %105, %106 : vector<8x1xf32>
    %c0_54 = arith.constant 0 : index
    %c1_55 = arith.constant 1 : index
    %c3_56 = arith.constant 3 : index
    %108 = vector.load %arg10[%c0_54, %c1_55, %c3_56] : memref<3x10x10xf32, #tpu.memory_space<vmem>>, vector<1x8x1xf32>
    %109 = vector.shape_cast %108 : vector<1x8x1xf32> to vector<8x1xf32>
    %110 = vector.shape_cast %107 : vector<8x1xf32> to vector<1x8x1xf32>
    tpu.vector_store %arg10[%c0_54, %c1_55, %c3_56], %110 {strides = array<i32>} : memref<3x10x10xf32, #tpu.memory_space<vmem>>, vector<1x8x1xf32>,
    %c0_57 = arith.constant 0 : index
    %c6_58 = arith.constant 6 : index
    %111 = vector.load %arg11[%c0_57, %c6_58] : memref<8x16xf32, #tpu.memory_space<vmem>>, vector<8x1xf32>
    %c0_59 = arith.constant 0 : index
    %c7_60 = arith.constant 7 : index
    %112 = vector.load %arg11[%c0_59, %c7_60] : memref<8x16xf32, #tpu.memory_space<vmem>>, vector<8x1xf32>
    %113 = arith.maximumf %111, %112 : vector<8x1xf32>
    %c0_61 = arith.constant 0 : index
    %c1_62 = arith.constant 1 : index
    %c4_63 = arith.constant 4 : index
    %114 = vector.load %arg10[%c0_61, %c1_62, %c4_63] : memref<3x10x10xf32, #tpu.memory_space<vmem>>, vector<1x8x1xf32>
    %115 = vector.shape_cast %114 : vector<1x8x1xf32> to vector<8x1xf32>
    %116 = vector.shape_cast %113 : vector<8x1xf32> to vector<1x8x1xf32>
    tpu.vector_store %arg10[%c0_61, %c1_62, %c4_63], %116 {strides = array<i32>} : memref<3x10x10xf32, #tpu.memory_space<vmem>>, vector<1x8x1xf32>,
    %c0_64 = arith.constant 0 : index
    %c8_65 = arith.constant 8 : index
    %117 = vector.load %arg11[%c0_64, %c8_65] : memref<8x16xf32, #tpu.memory_space<vmem>>, vector<8x1xf32>
    %c0_66 = arith.constant 0 : index
    %c9 = arith.constant 9 : index
    %118 = vector.load %arg11[%c0_66, %c9] : memref<8x16xf32, #tpu.memory_space<vmem>>, vector<8x1xf32>
    %119 = arith.maximumf %117, %118 : vector<8x1xf32>
    %c0_67 = arith.constant 0 : index
    %c1_68 = arith.constant 1 : index
    %c5_69 = arith.constant 5 : index
    %120 = vector.load %arg10[%c0_67, %c1_68, %c5_69] : memref<3x10x10xf32, #tpu.memory_space<vmem>>, vector<1x8x1xf32>
    %121 = vector.shape_cast %120 : vector<1x8x1xf32> to vector<8x1xf32>
    %122 = vector.shape_cast %119 : vector<8x1xf32> to vector<1x8x1xf32>
    tpu.vector_store %arg10[%c0_67, %c1_68, %c5_69], %122 {strides = array<i32>} : memref<3x10x10xf32, #tpu.memory_space<vmem>>, vector<1x8x1xf32>,
    %c0_70 = arith.constant 0 : index
    %c10 = arith.constant 10 : index
    %123 = vector.load %arg11[%c0_70, %c10] : memref<8x16xf32, #tpu.memory_space<vmem>>, vector<8x1xf32>
    %c0_71 = arith.constant 0 : index
    %c11 = arith.constant 11 : index
    %124 = vector.load %arg11[%c0_71, %c11] : memref<8x16xf32, #tpu.memory_space<vmem>>, vector<8x1xf32>
    %125 = arith.maximumf %123, %124 : vector<8x1xf32>
    %c0_72 = arith.constant 0 : index
    %c1_73 = arith.constant 1 : index
    %c6_74 = arith.constant 6 : index
    %126 = vector.load %arg10[%c0_72, %c1_73, %c6_74] : memref<3x10x10xf32, #tpu.memory_space<vmem>>, vector<1x8x1xf32>
    %127 = vector.shape_cast %126 : vector<1x8x1xf32> to vector<8x1xf32>
    %128 = vector.shape_cast %125 : vector<8x1xf32> to vector<1x8x1xf32>
    tpu.vector_store %arg10[%c0_72, %c1_73, %c6_74], %128 {strides = array<i32>} : memref<3x10x10xf32, #tpu.memory_space<vmem>>, vector<1x8x1xf32>,
    %c0_75 = arith.constant 0 : index
    %c12 = arith.constant 12 : index
    %129 = vector.load %arg11[%c0_75, %c12] : memref<8x16xf32, #tpu.memory_space<vmem>>, vector<8x1xf32>
    %c0_76 = arith.constant 0 : index
    %c13 = arith.constant 13 : index
    %130 = vector.load %arg11[%c0_76, %c13] : memref<8x16xf32, #tpu.memory_space<vmem>>, vector<8x1xf32>
    %131 = arith.maximumf %129, %130 : vector<8x1xf32>
    %c0_77 = arith.constant 0 : index
    %c1_78 = arith.constant 1 : index
    %c7_79 = arith.constant 7 : index
    %132 = vector.load %arg10[%c0_77, %c1_78, %c7_79] : memref<3x10x10xf32, #tpu.memory_space<vmem>>, vector<1x8x1xf32>
    %133 = vector.shape_cast %132 : vector<1x8x1xf32> to vector<8x1xf32>
    %134 = vector.shape_cast %131 : vector<8x1xf32> to vector<1x8x1xf32>
    tpu.vector_store %arg10[%c0_77, %c1_78, %c7_79], %134 {strides = array<i32>} : memref<3x10x10xf32, #tpu.memory_space<vmem>>, vector<1x8x1xf32>,
    %c0_80 = arith.constant 0 : index
    %c14 = arith.constant 14 : index
    %135 = vector.load %arg11[%c0_80, %c14] : memref<8x16xf32, #tpu.memory_space<vmem>>, vector<8x1xf32>
    %c0_81 = arith.constant 0 : index
    %c15 = arith.constant 15 : index
    %136 = vector.load %arg11[%c0_81, %c15] : memref<8x16xf32, #tpu.memory_space<vmem>>, vector<8x1xf32>
    %137 = arith.maximumf %135, %136 : vector<8x1xf32>
    %c0_82 = arith.constant 0 : index
    %c1_83 = arith.constant 1 : index
    %c8_84 = arith.constant 8 : index
    %138 = vector.load %arg10[%c0_82, %c1_83, %c8_84] : memref<3x10x10xf32, #tpu.memory_space<vmem>>, vector<1x8x1xf32>
    %139 = vector.shape_cast %138 : vector<1x8x1xf32> to vector<8x1xf32>
    %140 = vector.shape_cast %137 : vector<8x1xf32> to vector<1x8x1xf32>
    tpu.vector_store %arg10[%c0_82, %c1_83, %c8_84], %140 {strides = array<i32>} : memref<3x10x10xf32, #tpu.memory_space<vmem>>, vector<1x8x1xf32>,
    %cst_85 = arith.constant 0.000000e+00 : f32
    %141 = vector.broadcast %cst_85 : f32 to vector<16x16xf32>
    %c9_86 = arith.constant 9 : index
    %142 = memref.load %arg2[%c9_86] : memref<27xf32, #tpu.memory_space<smem>>
    %143 = vector.extract_strided_slice %9 {offsets = [0, 0], sizes = [16, 16], strides = [1, 1]} : vector<18x18xf32> to vector<16x16xf32>
    %144 = vector.broadcast %142 : f32 to vector<16x16xf32>
    %145 = arith.mulf %144, %143 : vector<16x16xf32>
    %146 = arith.addf %141, %145 : vector<16x16xf32>
    %c10_87 = arith.constant 10 : index
    %147 = memref.load %arg2[%c10_87] : memref<27xf32, #tpu.memory_space<smem>>
    %148 = vector.extract_strided_slice %9 {offsets = [0, 1], sizes = [16, 16], strides = [1, 1]} : vector<18x18xf32> to vector<16x16xf32>
    %149 = vector.broadcast %147 : f32 to vector<16x16xf32>
    %150 = arith.mulf %149, %148 : vector<16x16xf32>
    %151 = arith.addf %146, %150 : vector<16x16xf32>
    %c11_88 = arith.constant 11 : index
    %152 = memref.load %arg2[%c11_88] : memref<27xf32, #tpu.memory_space<smem>>
    %153 = vector.extract_strided_slice %9 {offsets = [0, 2], sizes = [16, 16], strides = [1, 1]} : vector<18x18xf32> to vector<16x16xf32>
    %154 = vector.broadcast %152 : f32 to vector<16x16xf32>
    %155 = arith.mulf %154, %153 : vector<16x16xf32>
    %156 = arith.addf %151, %155 : vector<16x16xf32>
    %c12_89 = arith.constant 12 : index
    %157 = memref.load %arg2[%c12_89] : memref<27xf32, #tpu.memory_space<smem>>
    %158 = vector.extract_strided_slice %9 {offsets = [1, 0], sizes = [16, 16], strides = [1, 1]} : vector<18x18xf32> to vector<16x16xf32>
    %159 = vector.broadcast %157 : f32 to vector<16x16xf32>
    %160 = arith.mulf %159, %158 : vector<16x16xf32>
    %161 = arith.addf %156, %160 : vector<16x16xf32>
    %c13_90 = arith.constant 13 : index
    %162 = memref.load %arg2[%c13_90] : memref<27xf32, #tpu.memory_space<smem>>
    %163 = vector.extract_strided_slice %9 {offsets = [1, 1], sizes = [16, 16], strides = [1, 1]} : vector<18x18xf32> to vector<16x16xf32>
    %164 = vector.broadcast %162 : f32 to vector<16x16xf32>
    %165 = arith.mulf %164, %163 : vector<16x16xf32>
    %166 = arith.addf %161, %165 : vector<16x16xf32>
    %c14_91 = arith.constant 14 : index
    %167 = memref.load %arg2[%c14_91] : memref<27xf32, #tpu.memory_space<smem>>
    %168 = vector.extract_strided_slice %9 {offsets = [1, 2], sizes = [16, 16], strides = [1, 1]} : vector<18x18xf32> to vector<16x16xf32>
    %169 = vector.broadcast %167 : f32 to vector<16x16xf32>
    %170 = arith.mulf %169, %168 : vector<16x16xf32>
    %171 = arith.addf %166, %170 : vector<16x16xf32>
    %c15_92 = arith.constant 15 : index
    %172 = memref.load %arg2[%c15_92] : memref<27xf32, #tpu.memory_space<smem>>
    %173 = vector.extract_strided_slice %9 {offsets = [2, 0], sizes = [16, 16], strides = [1, 1]} : vector<18x18xf32> to vector<16x16xf32>
    %174 = vector.broadcast %172 : f32 to vector<16x16xf32>
    %175 = arith.mulf %174, %173 : vector<16x16xf32>
    %176 = arith.addf %171, %175 : vector<16x16xf32>
    %c16 = arith.constant 16 : index
    %177 = memref.load %arg2[%c16] : memref<27xf32, #tpu.memory_space<smem>>
    %178 = vector.extract_strided_slice %9 {offsets = [2, 1], sizes = [16, 16], strides = [1, 1]} : vector<18x18xf32> to vector<16x16xf32>
    %179 = vector.broadcast %177 : f32 to vector<16x16xf32>
    %180 = arith.mulf %179, %178 : vector<16x16xf32>
    %181 = arith.addf %176, %180 : vector<16x16xf32>
    %c17 = arith.constant 17 : index
    %182 = memref.load %arg2[%c17] : memref<27xf32, #tpu.memory_space<smem>>
    %183 = vector.extract_strided_slice %9 {offsets = [2, 2], sizes = [16, 16], strides = [1, 1]} : vector<18x18xf32> to vector<16x16xf32>
    %184 = vector.broadcast %182 : f32 to vector<16x16xf32>
    %185 = arith.mulf %184, %183 : vector<16x16xf32>
    %186 = arith.addf %181, %185 : vector<16x16xf32>
    %c1_93 = arith.constant 1 : index
    %187 = memref.load %arg3[%c1_93] : memref<3xf32, #tpu.memory_space<smem>>
    %188 = vector.broadcast %187 : f32 to vector<16x16xf32>
    %189 = arith.addf %186, %188 : vector<16x16xf32>
    %cst_94 = arith.constant 0.000000e+00 : f32
    %190 = vector.broadcast %cst_94 : f32 to vector<16x16xf32>
    %191 = arith.maximumf %189, %190 : vector<16x16xf32>
    %192 = vector.extract_strided_slice %191 {offsets = [0, 0], sizes = [1, 16], strides = [1, 1]} : vector<16x16xf32> to vector<1x16xf32>
    %193 = vector.extract_strided_slice %191 {offsets = [1, 0], sizes = [1, 16], strides = [1, 1]} : vector<16x16xf32> to vector<1x16xf32>
    %194 = arith.maximumf %192, %193 : vector<1x16xf32>
    %c0_95 = arith.constant 0 : index
    %c0_96 = arith.constant 0 : index
    %195 = vector.load %arg11[%c0_95, %c0_96] : memref<8x16xf32, #tpu.memory_space<vmem>>, vector<1x16xf32>
    tpu.vector_store %arg11[%c0_95, %c0_96], %194 {strides = array<i32>} : memref<8x16xf32, #tpu.memory_space<vmem>>, vector<1x16xf32>,
    %196 = vector.extract_strided_slice %191 {offsets = [2, 0], sizes = [1, 16], strides = [1, 1]} : vector<16x16xf32> to vector<1x16xf32>
    %197 = vector.extract_strided_slice %191 {offsets = [3, 0], sizes = [1, 16], strides = [1, 1]} : vector<16x16xf32> to vector<1x16xf32>
    %198 = arith.maximumf %196, %197 : vector<1x16xf32>
    %c1_97 = arith.constant 1 : index
    %c0_98 = arith.constant 0 : index
    %199 = vector.load %arg11[%c1_97, %c0_98] : memref<8x16xf32, #tpu.memory_space<vmem>>, vector<1x16xf32>
    tpu.vector_store %arg11[%c1_97, %c0_98], %198 {strides = array<i32>} : memref<8x16xf32, #tpu.memory_space<vmem>>, vector<1x16xf32>,
    %200 = vector.extract_strided_slice %191 {offsets = [4, 0], sizes = [1, 16], strides = [1, 1]} : vector<16x16xf32> to vector<1x16xf32>
    %201 = vector.extract_strided_slice %191 {offsets = [5, 0], sizes = [1, 16], strides = [1, 1]} : vector<16x16xf32> to vector<1x16xf32>
    %202 = arith.maximumf %200, %201 : vector<1x16xf32>
    %c2_99 = arith.constant 2 : index
    %c0_100 = arith.constant 0 : index
    %203 = vector.load %arg11[%c2_99, %c0_100] : memref<8x16xf32, #tpu.memory_space<vmem>>, vector<1x16xf32>
    tpu.vector_store %arg11[%c2_99, %c0_100], %202 {strides = array<i32>} : memref<8x16xf32, #tpu.memory_space<vmem>>, vector<1x16xf32>,
    %204 = vector.extract_strided_slice %191 {offsets = [6, 0], sizes = [1, 16], strides = [1, 1]} : vector<16x16xf32> to vector<1x16xf32>
    %205 = vector.extract_strided_slice %191 {offsets = [7, 0], sizes = [1, 16], strides = [1, 1]} : vector<16x16xf32> to vector<1x16xf32>
    %206 = arith.maximumf %204, %205 : vector<1x16xf32>
    %c3_101 = arith.constant 3 : index
    %c0_102 = arith.constant 0 : index
    %207 = vector.load %arg11[%c3_101, %c0_102] : memref<8x16xf32, #tpu.memory_space<vmem>>, vector<1x16xf32>
    tpu.vector_store %arg11[%c3_101, %c0_102], %206 {strides = array<i32>} : memref<8x16xf32, #tpu.memory_space<vmem>>, vector<1x16xf32>,
    %208 = vector.extract_strided_slice %191 {offsets = [8, 0], sizes = [1, 16], strides = [1, 1]} : vector<16x16xf32> to vector<1x16xf32>
    %209 = vector.extract_strided_slice %191 {offsets = [9, 0], sizes = [1, 16], strides = [1, 1]} : vector<16x16xf32> to vector<1x16xf32>
    %210 = arith.maximumf %208, %209 : vector<1x16xf32>
    %c4_103 = arith.constant 4 : index
    %c0_104 = arith.constant 0 : index
    %211 = vector.load %arg11[%c4_103, %c0_104] : memref<8x16xf32, #tpu.memory_space<vmem>>, vector<1x16xf32>
    tpu.vector_store %arg11[%c4_103, %c0_104], %210 {strides = array<i32>} : memref<8x16xf32, #tpu.memory_space<vmem>>, vector<1x16xf32>,
    %212 = vector.extract_strided_slice %191 {offsets = [10, 0], sizes = [1, 16], strides = [1, 1]} : vector<16x16xf32> to vector<1x16xf32>
    %213 = vector.extract_strided_slice %191 {offsets = [11, 0], sizes = [1, 16], strides = [1, 1]} : vector<16x16xf32> to vector<1x16xf32>
    %214 = arith.maximumf %212, %213 : vector<1x16xf32>
    %c5_105 = arith.constant 5 : index
    %c0_106 = arith.constant 0 : index
    %215 = vector.load %arg11[%c5_105, %c0_106] : memref<8x16xf32, #tpu.memory_space<vmem>>, vector<1x16xf32>
    tpu.vector_store %arg11[%c5_105, %c0_106], %214 {strides = array<i32>} : memref<8x16xf32, #tpu.memory_space<vmem>>, vector<1x16xf32>,
    %216 = vector.extract_strided_slice %191 {offsets = [12, 0], sizes = [1, 16], strides = [1, 1]} : vector<16x16xf32> to vector<1x16xf32>
    %217 = vector.extract_strided_slice %191 {offsets = [13, 0], sizes = [1, 16], strides = [1, 1]} : vector<16x16xf32> to vector<1x16xf32>
    %218 = arith.maximumf %216, %217 : vector<1x16xf32>
    %c6_107 = arith.constant 6 : index
    %c0_108 = arith.constant 0 : index
    %219 = vector.load %arg11[%c6_107, %c0_108] : memref<8x16xf32, #tpu.memory_space<vmem>>, vector<1x16xf32>
    tpu.vector_store %arg11[%c6_107, %c0_108], %218 {strides = array<i32>} : memref<8x16xf32, #tpu.memory_space<vmem>>, vector<1x16xf32>,
    %220 = vector.extract_strided_slice %191 {offsets = [14, 0], sizes = [1, 16], strides = [1, 1]} : vector<16x16xf32> to vector<1x16xf32>
    %221 = vector.extract_strided_slice %191 {offsets = [15, 0], sizes = [1, 16], strides = [1, 1]} : vector<16x16xf32> to vector<1x16xf32>
    %222 = arith.maximumf %220, %221 : vector<1x16xf32>
    %c7_109 = arith.constant 7 : index
    %c0_110 = arith.constant 0 : index
    %223 = vector.load %arg11[%c7_109, %c0_110] : memref<8x16xf32, #tpu.memory_space<vmem>>, vector<1x16xf32>
    tpu.vector_store %arg11[%c7_109, %c0_110], %222 {strides = array<i32>} : memref<8x16xf32, #tpu.memory_space<vmem>>, vector<1x16xf32>,
    %c0_111 = arith.constant 0 : index
    %c0_112 = arith.constant 0 : index
    %224 = vector.load %arg11[%c0_111, %c0_112] : memref<8x16xf32, #tpu.memory_space<vmem>>, vector<8x1xf32>
    %c0_113 = arith.constant 0 : index
    %c1_114 = arith.constant 1 : index
    %225 = vector.load %arg11[%c0_113, %c1_114] : memref<8x16xf32, #tpu.memory_space<vmem>>, vector<8x1xf32>
    %226 = arith.maximumf %224, %225 : vector<8x1xf32>
    %c1_115 = arith.constant 1 : index
    %c1_116 = arith.constant 1 : index
    %c1_117 = arith.constant 1 : index
    %227 = vector.load %arg10[%c1_115, %c1_116, %c1_117] : memref<3x10x10xf32, #tpu.memory_space<vmem>>, vector<1x8x1xf32>
    %228 = vector.shape_cast %227 : vector<1x8x1xf32> to vector<8x1xf32>
    %229 = vector.shape_cast %226 : vector<8x1xf32> to vector<1x8x1xf32>
    tpu.vector_store %arg10[%c1_115, %c1_116, %c1_117], %229 {strides = array<i32>} : memref<3x10x10xf32, #tpu.memory_space<vmem>>, vector<1x8x1xf32>,
    %c0_118 = arith.constant 0 : index
    %c2_119 = arith.constant 2 : index
    %230 = vector.load %arg11[%c0_118, %c2_119] : memref<8x16xf32, #tpu.memory_space<vmem>>, vector<8x1xf32>
    %c0_120 = arith.constant 0 : index
    %c3_121 = arith.constant 3 : index
    %231 = vector.load %arg11[%c0_120, %c3_121] : memref<8x16xf32, #tpu.memory_space<vmem>>, vector<8x1xf32>
    %232 = arith.maximumf %230, %231 : vector<8x1xf32>
    %c1_122 = arith.constant 1 : index
    %c1_123 = arith.constant 1 : index
    %c2_124 = arith.constant 2 : index
    %233 = vector.load %arg10[%c1_122, %c1_123, %c2_124] : memref<3x10x10xf32, #tpu.memory_space<vmem>>, vector<1x8x1xf32>
    %234 = vector.shape_cast %233 : vector<1x8x1xf32> to vector<8x1xf32>
    %235 = vector.shape_cast %232 : vector<8x1xf32> to vector<1x8x1xf32>
    tpu.vector_store %arg10[%c1_122, %c1_123, %c2_124], %235 {strides = array<i32>} : memref<3x10x10xf32, #tpu.memory_space<vmem>>, vector<1x8x1xf32>,
    %c0_125 = arith.constant 0 : index
    %c4_126 = arith.constant 4 : index
    %236 = vector.load %arg11[%c0_125, %c4_126] : memref<8x16xf32, #tpu.memory_space<vmem>>, vector<8x1xf32>
    %c0_127 = arith.constant 0 : index
    %c5_128 = arith.constant 5 : index
    %237 = vector.load %arg11[%c0_127, %c5_128] : memref<8x16xf32, #tpu.memory_space<vmem>>, vector<8x1xf32>
    %238 = arith.maximumf %236, %237 : vector<8x1xf32>
    %c1_129 = arith.constant 1 : index
    %c1_130 = arith.constant 1 : index
    %c3_131 = arith.constant 3 : index
    %239 = vector.load %arg10[%c1_129, %c1_130, %c3_131] : memref<3x10x10xf32, #tpu.memory_space<vmem>>, vector<1x8x1xf32>
    %240 = vector.shape_cast %239 : vector<1x8x1xf32> to vector<8x1xf32>
    %241 = vector.shape_cast %238 : vector<8x1xf32> to vector<1x8x1xf32>
    tpu.vector_store %arg10[%c1_129, %c1_130, %c3_131], %241 {strides = array<i32>} : memref<3x10x10xf32, #tpu.memory_space<vmem>>, vector<1x8x1xf32>,
    %c0_132 = arith.constant 0 : index
    %c6_133 = arith.constant 6 : index
    %242 = vector.load %arg11[%c0_132, %c6_133] : memref<8x16xf32, #tpu.memory_space<vmem>>, vector<8x1xf32>
    %c0_134 = arith.constant 0 : index
    %c7_135 = arith.constant 7 : index
    %243 = vector.load %arg11[%c0_134, %c7_135] : memref<8x16xf32, #tpu.memory_space<vmem>>, vector<8x1xf32>
    %244 = arith.maximumf %242, %243 : vector<8x1xf32>
    %c1_136 = arith.constant 1 : index
    %c1_137 = arith.constant 1 : index
    %c4_138 = arith.constant 4 : index
    %245 = vector.load %arg10[%c1_136, %c1_137, %c4_138] : memref<3x10x10xf32, #tpu.memory_space<vmem>>, vector<1x8x1xf32>
    %246 = vector.shape_cast %245 : vector<1x8x1xf32> to vector<8x1xf32>
    %247 = vector.shape_cast %244 : vector<8x1xf32> to vector<1x8x1xf32>
    tpu.vector_store %arg10[%c1_136, %c1_137, %c4_138], %247 {strides = array<i32>} : memref<3x10x10xf32, #tpu.memory_space<vmem>>, vector<1x8x1xf32>,
    %c0_139 = arith.constant 0 : index
    %c8_140 = arith.constant 8 : index
    %248 = vector.load %arg11[%c0_139, %c8_140] : memref<8x16xf32, #tpu.memory_space<vmem>>, vector<8x1xf32>
    %c0_141 = arith.constant 0 : index
    %c9_142 = arith.constant 9 : index
    %249 = vector.load %arg11[%c0_141, %c9_142] : memref<8x16xf32, #tpu.memory_space<vmem>>, vector<8x1xf32>
    %250 = arith.maximumf %248, %249 : vector<8x1xf32>
    %c1_143 = arith.constant 1 : index
    %c1_144 = arith.constant 1 : index
    %c5_145 = arith.constant 5 : index
    %251 = vector.load %arg10[%c1_143, %c1_144, %c5_145] : memref<3x10x10xf32, #tpu.memory_space<vmem>>, vector<1x8x1xf32>
    %252 = vector.shape_cast %251 : vector<1x8x1xf32> to vector<8x1xf32>
    %253 = vector.shape_cast %250 : vector<8x1xf32> to vector<1x8x1xf32>
    tpu.vector_store %arg10[%c1_143, %c1_144, %c5_145], %253 {strides = array<i32>} : memref<3x10x10xf32, #tpu.memory_space<vmem>>, vector<1x8x1xf32>,
    %c0_146 = arith.constant 0 : index
    %c10_147 = arith.constant 10 : index
    %254 = vector.load %arg11[%c0_146, %c10_147] : memref<8x16xf32, #tpu.memory_space<vmem>>, vector<8x1xf32>
    %c0_148 = arith.constant 0 : index
    %c11_149 = arith.constant 11 : index
    %255 = vector.load %arg11[%c0_148, %c11_149] : memref<8x16xf32, #tpu.memory_space<vmem>>, vector<8x1xf32>
    %256 = arith.maximumf %254, %255 : vector<8x1xf32>
    %c1_150 = arith.constant 1 : index
    %c1_151 = arith.constant 1 : index
    %c6_152 = arith.constant 6 : index
    %257 = vector.load %arg10[%c1_150, %c1_151, %c6_152] : memref<3x10x10xf32, #tpu.memory_space<vmem>>, vector<1x8x1xf32>
    %258 = vector.shape_cast %257 : vector<1x8x1xf32> to vector<8x1xf32>
    %259 = vector.shape_cast %256 : vector<8x1xf32> to vector<1x8x1xf32>
    tpu.vector_store %arg10[%c1_150, %c1_151, %c6_152], %259 {strides = array<i32>} : memref<3x10x10xf32, #tpu.memory_space<vmem>>, vector<1x8x1xf32>,
    %c0_153 = arith.constant 0 : index
    %c12_154 = arith.constant 12 : index
    %260 = vector.load %arg11[%c0_153, %c12_154] : memref<8x16xf32, #tpu.memory_space<vmem>>, vector<8x1xf32>
    %c0_155 = arith.constant 0 : index
    %c13_156 = arith.constant 13 : index
    %261 = vector.load %arg11[%c0_155, %c13_156] : memref<8x16xf32, #tpu.memory_space<vmem>>, vector<8x1xf32>
    %262 = arith.maximumf %260, %261 : vector<8x1xf32>
    %c1_157 = arith.constant 1 : index
    %c1_158 = arith.constant 1 : index
    %c7_159 = arith.constant 7 : index
    %263 = vector.load %arg10[%c1_157, %c1_158, %c7_159] : memref<3x10x10xf32, #tpu.memory_space<vmem>>, vector<1x8x1xf32>
    %264 = vector.shape_cast %263 : vector<1x8x1xf32> to vector<8x1xf32>
    %265 = vector.shape_cast %262 : vector<8x1xf32> to vector<1x8x1xf32>
    tpu.vector_store %arg10[%c1_157, %c1_158, %c7_159], %265 {strides = array<i32>} : memref<3x10x10xf32, #tpu.memory_space<vmem>>, vector<1x8x1xf32>,
    %c0_160 = arith.constant 0 : index
    %c14_161 = arith.constant 14 : index
    %266 = vector.load %arg11[%c0_160, %c14_161] : memref<8x16xf32, #tpu.memory_space<vmem>>, vector<8x1xf32>
    %c0_162 = arith.constant 0 : index
    %c15_163 = arith.constant 15 : index
    %267 = vector.load %arg11[%c0_162, %c15_163] : memref<8x16xf32, #tpu.memory_space<vmem>>, vector<8x1xf32>
    %268 = arith.maximumf %266, %267 : vector<8x1xf32>
    %c1_164 = arith.constant 1 : index
    %c1_165 = arith.constant 1 : index
    %c8_166 = arith.constant 8 : index
    %269 = vector.load %arg10[%c1_164, %c1_165, %c8_166] : memref<3x10x10xf32, #tpu.memory_space<vmem>>, vector<1x8x1xf32>
    %270 = vector.shape_cast %269 : vector<1x8x1xf32> to vector<8x1xf32>
    %271 = vector.shape_cast %268 : vector<8x1xf32> to vector<1x8x1xf32>
    tpu.vector_store %arg10[%c1_164, %c1_165, %c8_166], %271 {strides = array<i32>} : memref<3x10x10xf32, #tpu.memory_space<vmem>>, vector<1x8x1xf32>,
    %cst_167 = arith.constant 0.000000e+00 : f32
    %272 = vector.broadcast %cst_167 : f32 to vector<16x16xf32>
    %c18 = arith.constant 18 : index
    %273 = memref.load %arg2[%c18] : memref<27xf32, #tpu.memory_space<smem>>
    %274 = vector.extract_strided_slice %9 {offsets = [0, 0], sizes = [16, 16], strides = [1, 1]} : vector<18x18xf32> to vector<16x16xf32>
    %275 = vector.broadcast %273 : f32 to vector<16x16xf32>
    %276 = arith.mulf %275, %274 : vector<16x16xf32>
    %277 = arith.addf %272, %276 : vector<16x16xf32>
    %c19 = arith.constant 19 : index
    %278 = memref.load %arg2[%c19] : memref<27xf32, #tpu.memory_space<smem>>
    %279 = vector.extract_strided_slice %9 {offsets = [0, 1], sizes = [16, 16], strides = [1, 1]} : vector<18x18xf32> to vector<16x16xf32>
    %280 = vector.broadcast %278 : f32 to vector<16x16xf32>
    %281 = arith.mulf %280, %279 : vector<16x16xf32>
    %282 = arith.addf %277, %281 : vector<16x16xf32>
    %c20 = arith.constant 20 : index
    %283 = memref.load %arg2[%c20] : memref<27xf32, #tpu.memory_space<smem>>
    %284 = vector.extract_strided_slice %9 {offsets = [0, 2], sizes = [16, 16], strides = [1, 1]} : vector<18x18xf32> to vector<16x16xf32>
    %285 = vector.broadcast %283 : f32 to vector<16x16xf32>
    %286 = arith.mulf %285, %284 : vector<16x16xf32>
    %287 = arith.addf %282, %286 : vector<16x16xf32>
    %c21 = arith.constant 21 : index
    %288 = memref.load %arg2[%c21] : memref<27xf32, #tpu.memory_space<smem>>
    %289 = vector.extract_strided_slice %9 {offsets = [1, 0], sizes = [16, 16], strides = [1, 1]} : vector<18x18xf32> to vector<16x16xf32>
    %290 = vector.broadcast %288 : f32 to vector<16x16xf32>
    %291 = arith.mulf %290, %289 : vector<16x16xf32>
    %292 = arith.addf %287, %291 : vector<16x16xf32>
    %c22 = arith.constant 22 : index
    %293 = memref.load %arg2[%c22] : memref<27xf32, #tpu.memory_space<smem>>
    %294 = vector.extract_strided_slice %9 {offsets = [1, 1], sizes = [16, 16], strides = [1, 1]} : vector<18x18xf32> to vector<16x16xf32>
    %295 = vector.broadcast %293 : f32 to vector<16x16xf32>
    %296 = arith.mulf %295, %294 : vector<16x16xf32>
    %297 = arith.addf %292, %296 : vector<16x16xf32>
    %c23 = arith.constant 23 : index
    %298 = memref.load %arg2[%c23] : memref<27xf32, #tpu.memory_space<smem>>
    %299 = vector.extract_strided_slice %9 {offsets = [1, 2], sizes = [16, 16], strides = [1, 1]} : vector<18x18xf32> to vector<16x16xf32>
    %300 = vector.broadcast %298 : f32 to vector<16x16xf32>
    %301 = arith.mulf %300, %299 : vector<16x16xf32>
    %302 = arith.addf %297, %301 : vector<16x16xf32>
    %c24 = arith.constant 24 : index
    %303 = memref.load %arg2[%c24] : memref<27xf32, #tpu.memory_space<smem>>
    %304 = vector.extract_strided_slice %9 {offsets = [2, 0], sizes = [16, 16], strides = [1, 1]} : vector<18x18xf32> to vector<16x16xf32>
    %305 = vector.broadcast %303 : f32 to vector<16x16xf32>
    %306 = arith.mulf %305, %304 : vector<16x16xf32>
    %307 = arith.addf %302, %306 : vector<16x16xf32>
    %c25 = arith.constant 25 : index
    %308 = memref.load %arg2[%c25] : memref<27xf32, #tpu.memory_space<smem>>
    %309 = vector.extract_strided_slice %9 {offsets = [2, 1], sizes = [16, 16], strides = [1, 1]} : vector<18x18xf32> to vector<16x16xf32>
    %310 = vector.broadcast %308 : f32 to vector<16x16xf32>
    %311 = arith.mulf %310, %309 : vector<16x16xf32>
    %312 = arith.addf %307, %311 : vector<16x16xf32>
    %c26 = arith.constant 26 : index
    %313 = memref.load %arg2[%c26] : memref<27xf32, #tpu.memory_space<smem>>
    %314 = vector.extract_strided_slice %9 {offsets = [2, 2], sizes = [16, 16], strides = [1, 1]} : vector<18x18xf32> to vector<16x16xf32>
    %315 = vector.broadcast %313 : f32 to vector<16x16xf32>
    %316 = arith.mulf %315, %314 : vector<16x16xf32>
    %317 = arith.addf %312, %316 : vector<16x16xf32>
    %c2_168 = arith.constant 2 : index
    %318 = memref.load %arg3[%c2_168] : memref<3xf32, #tpu.memory_space<smem>>
    %319 = vector.broadcast %318 : f32 to vector<16x16xf32>
    %320 = arith.addf %317, %319 : vector<16x16xf32>
    %cst_169 = arith.constant 0.000000e+00 : f32
    %321 = vector.broadcast %cst_169 : f32 to vector<16x16xf32>
    %322 = arith.maximumf %320, %321 : vector<16x16xf32>
    %323 = vector.extract_strided_slice %322 {offsets = [0, 0], sizes = [1, 16], strides = [1, 1]} : vector<16x16xf32> to vector<1x16xf32>
    %324 = vector.extract_strided_slice %322 {offsets = [1, 0], sizes = [1, 16], strides = [1, 1]} : vector<16x16xf32> to vector<1x16xf32>
    %325 = arith.maximumf %323, %324 : vector<1x16xf32>
    %c0_170 = arith.constant 0 : index
    %c0_171 = arith.constant 0 : index
    %326 = vector.load %arg11[%c0_170, %c0_171] : memref<8x16xf32, #tpu.memory_space<vmem>>, vector<1x16xf32>
    tpu.vector_store %arg11[%c0_170, %c0_171], %325 {strides = array<i32>} : memref<8x16xf32, #tpu.memory_space<vmem>>, vector<1x16xf32>,
    %327 = vector.extract_strided_slice %322 {offsets = [2, 0], sizes = [1, 16], strides = [1, 1]} : vector<16x16xf32> to vector<1x16xf32>
    %328 = vector.extract_strided_slice %322 {offsets = [3, 0], sizes = [1, 16], strides = [1, 1]} : vector<16x16xf32> to vector<1x16xf32>
    %329 = arith.maximumf %327, %328 : vector<1x16xf32>
    %c1_172 = arith.constant 1 : index
    %c0_173 = arith.constant 0 : index
    %330 = vector.load %arg11[%c1_172, %c0_173] : memref<8x16xf32, #tpu.memory_space<vmem>>, vector<1x16xf32>
    tpu.vector_store %arg11[%c1_172, %c0_173], %329 {strides = array<i32>} : memref<8x16xf32, #tpu.memory_space<vmem>>, vector<1x16xf32>,
    %331 = vector.extract_strided_slice %322 {offsets = [4, 0], sizes = [1, 16], strides = [1, 1]} : vector<16x16xf32> to vector<1x16xf32>
    %332 = vector.extract_strided_slice %322 {offsets = [5, 0], sizes = [1, 16], strides = [1, 1]} : vector<16x16xf32> to vector<1x16xf32>
    %333 = arith.maximumf %331, %332 : vector<1x16xf32>
    %c2_174 = arith.constant 2 : index
    %c0_175 = arith.constant 0 : index
    %334 = vector.load %arg11[%c2_174, %c0_175] : memref<8x16xf32, #tpu.memory_space<vmem>>, vector<1x16xf32>
    tpu.vector_store %arg11[%c2_174, %c0_175], %333 {strides = array<i32>} : memref<8x16xf32, #tpu.memory_space<vmem>>, vector<1x16xf32>,
    %335 = vector.extract_strided_slice %322 {offsets = [6, 0], sizes = [1, 16], strides = [1, 1]} : vector<16x16xf32> to vector<1x16xf32>
    %336 = vector.extract_strided_slice %322 {offsets = [7, 0], sizes = [1, 16], strides = [1, 1]} : vector<16x16xf32> to vector<1x16xf32>
    %337 = arith.maximumf %335, %336 : vector<1x16xf32>
    %c3_176 = arith.constant 3 : index
    %c0_177 = arith.constant 0 : index
    %338 = vector.load %arg11[%c3_176, %c0_177] : memref<8x16xf32, #tpu.memory_space<vmem>>, vector<1x16xf32>
    tpu.vector_store %arg11[%c3_176, %c0_177], %337 {strides = array<i32>} : memref<8x16xf32, #tpu.memory_space<vmem>>, vector<1x16xf32>,
    %339 = vector.extract_strided_slice %322 {offsets = [8, 0], sizes = [1, 16], strides = [1, 1]} : vector<16x16xf32> to vector<1x16xf32>
    %340 = vector.extract_strided_slice %322 {offsets = [9, 0], sizes = [1, 16], strides = [1, 1]} : vector<16x16xf32> to vector<1x16xf32>
    %341 = arith.maximumf %339, %340 : vector<1x16xf32>
    %c4_178 = arith.constant 4 : index
    %c0_179 = arith.constant 0 : index
    %342 = vector.load %arg11[%c4_178, %c0_179] : memref<8x16xf32, #tpu.memory_space<vmem>>, vector<1x16xf32>
    tpu.vector_store %arg11[%c4_178, %c0_179], %341 {strides = array<i32>} : memref<8x16xf32, #tpu.memory_space<vmem>>, vector<1x16xf32>,
    %343 = vector.extract_strided_slice %322 {offsets = [10, 0], sizes = [1, 16], strides = [1, 1]} : vector<16x16xf32> to vector<1x16xf32>
    %344 = vector.extract_strided_slice %322 {offsets = [11, 0], sizes = [1, 16], strides = [1, 1]} : vector<16x16xf32> to vector<1x16xf32>
    %345 = arith.maximumf %343, %344 : vector<1x16xf32>
    %c5_180 = arith.constant 5 : index
    %c0_181 = arith.constant 0 : index
    %346 = vector.load %arg11[%c5_180, %c0_181] : memref<8x16xf32, #tpu.memory_space<vmem>>, vector<1x16xf32>
    tpu.vector_store %arg11[%c5_180, %c0_181], %345 {strides = array<i32>} : memref<8x16xf32, #tpu.memory_space<vmem>>, vector<1x16xf32>,
    %347 = vector.extract_strided_slice %322 {offsets = [12, 0], sizes = [1, 16], strides = [1, 1]} : vector<16x16xf32> to vector<1x16xf32>
    %348 = vector.extract_strided_slice %322 {offsets = [13, 0], sizes = [1, 16], strides = [1, 1]} : vector<16x16xf32> to vector<1x16xf32>
    %349 = arith.maximumf %347, %348 : vector<1x16xf32>
    %c6_182 = arith.constant 6 : index
    %c0_183 = arith.constant 0 : index
    %350 = vector.load %arg11[%c6_182, %c0_183] : memref<8x16xf32, #tpu.memory_space<vmem>>, vector<1x16xf32>
    tpu.vector_store %arg11[%c6_182, %c0_183], %349 {strides = array<i32>} : memref<8x16xf32, #tpu.memory_space<vmem>>, vector<1x16xf32>,
    %351 = vector.extract_strided_slice %322 {offsets = [14, 0], sizes = [1, 16], strides = [1, 1]} : vector<16x16xf32> to vector<1x16xf32>
    %352 = vector.extract_strided_slice %322 {offsets = [15, 0], sizes = [1, 16], strides = [1, 1]} : vector<16x16xf32> to vector<1x16xf32>
    %353 = arith.maximumf %351, %352 : vector<1x16xf32>
    %c7_184 = arith.constant 7 : index
    %c0_185 = arith.constant 0 : index
    %354 = vector.load %arg11[%c7_184, %c0_185] : memref<8x16xf32, #tpu.memory_space<vmem>>, vector<1x16xf32>
    tpu.vector_store %arg11[%c7_184, %c0_185], %353 {strides = array<i32>} : memref<8x16xf32, #tpu.memory_space<vmem>>, vector<1x16xf32>,
    %c0_186 = arith.constant 0 : index
    %c0_187 = arith.constant 0 : index
    %355 = vector.load %arg11[%c0_186, %c0_187] : memref<8x16xf32, #tpu.memory_space<vmem>>, vector<8x1xf32>
    %c0_188 = arith.constant 0 : index
    %c1_189 = arith.constant 1 : index
    %356 = vector.load %arg11[%c0_188, %c1_189] : memref<8x16xf32, #tpu.memory_space<vmem>>, vector<8x1xf32>
    %357 = arith.maximumf %355, %356 : vector<8x1xf32>
    %c2_190 = arith.constant 2 : index
    %c1_191 = arith.constant 1 : index
    %c1_192 = arith.constant 1 : index
    %358 = vector.load %arg10[%c2_190, %c1_191, %c1_192] : memref<3x10x10xf32, #tpu.memory_space<vmem>>, vector<1x8x1xf32>
    %359 = vector.shape_cast %358 : vector<1x8x1xf32> to vector<8x1xf32>
    %360 = vector.shape_cast %357 : vector<8x1xf32> to vector<1x8x1xf32>
    tpu.vector_store %arg10[%c2_190, %c1_191, %c1_192], %360 {strides = array<i32>} : memref<3x10x10xf32, #tpu.memory_space<vmem>>, vector<1x8x1xf32>,
    %c0_193 = arith.constant 0 : index
    %c2_194 = arith.constant 2 : index
    %361 = vector.load %arg11[%c0_193, %c2_194] : memref<8x16xf32, #tpu.memory_space<vmem>>, vector<8x1xf32>
    %c0_195 = arith.constant 0 : index
    %c3_196 = arith.constant 3 : index
    %362 = vector.load %arg11[%c0_195, %c3_196] : memref<8x16xf32, #tpu.memory_space<vmem>>, vector<8x1xf32>
    %363 = arith.maximumf %361, %362 : vector<8x1xf32>
    %c2_197 = arith.constant 2 : index
    %c1_198 = arith.constant 1 : index
    %c2_199 = arith.constant 2 : index
    %364 = vector.load %arg10[%c2_197, %c1_198, %c2_199] : memref<3x10x10xf32, #tpu.memory_space<vmem>>, vector<1x8x1xf32>
    %365 = vector.shape_cast %364 : vector<1x8x1xf32> to vector<8x1xf32>
    %366 = vector.shape_cast %363 : vector<8x1xf32> to vector<1x8x1xf32>
    tpu.vector_store %arg10[%c2_197, %c1_198, %c2_199], %366 {strides = array<i32>} : memref<3x10x10xf32, #tpu.memory_space<vmem>>, vector<1x8x1xf32>,
    %c0_200 = arith.constant 0 : index
    %c4_201 = arith.constant 4 : index
    %367 = vector.load %arg11[%c0_200, %c4_201] : memref<8x16xf32, #tpu.memory_space<vmem>>, vector<8x1xf32>
    %c0_202 = arith.constant 0 : index
    %c5_203 = arith.constant 5 : index
    %368 = vector.load %arg11[%c0_202, %c5_203] : memref<8x16xf32, #tpu.memory_space<vmem>>, vector<8x1xf32>
    %369 = arith.maximumf %367, %368 : vector<8x1xf32>
    %c2_204 = arith.constant 2 : index
    %c1_205 = arith.constant 1 : index
    %c3_206 = arith.constant 3 : index
    %370 = vector.load %arg10[%c2_204, %c1_205, %c3_206] : memref<3x10x10xf32, #tpu.memory_space<vmem>>, vector<1x8x1xf32>
    %371 = vector.shape_cast %370 : vector<1x8x1xf32> to vector<8x1xf32>
    %372 = vector.shape_cast %369 : vector<8x1xf32> to vector<1x8x1xf32>
    tpu.vector_store %arg10[%c2_204, %c1_205, %c3_206], %372 {strides = array<i32>} : memref<3x10x10xf32, #tpu.memory_space<vmem>>, vector<1x8x1xf32>,
    %c0_207 = arith.constant 0 : index
    %c6_208 = arith.constant 6 : index
    %373 = vector.load %arg11[%c0_207, %c6_208] : memref<8x16xf32, #tpu.memory_space<vmem>>, vector<8x1xf32>
    %c0_209 = arith.constant 0 : index
    %c7_210 = arith.constant 7 : index
    %374 = vector.load %arg11[%c0_209, %c7_210] : memref<8x16xf32, #tpu.memory_space<vmem>>, vector<8x1xf32>
    %375 = arith.maximumf %373, %374 : vector<8x1xf32>
    %c2_211 = arith.constant 2 : index
    %c1_212 = arith.constant 1 : index
    %c4_213 = arith.constant 4 : index
    %376 = vector.load %arg10[%c2_211, %c1_212, %c4_213] : memref<3x10x10xf32, #tpu.memory_space<vmem>>, vector<1x8x1xf32>
    %377 = vector.shape_cast %376 : vector<1x8x1xf32> to vector<8x1xf32>
    %378 = vector.shape_cast %375 : vector<8x1xf32> to vector<1x8x1xf32>
    tpu.vector_store %arg10[%c2_211, %c1_212, %c4_213], %378 {strides = array<i32>} : memref<3x10x10xf32, #tpu.memory_space<vmem>>, vector<1x8x1xf32>,
    %c0_214 = arith.constant 0 : index
    %c8_215 = arith.constant 8 : index
    %379 = vector.load %arg11[%c0_214, %c8_215] : memref<8x16xf32, #tpu.memory_space<vmem>>, vector<8x1xf32>
    %c0_216 = arith.constant 0 : index
    %c9_217 = arith.constant 9 : index
    %380 = vector.load %arg11[%c0_216, %c9_217] : memref<8x16xf32, #tpu.memory_space<vmem>>, vector<8x1xf32>
    %381 = arith.maximumf %379, %380 : vector<8x1xf32>
    %c2_218 = arith.constant 2 : index
    %c1_219 = arith.constant 1 : index
    %c5_220 = arith.constant 5 : index
    %382 = vector.load %arg10[%c2_218, %c1_219, %c5_220] : memref<3x10x10xf32, #tpu.memory_space<vmem>>, vector<1x8x1xf32>
    %383 = vector.shape_cast %382 : vector<1x8x1xf32> to vector<8x1xf32>
    %384 = vector.shape_cast %381 : vector<8x1xf32> to vector<1x8x1xf32>
    tpu.vector_store %arg10[%c2_218, %c1_219, %c5_220], %384 {strides = array<i32>} : memref<3x10x10xf32, #tpu.memory_space<vmem>>, vector<1x8x1xf32>,
    %c0_221 = arith.constant 0 : index
    %c10_222 = arith.constant 10 : index
    %385 = vector.load %arg11[%c0_221, %c10_222] : memref<8x16xf32, #tpu.memory_space<vmem>>, vector<8x1xf32>
    %c0_223 = arith.constant 0 : index
    %c11_224 = arith.constant 11 : index
    %386 = vector.load %arg11[%c0_223, %c11_224] : memref<8x16xf32, #tpu.memory_space<vmem>>, vector<8x1xf32>
    %387 = arith.maximumf %385, %386 : vector<8x1xf32>
    %c2_225 = arith.constant 2 : index
    %c1_226 = arith.constant 1 : index
    %c6_227 = arith.constant 6 : index
    %388 = vector.load %arg10[%c2_225, %c1_226, %c6_227] : memref<3x10x10xf32, #tpu.memory_space<vmem>>, vector<1x8x1xf32>
    %389 = vector.shape_cast %388 : vector<1x8x1xf32> to vector<8x1xf32>
    %390 = vector.shape_cast %387 : vector<8x1xf32> to vector<1x8x1xf32>
    tpu.vector_store %arg10[%c2_225, %c1_226, %c6_227], %390 {strides = array<i32>} : memref<3x10x10xf32, #tpu.memory_space<vmem>>, vector<1x8x1xf32>,
    %c0_228 = arith.constant 0 : index
    %c12_229 = arith.constant 12 : index
    %391 = vector.load %arg11[%c0_228, %c12_229] : memref<8x16xf32, #tpu.memory_space<vmem>>, vector<8x1xf32>
    %c0_230 = arith.constant 0 : index
    %c13_231 = arith.constant 13 : index
    %392 = vector.load %arg11[%c0_230, %c13_231] : memref<8x16xf32, #tpu.memory_space<vmem>>, vector<8x1xf32>
    %393 = arith.maximumf %391, %392 : vector<8x1xf32>
    %c2_232 = arith.constant 2 : index
    %c1_233 = arith.constant 1 : index
    %c7_234 = arith.constant 7 : index
    %394 = vector.load %arg10[%c2_232, %c1_233, %c7_234] : memref<3x10x10xf32, #tpu.memory_space<vmem>>, vector<1x8x1xf32>
    %395 = vector.shape_cast %394 : vector<1x8x1xf32> to vector<8x1xf32>
    %396 = vector.shape_cast %393 : vector<8x1xf32> to vector<1x8x1xf32>
    tpu.vector_store %arg10[%c2_232, %c1_233, %c7_234], %396 {strides = array<i32>} : memref<3x10x10xf32, #tpu.memory_space<vmem>>, vector<1x8x1xf32>,
    %c0_235 = arith.constant 0 : index
    %c14_236 = arith.constant 14 : index
    %397 = vector.load %arg11[%c0_235, %c14_236] : memref<8x16xf32, #tpu.memory_space<vmem>>, vector<8x1xf32>
    %c0_237 = arith.constant 0 : index
    %c15_238 = arith.constant 15 : index
    %398 = vector.load %arg11[%c0_237, %c15_238] : memref<8x16xf32, #tpu.memory_space<vmem>>, vector<8x1xf32>
    %399 = arith.maximumf %397, %398 : vector<8x1xf32>
    %c2_239 = arith.constant 2 : index
    %c1_240 = arith.constant 1 : index
    %c8_241 = arith.constant 8 : index
    %400 = vector.load %arg10[%c2_239, %c1_240, %c8_241] : memref<3x10x10xf32, #tpu.memory_space<vmem>>, vector<1x8x1xf32>
    %401 = vector.shape_cast %400 : vector<1x8x1xf32> to vector<8x1xf32>
    %402 = vector.shape_cast %399 : vector<8x1xf32> to vector<1x8x1xf32>
    tpu.vector_store %arg10[%c2_239, %c1_240, %c8_241], %402 {strides = array<i32>} : memref<3x10x10xf32, #tpu.memory_space<vmem>>, vector<1x8x1xf32>,
    %cst_242 = arith.constant 0.000000e+00 : f32
    %403 = vector.broadcast %cst_242 : f32 to vector<8x8xf32>
    %c0_243 = arith.constant 0 : index
    %c0_244 = arith.constant 0 : index
    %c0_245 = arith.constant 0 : index
    %404 = vector.load %arg10[%c0_243, %c0_244, %c0_245] : memref<3x10x10xf32, #tpu.memory_space<vmem>>, vector<1x10x10xf32>
    %405 = vector.shape_cast %404 : vector<1x10x10xf32> to vector<10x10xf32>
    %c0_246 = arith.constant 0 : index
    %406 = memref.load %arg4[%c0_246] : memref<81xf32, #tpu.memory_space<smem>>
    %407 = vector.extract_strided_slice %405 {offsets = [0, 0], sizes = [8, 8], strides = [1, 1]} : vector<10x10xf32> to vector<8x8xf32>
    %408 = vector.broadcast %406 : f32 to vector<8x8xf32>
    %409 = arith.mulf %408, %407 : vector<8x8xf32>
    %410 = arith.addf %403, %409 : vector<8x8xf32>
    %c1_247 = arith.constant 1 : index
    %411 = memref.load %arg4[%c1_247] : memref<81xf32, #tpu.memory_space<smem>>
    %412 = vector.extract_strided_slice %405 {offsets = [0, 1], sizes = [8, 8], strides = [1, 1]} : vector<10x10xf32> to vector<8x8xf32>
    %413 = vector.broadcast %411 : f32 to vector<8x8xf32>
    %414 = arith.mulf %413, %412 : vector<8x8xf32>
    %415 = arith.addf %410, %414 : vector<8x8xf32>
    %c2_248 = arith.constant 2 : index
    %416 = memref.load %arg4[%c2_248] : memref<81xf32, #tpu.memory_space<smem>>
    %417 = vector.extract_strided_slice %405 {offsets = [0, 2], sizes = [8, 8], strides = [1, 1]} : vector<10x10xf32> to vector<8x8xf32>
    %418 = vector.broadcast %416 : f32 to vector<8x8xf32>
    %419 = arith.mulf %418, %417 : vector<8x8xf32>
    %420 = arith.addf %415, %419 : vector<8x8xf32>
    %c3_249 = arith.constant 3 : index
    %421 = memref.load %arg4[%c3_249] : memref<81xf32, #tpu.memory_space<smem>>
    %422 = vector.extract_strided_slice %405 {offsets = [1, 0], sizes = [8, 8], strides = [1, 1]} : vector<10x10xf32> to vector<8x8xf32>
    %423 = vector.broadcast %421 : f32 to vector<8x8xf32>
    %424 = arith.mulf %423, %422 : vector<8x8xf32>
    %425 = arith.addf %420, %424 : vector<8x8xf32>
    %c4_250 = arith.constant 4 : index
    %426 = memref.load %arg4[%c4_250] : memref<81xf32, #tpu.memory_space<smem>>
    %427 = vector.extract_strided_slice %405 {offsets = [1, 1], sizes = [8, 8], strides = [1, 1]} : vector<10x10xf32> to vector<8x8xf32>
    %428 = vector.broadcast %426 : f32 to vector<8x8xf32>
    %429 = arith.mulf %428, %427 : vector<8x8xf32>
    %430 = arith.addf %425, %429 : vector<8x8xf32>
    %c5_251 = arith.constant 5 : index
    %431 = memref.load %arg4[%c5_251] : memref<81xf32, #tpu.memory_space<smem>>
    %432 = vector.extract_strided_slice %405 {offsets = [1, 2], sizes = [8, 8], strides = [1, 1]} : vector<10x10xf32> to vector<8x8xf32>
    %433 = vector.broadcast %431 : f32 to vector<8x8xf32>
    %434 = arith.mulf %433, %432 : vector<8x8xf32>
    %435 = arith.addf %430, %434 : vector<8x8xf32>
    %c6_252 = arith.constant 6 : index
    %436 = memref.load %arg4[%c6_252] : memref<81xf32, #tpu.memory_space<smem>>
    %437 = vector.extract_strided_slice %405 {offsets = [2, 0], sizes = [8, 8], strides = [1, 1]} : vector<10x10xf32> to vector<8x8xf32>
    %438 = vector.broadcast %436 : f32 to vector<8x8xf32>
    %439 = arith.mulf %438, %437 : vector<8x8xf32>
    %440 = arith.addf %435, %439 : vector<8x8xf32>
    %c7_253 = arith.constant 7 : index
    %441 = memref.load %arg4[%c7_253] : memref<81xf32, #tpu.memory_space<smem>>
    %442 = vector.extract_strided_slice %405 {offsets = [2, 1], sizes = [8, 8], strides = [1, 1]} : vector<10x10xf32> to vector<8x8xf32>
    %443 = vector.broadcast %441 : f32 to vector<8x8xf32>
    %444 = arith.mulf %443, %442 : vector<8x8xf32>
    %445 = arith.addf %440, %444 : vector<8x8xf32>
    %c8_254 = arith.constant 8 : index
    %446 = memref.load %arg4[%c8_254] : memref<81xf32, #tpu.memory_space<smem>>
    %447 = vector.extract_strided_slice %405 {offsets = [2, 2], sizes = [8, 8], strides = [1, 1]} : vector<10x10xf32> to vector<8x8xf32>
    %448 = vector.broadcast %446 : f32 to vector<8x8xf32>
    %449 = arith.mulf %448, %447 : vector<8x8xf32>
    %450 = arith.addf %445, %449 : vector<8x8xf32>
    %c1_255 = arith.constant 1 : index
    %c0_256 = arith.constant 0 : index
    %c0_257 = arith.constant 0 : index
    %451 = vector.load %arg10[%c1_255, %c0_256, %c0_257] : memref<3x10x10xf32, #tpu.memory_space<vmem>>, vector<1x10x10xf32>
    %452 = vector.shape_cast %451 : vector<1x10x10xf32> to vector<10x10xf32>
    %c9_258 = arith.constant 9 : index
    %453 = memref.load %arg4[%c9_258] : memref<81xf32, #tpu.memory_space<smem>>
    %454 = vector.extract_strided_slice %452 {offsets = [0, 0], sizes = [8, 8], strides = [1, 1]} : vector<10x10xf32> to vector<8x8xf32>
    %455 = vector.broadcast %453 : f32 to vector<8x8xf32>
    %456 = arith.mulf %455, %454 : vector<8x8xf32>
    %457 = arith.addf %450, %456 : vector<8x8xf32>
    %c10_259 = arith.constant 10 : index
    %458 = memref.load %arg4[%c10_259] : memref<81xf32, #tpu.memory_space<smem>>
    %459 = vector.extract_strided_slice %452 {offsets = [0, 1], sizes = [8, 8], strides = [1, 1]} : vector<10x10xf32> to vector<8x8xf32>
    %460 = vector.broadcast %458 : f32 to vector<8x8xf32>
    %461 = arith.mulf %460, %459 : vector<8x8xf32>
    %462 = arith.addf %457, %461 : vector<8x8xf32>
    %c11_260 = arith.constant 11 : index
    %463 = memref.load %arg4[%c11_260] : memref<81xf32, #tpu.memory_space<smem>>
    %464 = vector.extract_strided_slice %452 {offsets = [0, 2], sizes = [8, 8], strides = [1, 1]} : vector<10x10xf32> to vector<8x8xf32>
    %465 = vector.broadcast %463 : f32 to vector<8x8xf32>
    %466 = arith.mulf %465, %464 : vector<8x8xf32>
    %467 = arith.addf %462, %466 : vector<8x8xf32>
    %c12_261 = arith.constant 12 : index
    %468 = memref.load %arg4[%c12_261] : memref<81xf32, #tpu.memory_space<smem>>
    %469 = vector.extract_strided_slice %452 {offsets = [1, 0], sizes = [8, 8], strides = [1, 1]} : vector<10x10xf32> to vector<8x8xf32>
    %470 = vector.broadcast %468 : f32 to vector<8x8xf32>
    %471 = arith.mulf %470, %469 : vector<8x8xf32>
    %472 = arith.addf %467, %471 : vector<8x8xf32>
    %c13_262 = arith.constant 13 : index
    %473 = memref.load %arg4[%c13_262] : memref<81xf32, #tpu.memory_space<smem>>
    %474 = vector.extract_strided_slice %452 {offsets = [1, 1], sizes = [8, 8], strides = [1, 1]} : vector<10x10xf32> to vector<8x8xf32>
    %475 = vector.broadcast %473 : f32 to vector<8x8xf32>
    %476 = arith.mulf %475, %474 : vector<8x8xf32>
    %477 = arith.addf %472, %476 : vector<8x8xf32>
    %c14_263 = arith.constant 14 : index
    %478 = memref.load %arg4[%c14_263] : memref<81xf32, #tpu.memory_space<smem>>
    %479 = vector.extract_strided_slice %452 {offsets = [1, 2], sizes = [8, 8], strides = [1, 1]} : vector<10x10xf32> to vector<8x8xf32>
    %480 = vector.broadcast %478 : f32 to vector<8x8xf32>
    %481 = arith.mulf %480, %479 : vector<8x8xf32>
    %482 = arith.addf %477, %481 : vector<8x8xf32>
    %c15_264 = arith.constant 15 : index
    %483 = memref.load %arg4[%c15_264] : memref<81xf32, #tpu.memory_space<smem>>
    %484 = vector.extract_strided_slice %452 {offsets = [2, 0], sizes = [8, 8], strides = [1, 1]} : vector<10x10xf32> to vector<8x8xf32>
    %485 = vector.broadcast %483 : f32 to vector<8x8xf32>
    %486 = arith.mulf %485, %484 : vector<8x8xf32>
    %487 = arith.addf %482, %486 : vector<8x8xf32>
    %c16_265 = arith.constant 16 : index
    %488 = memref.load %arg4[%c16_265] : memref<81xf32, #tpu.memory_space<smem>>
    %489 = vector.extract_strided_slice %452 {offsets = [2, 1], sizes = [8, 8], strides = [1, 1]} : vector<10x10xf32> to vector<8x8xf32>
    %490 = vector.broadcast %488 : f32 to vector<8x8xf32>
    %491 = arith.mulf %490, %489 : vector<8x8xf32>
    %492 = arith.addf %487, %491 : vector<8x8xf32>
    %c17_266 = arith.constant 17 : index
    %493 = memref.load %arg4[%c17_266] : memref<81xf32, #tpu.memory_space<smem>>
    %494 = vector.extract_strided_slice %452 {offsets = [2, 2], sizes = [8, 8], strides = [1, 1]} : vector<10x10xf32> to vector<8x8xf32>
    %495 = vector.broadcast %493 : f32 to vector<8x8xf32>
    %496 = arith.mulf %495, %494 : vector<8x8xf32>
    %497 = arith.addf %492, %496 : vector<8x8xf32>
    %c2_267 = arith.constant 2 : index
    %c0_268 = arith.constant 0 : index
    %c0_269 = arith.constant 0 : index
    %498 = vector.load %arg10[%c2_267, %c0_268, %c0_269] : memref<3x10x10xf32, #tpu.memory_space<vmem>>, vector<1x10x10xf32>
    %499 = vector.shape_cast %498 : vector<1x10x10xf32> to vector<10x10xf32>
    %c18_270 = arith.constant 18 : index
    %500 = memref.load %arg4[%c18_270] : memref<81xf32, #tpu.memory_space<smem>>
    %501 = vector.extract_strided_slice %499 {offsets = [0, 0], sizes = [8, 8], strides = [1, 1]} : vector<10x10xf32> to vector<8x8xf32>
    %502 = vector.broadcast %500 : f32 to vector<8x8xf32>
    %503 = arith.mulf %502, %501 : vector<8x8xf32>
    %504 = arith.addf %497, %503 : vector<8x8xf32>
    %c19_271 = arith.constant 19 : index
    %505 = memref.load %arg4[%c19_271] : memref<81xf32, #tpu.memory_space<smem>>
    %506 = vector.extract_strided_slice %499 {offsets = [0, 1], sizes = [8, 8], strides = [1, 1]} : vector<10x10xf32> to vector<8x8xf32>
    %507 = vector.broadcast %505 : f32 to vector<8x8xf32>
    %508 = arith.mulf %507, %506 : vector<8x8xf32>
    %509 = arith.addf %504, %508 : vector<8x8xf32>
    %c20_272 = arith.constant 20 : index
    %510 = memref.load %arg4[%c20_272] : memref<81xf32, #tpu.memory_space<smem>>
    %511 = vector.extract_strided_slice %499 {offsets = [0, 2], sizes = [8, 8], strides = [1, 1]} : vector<10x10xf32> to vector<8x8xf32>
    %512 = vector.broadcast %510 : f32 to vector<8x8xf32>
    %513 = arith.mulf %512, %511 : vector<8x8xf32>
    %514 = arith.addf %509, %513 : vector<8x8xf32>
    %c21_273 = arith.constant 21 : index
    %515 = memref.load %arg4[%c21_273] : memref<81xf32, #tpu.memory_space<smem>>
    %516 = vector.extract_strided_slice %499 {offsets = [1, 0], sizes = [8, 8], strides = [1, 1]} : vector<10x10xf32> to vector<8x8xf32>
    %517 = vector.broadcast %515 : f32 to vector<8x8xf32>
    %518 = arith.mulf %517, %516 : vector<8x8xf32>
    %519 = arith.addf %514, %518 : vector<8x8xf32>
    %c22_274 = arith.constant 22 : index
    %520 = memref.load %arg4[%c22_274] : memref<81xf32, #tpu.memory_space<smem>>
    %521 = vector.extract_strided_slice %499 {offsets = [1, 1], sizes = [8, 8], strides = [1, 1]} : vector<10x10xf32> to vector<8x8xf32>
    %522 = vector.broadcast %520 : f32 to vector<8x8xf32>
    %523 = arith.mulf %522, %521 : vector<8x8xf32>
    %524 = arith.addf %519, %523 : vector<8x8xf32>
    %c23_275 = arith.constant 23 : index
    %525 = memref.load %arg4[%c23_275] : memref<81xf32, #tpu.memory_space<smem>>
    %526 = vector.extract_strided_slice %499 {offsets = [1, 2], sizes = [8, 8], strides = [1, 1]} : vector<10x10xf32> to vector<8x8xf32>
    %527 = vector.broadcast %525 : f32 to vector<8x8xf32>
    %528 = arith.mulf %527, %526 : vector<8x8xf32>
    %529 = arith.addf %524, %528 : vector<8x8xf32>
    %c24_276 = arith.constant 24 : index
    %530 = memref.load %arg4[%c24_276] : memref<81xf32, #tpu.memory_space<smem>>
    %531 = vector.extract_strided_slice %499 {offsets = [2, 0], sizes = [8, 8], strides = [1, 1]} : vector<10x10xf32> to vector<8x8xf32>
    %532 = vector.broadcast %530 : f32 to vector<8x8xf32>
    %533 = arith.mulf %532, %531 : vector<8x8xf32>
    %534 = arith.addf %529, %533 : vector<8x8xf32>
    %c25_277 = arith.constant 25 : index
    %535 = memref.load %arg4[%c25_277] : memref<81xf32, #tpu.memory_space<smem>>
    %536 = vector.extract_strided_slice %499 {offsets = [2, 1], sizes = [8, 8], strides = [1, 1]} : vector<10x10xf32> to vector<8x8xf32>
    %537 = vector.broadcast %535 : f32 to vector<8x8xf32>
    %538 = arith.mulf %537, %536 : vector<8x8xf32>
    %539 = arith.addf %534, %538 : vector<8x8xf32>
    %c26_278 = arith.constant 26 : index
    %540 = memref.load %arg4[%c26_278] : memref<81xf32, #tpu.memory_space<smem>>
    %541 = vector.extract_strided_slice %499 {offsets = [2, 2], sizes = [8, 8], strides = [1, 1]} : vector<10x10xf32> to vector<8x8xf32>
    %542 = vector.broadcast %540 : f32 to vector<8x8xf32>
    %543 = arith.mulf %542, %541 : vector<8x8xf32>
    %544 = arith.addf %539, %543 : vector<8x8xf32>
    %c0_279 = arith.constant 0 : index
    %545 = memref.load %arg5[%c0_279] : memref<3xf32, #tpu.memory_space<smem>>
    %546 = vector.broadcast %545 : f32 to vector<8x8xf32>
    %547 = arith.addf %544, %546 : vector<8x8xf32>
    %cst_280 = arith.constant 0.000000e+00 : f32
    %548 = vector.broadcast %cst_280 : f32 to vector<8x8xf32>
    %549 = arith.maximumf %547, %548 : vector<8x8xf32>
    %550 = vector.extract_strided_slice %549 {offsets = [0, 0], sizes = [1, 8], strides = [1, 1]} : vector<8x8xf32> to vector<1x8xf32>
    %551 = vector.extract_strided_slice %549 {offsets = [1, 0], sizes = [1, 8], strides = [1, 1]} : vector<8x8xf32> to vector<1x8xf32>
    %552 = arith.maximumf %550, %551 : vector<1x8xf32>
    %c0_281 = arith.constant 0 : index
    %c0_282 = arith.constant 0 : index
    %553 = vector.load %arg11[%c0_281, %c0_282] : memref<8x16xf32, #tpu.memory_space<vmem>>, vector<1x8xf32>
    tpu.vector_store %arg11[%c0_281, %c0_282], %552 {strides = array<i32>} : memref<8x16xf32, #tpu.memory_space<vmem>>, vector<1x8xf32>,
    %554 = vector.extract_strided_slice %549 {offsets = [2, 0], sizes = [1, 8], strides = [1, 1]} : vector<8x8xf32> to vector<1x8xf32>
    %555 = vector.extract_strided_slice %549 {offsets = [3, 0], sizes = [1, 8], strides = [1, 1]} : vector<8x8xf32> to vector<1x8xf32>
    %556 = arith.maximumf %554, %555 : vector<1x8xf32>
    %c1_283 = arith.constant 1 : index
    %c0_284 = arith.constant 0 : index
    %557 = vector.load %arg11[%c1_283, %c0_284] : memref<8x16xf32, #tpu.memory_space<vmem>>, vector<1x8xf32>
    tpu.vector_store %arg11[%c1_283, %c0_284], %556 {strides = array<i32>} : memref<8x16xf32, #tpu.memory_space<vmem>>, vector<1x8xf32>,
    %558 = vector.extract_strided_slice %549 {offsets = [4, 0], sizes = [1, 8], strides = [1, 1]} : vector<8x8xf32> to vector<1x8xf32>
    %559 = vector.extract_strided_slice %549 {offsets = [5, 0], sizes = [1, 8], strides = [1, 1]} : vector<8x8xf32> to vector<1x8xf32>
    %560 = arith.maximumf %558, %559 : vector<1x8xf32>
    %c2_285 = arith.constant 2 : index
    %c0_286 = arith.constant 0 : index
    %561 = vector.load %arg11[%c2_285, %c0_286] : memref<8x16xf32, #tpu.memory_space<vmem>>, vector<1x8xf32>
    tpu.vector_store %arg11[%c2_285, %c0_286], %560 {strides = array<i32>} : memref<8x16xf32, #tpu.memory_space<vmem>>, vector<1x8xf32>,
    %562 = vector.extract_strided_slice %549 {offsets = [6, 0], sizes = [1, 8], strides = [1, 1]} : vector<8x8xf32> to vector<1x8xf32>
    %563 = vector.extract_strided_slice %549 {offsets = [7, 0], sizes = [1, 8], strides = [1, 1]} : vector<8x8xf32> to vector<1x8xf32>
    %564 = arith.maximumf %562, %563 : vector<1x8xf32>
    %c3_287 = arith.constant 3 : index
    %c0_288 = arith.constant 0 : index
    %565 = vector.load %arg11[%c3_287, %c0_288] : memref<8x16xf32, #tpu.memory_space<vmem>>, vector<1x8xf32>
    tpu.vector_store %arg11[%c3_287, %c0_288], %564 {strides = array<i32>} : memref<8x16xf32, #tpu.memory_space<vmem>>, vector<1x8xf32>,
    %c0_289 = arith.constant 0 : index
    %c0_290 = arith.constant 0 : index
    %566 = vector.load %arg11[%c0_289, %c0_290] : memref<8x16xf32, #tpu.memory_space<vmem>>, vector<4x1xf32>
    %c0_291 = arith.constant 0 : index
    %c1_292 = arith.constant 1 : index
    %567 = vector.load %arg11[%c0_291, %c1_292] : memref<8x16xf32, #tpu.memory_space<vmem>>, vector<4x1xf32>
    %568 = arith.maximumf %566, %567 : vector<4x1xf32>
    %c0_293 = arith.constant 0 : index
    %c0_294 = arith.constant 0 : index
    %569 = vector.load %arg12[%c0_293, %c0_294] : memref<8x16xf32, #tpu.memory_space<vmem>>, vector<4x1xf32>
    tpu.vector_store %arg12[%c0_293, %c0_294], %568 {strides = array<i32>} : memref<8x16xf32, #tpu.memory_space<vmem>>, vector<4x1xf32>,
    %c0_295 = arith.constant 0 : index
    %c2_296 = arith.constant 2 : index
    %570 = vector.load %arg11[%c0_295, %c2_296] : memref<8x16xf32, #tpu.memory_space<vmem>>, vector<4x1xf32>
    %c0_297 = arith.constant 0 : index
    %c3_298 = arith.constant 3 : index
    %571 = vector.load %arg11[%c0_297, %c3_298] : memref<8x16xf32, #tpu.memory_space<vmem>>, vector<4x1xf32>
    %572 = arith.maximumf %570, %571 : vector<4x1xf32>
    %c0_299 = arith.constant 0 : index
    %c1_300 = arith.constant 1 : index
    %573 = vector.load %arg12[%c0_299, %c1_300] : memref<8x16xf32, #tpu.memory_space<vmem>>, vector<4x1xf32>
    tpu.vector_store %arg12[%c0_299, %c1_300], %572 {strides = array<i32>} : memref<8x16xf32, #tpu.memory_space<vmem>>, vector<4x1xf32>,
    %c0_301 = arith.constant 0 : index
    %c4_302 = arith.constant 4 : index
    %574 = vector.load %arg11[%c0_301, %c4_302] : memref<8x16xf32, #tpu.memory_space<vmem>>, vector<4x1xf32>
    %c0_303 = arith.constant 0 : index
    %c5_304 = arith.constant 5 : index
    %575 = vector.load %arg11[%c0_303, %c5_304] : memref<8x16xf32, #tpu.memory_space<vmem>>, vector<4x1xf32>
    %576 = arith.maximumf %574, %575 : vector<4x1xf32>
    %c0_305 = arith.constant 0 : index
    %c2_306 = arith.constant 2 : index
    %577 = vector.load %arg12[%c0_305, %c2_306] : memref<8x16xf32, #tpu.memory_space<vmem>>, vector<4x1xf32>
    tpu.vector_store %arg12[%c0_305, %c2_306], %576 {strides = array<i32>} : memref<8x16xf32, #tpu.memory_space<vmem>>, vector<4x1xf32>,
    %c0_307 = arith.constant 0 : index
    %c6_308 = arith.constant 6 : index
    %578 = vector.load %arg11[%c0_307, %c6_308] : memref<8x16xf32, #tpu.memory_space<vmem>>, vector<4x1xf32>
    %c0_309 = arith.constant 0 : index
    %c7_310 = arith.constant 7 : index
    %579 = vector.load %arg11[%c0_309, %c7_310] : memref<8x16xf32, #tpu.memory_space<vmem>>, vector<4x1xf32>
    %580 = arith.maximumf %578, %579 : vector<4x1xf32>
    %c0_311 = arith.constant 0 : index
    %c3_312 = arith.constant 3 : index
    %581 = vector.load %arg12[%c0_311, %c3_312] : memref<8x16xf32, #tpu.memory_space<vmem>>, vector<4x1xf32>
    tpu.vector_store %arg12[%c0_311, %c3_312], %580 {strides = array<i32>} : memref<8x16xf32, #tpu.memory_space<vmem>>, vector<4x1xf32>,
    %cst_313 = arith.constant 0.000000e+00 : f32
    %582 = vector.broadcast %cst_313 : f32 to vector<8x8xf32>
    %c0_314 = arith.constant 0 : index
    %c0_315 = arith.constant 0 : index
    %c0_316 = arith.constant 0 : index
    %583 = vector.load %arg10[%c0_314, %c0_315, %c0_316] : memref<3x10x10xf32, #tpu.memory_space<vmem>>, vector<1x10x10xf32>
    %584 = vector.shape_cast %583 : vector<1x10x10xf32> to vector<10x10xf32>
    %c27 = arith.constant 27 : index
    %585 = memref.load %arg4[%c27] : memref<81xf32, #tpu.memory_space<smem>>
    %586 = vector.extract_strided_slice %584 {offsets = [0, 0], sizes = [8, 8], strides = [1, 1]} : vector<10x10xf32> to vector<8x8xf32>
    %587 = vector.broadcast %585 : f32 to vector<8x8xf32>
    %588 = arith.mulf %587, %586 : vector<8x8xf32>
    %589 = arith.addf %582, %588 : vector<8x8xf32>
    %c28 = arith.constant 28 : index
    %590 = memref.load %arg4[%c28] : memref<81xf32, #tpu.memory_space<smem>>
    %591 = vector.extract_strided_slice %584 {offsets = [0, 1], sizes = [8, 8], strides = [1, 1]} : vector<10x10xf32> to vector<8x8xf32>
    %592 = vector.broadcast %590 : f32 to vector<8x8xf32>
    %593 = arith.mulf %592, %591 : vector<8x8xf32>
    %594 = arith.addf %589, %593 : vector<8x8xf32>
    %c29 = arith.constant 29 : index
    %595 = memref.load %arg4[%c29] : memref<81xf32, #tpu.memory_space<smem>>
    %596 = vector.extract_strided_slice %584 {offsets = [0, 2], sizes = [8, 8], strides = [1, 1]} : vector<10x10xf32> to vector<8x8xf32>
    %597 = vector.broadcast %595 : f32 to vector<8x8xf32>
    %598 = arith.mulf %597, %596 : vector<8x8xf32>
    %599 = arith.addf %594, %598 : vector<8x8xf32>
    %c30 = arith.constant 30 : index
    %600 = memref.load %arg4[%c30] : memref<81xf32, #tpu.memory_space<smem>>
    %601 = vector.extract_strided_slice %584 {offsets = [1, 0], sizes = [8, 8], strides = [1, 1]} : vector<10x10xf32> to vector<8x8xf32>
    %602 = vector.broadcast %600 : f32 to vector<8x8xf32>
    %603 = arith.mulf %602, %601 : vector<8x8xf32>
    %604 = arith.addf %599, %603 : vector<8x8xf32>
    %c31 = arith.constant 31 : index
    %605 = memref.load %arg4[%c31] : memref<81xf32, #tpu.memory_space<smem>>
    %606 = vector.extract_strided_slice %584 {offsets = [1, 1], sizes = [8, 8], strides = [1, 1]} : vector<10x10xf32> to vector<8x8xf32>
    %607 = vector.broadcast %605 : f32 to vector<8x8xf32>
    %608 = arith.mulf %607, %606 : vector<8x8xf32>
    %609 = arith.addf %604, %608 : vector<8x8xf32>
    %c32 = arith.constant 32 : index
    %610 = memref.load %arg4[%c32] : memref<81xf32, #tpu.memory_space<smem>>
    %611 = vector.extract_strided_slice %584 {offsets = [1, 2], sizes = [8, 8], strides = [1, 1]} : vector<10x10xf32> to vector<8x8xf32>
    %612 = vector.broadcast %610 : f32 to vector<8x8xf32>
    %613 = arith.mulf %612, %611 : vector<8x8xf32>
    %614 = arith.addf %609, %613 : vector<8x8xf32>
    %c33 = arith.constant 33 : index
    %615 = memref.load %arg4[%c33] : memref<81xf32, #tpu.memory_space<smem>>
    %616 = vector.extract_strided_slice %584 {offsets = [2, 0], sizes = [8, 8], strides = [1, 1]} : vector<10x10xf32> to vector<8x8xf32>
    %617 = vector.broadcast %615 : f32 to vector<8x8xf32>
    %618 = arith.mulf %617, %616 : vector<8x8xf32>
    %619 = arith.addf %614, %618 : vector<8x8xf32>
    %c34 = arith.constant 34 : index
    %620 = memref.load %arg4[%c34] : memref<81xf32, #tpu.memory_space<smem>>
    %621 = vector.extract_strided_slice %584 {offsets = [2, 1], sizes = [8, 8], strides = [1, 1]} : vector<10x10xf32> to vector<8x8xf32>
    %622 = vector.broadcast %620 : f32 to vector<8x8xf32>
    %623 = arith.mulf %622, %621 : vector<8x8xf32>
    %624 = arith.addf %619, %623 : vector<8x8xf32>
    %c35 = arith.constant 35 : index
    %625 = memref.load %arg4[%c35] : memref<81xf32, #tpu.memory_space<smem>>
    %626 = vector.extract_strided_slice %584 {offsets = [2, 2], sizes = [8, 8], strides = [1, 1]} : vector<10x10xf32> to vector<8x8xf32>
    %627 = vector.broadcast %625 : f32 to vector<8x8xf32>
    %628 = arith.mulf %627, %626 : vector<8x8xf32>
    %629 = arith.addf %624, %628 : vector<8x8xf32>
    %c1_317 = arith.constant 1 : index
    %c0_318 = arith.constant 0 : index
    %c0_319 = arith.constant 0 : index
    %630 = vector.load %arg10[%c1_317, %c0_318, %c0_319] : memref<3x10x10xf32, #tpu.memory_space<vmem>>, vector<1x10x10xf32>
    %631 = vector.shape_cast %630 : vector<1x10x10xf32> to vector<10x10xf32>
    %c36 = arith.constant 36 : index
    %632 = memref.load %arg4[%c36] : memref<81xf32, #tpu.memory_space<smem>>
    %633 = vector.extract_strided_slice %631 {offsets = [0, 0], sizes = [8, 8], strides = [1, 1]} : vector<10x10xf32> to vector<8x8xf32>
    %634 = vector.broadcast %632 : f32 to vector<8x8xf32>
    %635 = arith.mulf %634, %633 : vector<8x8xf32>
    %636 = arith.addf %629, %635 : vector<8x8xf32>
    %c37 = arith.constant 37 : index
    %637 = memref.load %arg4[%c37] : memref<81xf32, #tpu.memory_space<smem>>
    %638 = vector.extract_strided_slice %631 {offsets = [0, 1], sizes = [8, 8], strides = [1, 1]} : vector<10x10xf32> to vector<8x8xf32>
    %639 = vector.broadcast %637 : f32 to vector<8x8xf32>
    %640 = arith.mulf %639, %638 : vector<8x8xf32>
    %641 = arith.addf %636, %640 : vector<8x8xf32>
    %c38 = arith.constant 38 : index
    %642 = memref.load %arg4[%c38] : memref<81xf32, #tpu.memory_space<smem>>
    %643 = vector.extract_strided_slice %631 {offsets = [0, 2], sizes = [8, 8], strides = [1, 1]} : vector<10x10xf32> to vector<8x8xf32>
    %644 = vector.broadcast %642 : f32 to vector<8x8xf32>
    %645 = arith.mulf %644, %643 : vector<8x8xf32>
    %646 = arith.addf %641, %645 : vector<8x8xf32>
    %c39 = arith.constant 39 : index
    %647 = memref.load %arg4[%c39] : memref<81xf32, #tpu.memory_space<smem>>
    %648 = vector.extract_strided_slice %631 {offsets = [1, 0], sizes = [8, 8], strides = [1, 1]} : vector<10x10xf32> to vector<8x8xf32>
    %649 = vector.broadcast %647 : f32 to vector<8x8xf32>
    %650 = arith.mulf %649, %648 : vector<8x8xf32>
    %651 = arith.addf %646, %650 : vector<8x8xf32>
    %c40 = arith.constant 40 : index
    %652 = memref.load %arg4[%c40] : memref<81xf32, #tpu.memory_space<smem>>
    %653 = vector.extract_strided_slice %631 {offsets = [1, 1], sizes = [8, 8], strides = [1, 1]} : vector<10x10xf32> to vector<8x8xf32>
    %654 = vector.broadcast %652 : f32 to vector<8x8xf32>
    %655 = arith.mulf %654, %653 : vector<8x8xf32>
    %656 = arith.addf %651, %655 : vector<8x8xf32>
    %c41 = arith.constant 41 : index
    %657 = memref.load %arg4[%c41] : memref<81xf32, #tpu.memory_space<smem>>
    %658 = vector.extract_strided_slice %631 {offsets = [1, 2], sizes = [8, 8], strides = [1, 1]} : vector<10x10xf32> to vector<8x8xf32>
    %659 = vector.broadcast %657 : f32 to vector<8x8xf32>
    %660 = arith.mulf %659, %658 : vector<8x8xf32>
    %661 = arith.addf %656, %660 : vector<8x8xf32>
    %c42 = arith.constant 42 : index
    %662 = memref.load %arg4[%c42] : memref<81xf32, #tpu.memory_space<smem>>
    %663 = vector.extract_strided_slice %631 {offsets = [2, 0], sizes = [8, 8], strides = [1, 1]} : vector<10x10xf32> to vector<8x8xf32>
    %664 = vector.broadcast %662 : f32 to vector<8x8xf32>
    %665 = arith.mulf %664, %663 : vector<8x8xf32>
    %666 = arith.addf %661, %665 : vector<8x8xf32>
    %c43 = arith.constant 43 : index
    %667 = memref.load %arg4[%c43] : memref<81xf32, #tpu.memory_space<smem>>
    %668 = vector.extract_strided_slice %631 {offsets = [2, 1], sizes = [8, 8], strides = [1, 1]} : vector<10x10xf32> to vector<8x8xf32>
    %669 = vector.broadcast %667 : f32 to vector<8x8xf32>
    %670 = arith.mulf %669, %668 : vector<8x8xf32>
    %671 = arith.addf %666, %670 : vector<8x8xf32>
    %c44 = arith.constant 44 : index
    %672 = memref.load %arg4[%c44] : memref<81xf32, #tpu.memory_space<smem>>
    %673 = vector.extract_strided_slice %631 {offsets = [2, 2], sizes = [8, 8], strides = [1, 1]} : vector<10x10xf32> to vector<8x8xf32>
    %674 = vector.broadcast %672 : f32 to vector<8x8xf32>
    %675 = arith.mulf %674, %673 : vector<8x8xf32>
    %676 = arith.addf %671, %675 : vector<8x8xf32>
    %c2_320 = arith.constant 2 : index
    %c0_321 = arith.constant 0 : index
    %c0_322 = arith.constant 0 : index
    %677 = vector.load %arg10[%c2_320, %c0_321, %c0_322] : memref<3x10x10xf32, #tpu.memory_space<vmem>>, vector<1x10x10xf32>
    %678 = vector.shape_cast %677 : vector<1x10x10xf32> to vector<10x10xf32>
    %c45 = arith.constant 45 : index
    %679 = memref.load %arg4[%c45] : memref<81xf32, #tpu.memory_space<smem>>
    %680 = vector.extract_strided_slice %678 {offsets = [0, 0], sizes = [8, 8], strides = [1, 1]} : vector<10x10xf32> to vector<8x8xf32>
    %681 = vector.broadcast %679 : f32 to vector<8x8xf32>
    %682 = arith.mulf %681, %680 : vector<8x8xf32>
    %683 = arith.addf %676, %682 : vector<8x8xf32>
    %c46 = arith.constant 46 : index
    %684 = memref.load %arg4[%c46] : memref<81xf32, #tpu.memory_space<smem>>
    %685 = vector.extract_strided_slice %678 {offsets = [0, 1], sizes = [8, 8], strides = [1, 1]} : vector<10x10xf32> to vector<8x8xf32>
    %686 = vector.broadcast %684 : f32 to vector<8x8xf32>
    %687 = arith.mulf %686, %685 : vector<8x8xf32>
    %688 = arith.addf %683, %687 : vector<8x8xf32>
    %c47 = arith.constant 47 : index
    %689 = memref.load %arg4[%c47] : memref<81xf32, #tpu.memory_space<smem>>
    %690 = vector.extract_strided_slice %678 {offsets = [0, 2], sizes = [8, 8], strides = [1, 1]} : vector<10x10xf32> to vector<8x8xf32>
    %691 = vector.broadcast %689 : f32 to vector<8x8xf32>
    %692 = arith.mulf %691, %690 : vector<8x8xf32>
    %693 = arith.addf %688, %692 : vector<8x8xf32>
    %c48 = arith.constant 48 : index
    %694 = memref.load %arg4[%c48] : memref<81xf32, #tpu.memory_space<smem>>
    %695 = vector.extract_strided_slice %678 {offsets = [1, 0], sizes = [8, 8], strides = [1, 1]} : vector<10x10xf32> to vector<8x8xf32>
    %696 = vector.broadcast %694 : f32 to vector<8x8xf32>
    %697 = arith.mulf %696, %695 : vector<8x8xf32>
    %698 = arith.addf %693, %697 : vector<8x8xf32>
    %c49 = arith.constant 49 : index
    %699 = memref.load %arg4[%c49] : memref<81xf32, #tpu.memory_space<smem>>
    %700 = vector.extract_strided_slice %678 {offsets = [1, 1], sizes = [8, 8], strides = [1, 1]} : vector<10x10xf32> to vector<8x8xf32>
    %701 = vector.broadcast %699 : f32 to vector<8x8xf32>
    %702 = arith.mulf %701, %700 : vector<8x8xf32>
    %703 = arith.addf %698, %702 : vector<8x8xf32>
    %c50 = arith.constant 50 : index
    %704 = memref.load %arg4[%c50] : memref<81xf32, #tpu.memory_space<smem>>
    %705 = vector.extract_strided_slice %678 {offsets = [1, 2], sizes = [8, 8], strides = [1, 1]} : vector<10x10xf32> to vector<8x8xf32>
    %706 = vector.broadcast %704 : f32 to vector<8x8xf32>
    %707 = arith.mulf %706, %705 : vector<8x8xf32>
    %708 = arith.addf %703, %707 : vector<8x8xf32>
    %c51 = arith.constant 51 : index
    %709 = memref.load %arg4[%c51] : memref<81xf32, #tpu.memory_space<smem>>
    %710 = vector.extract_strided_slice %678 {offsets = [2, 0], sizes = [8, 8], strides = [1, 1]} : vector<10x10xf32> to vector<8x8xf32>
    %711 = vector.broadcast %709 : f32 to vector<8x8xf32>
    %712 = arith.mulf %711, %710 : vector<8x8xf32>
    %713 = arith.addf %708, %712 : vector<8x8xf32>
    %c52 = arith.constant 52 : index
    %714 = memref.load %arg4[%c52] : memref<81xf32, #tpu.memory_space<smem>>
    %715 = vector.extract_strided_slice %678 {offsets = [2, 1], sizes = [8, 8], strides = [1, 1]} : vector<10x10xf32> to vector<8x8xf32>
    %716 = vector.broadcast %714 : f32 to vector<8x8xf32>
    %717 = arith.mulf %716, %715 : vector<8x8xf32>
    %718 = arith.addf %713, %717 : vector<8x8xf32>
    %c53 = arith.constant 53 : index
    %719 = memref.load %arg4[%c53] : memref<81xf32, #tpu.memory_space<smem>>
    %720 = vector.extract_strided_slice %678 {offsets = [2, 2], sizes = [8, 8], strides = [1, 1]} : vector<10x10xf32> to vector<8x8xf32>
    %721 = vector.broadcast %719 : f32 to vector<8x8xf32>
    %722 = arith.mulf %721, %720 : vector<8x8xf32>
    %723 = arith.addf %718, %722 : vector<8x8xf32>
    %c1_323 = arith.constant 1 : index
    %724 = memref.load %arg5[%c1_323] : memref<3xf32, #tpu.memory_space<smem>>
    %725 = vector.broadcast %724 : f32 to vector<8x8xf32>
    %726 = arith.addf %723, %725 : vector<8x8xf32>
    %cst_324 = arith.constant 0.000000e+00 : f32
    %727 = vector.broadcast %cst_324 : f32 to vector<8x8xf32>
    %728 = arith.maximumf %726, %727 : vector<8x8xf32>
    %729 = vector.extract_strided_slice %728 {offsets = [0, 0], sizes = [1, 8], strides = [1, 1]} : vector<8x8xf32> to vector<1x8xf32>
    %730 = vector.extract_strided_slice %728 {offsets = [1, 0], sizes = [1, 8], strides = [1, 1]} : vector<8x8xf32> to vector<1x8xf32>
    %731 = arith.maximumf %729, %730 : vector<1x8xf32>
    %c0_325 = arith.constant 0 : index
    %c0_326 = arith.constant 0 : index
    %732 = vector.load %arg11[%c0_325, %c0_326] : memref<8x16xf32, #tpu.memory_space<vmem>>, vector<1x8xf32>
    tpu.vector_store %arg11[%c0_325, %c0_326], %731 {strides = array<i32>} : memref<8x16xf32, #tpu.memory_space<vmem>>, vector<1x8xf32>,
    %733 = vector.extract_strided_slice %728 {offsets = [2, 0], sizes = [1, 8], strides = [1, 1]} : vector<8x8xf32> to vector<1x8xf32>
    %734 = vector.extract_strided_slice %728 {offsets = [3, 0], sizes = [1, 8], strides = [1, 1]} : vector<8x8xf32> to vector<1x8xf32>
    %735 = arith.maximumf %733, %734 : vector<1x8xf32>
    %c1_327 = arith.constant 1 : index
    %c0_328 = arith.constant 0 : index
    %736 = vector.load %arg11[%c1_327, %c0_328] : memref<8x16xf32, #tpu.memory_space<vmem>>, vector<1x8xf32>
    tpu.vector_store %arg11[%c1_327, %c0_328], %735 {strides = array<i32>} : memref<8x16xf32, #tpu.memory_space<vmem>>, vector<1x8xf32>,
    %737 = vector.extract_strided_slice %728 {offsets = [4, 0], sizes = [1, 8], strides = [1, 1]} : vector<8x8xf32> to vector<1x8xf32>
    %738 = vector.extract_strided_slice %728 {offsets = [5, 0], sizes = [1, 8], strides = [1, 1]} : vector<8x8xf32> to vector<1x8xf32>
    %739 = arith.maximumf %737, %738 : vector<1x8xf32>
    %c2_329 = arith.constant 2 : index
    %c0_330 = arith.constant 0 : index
    %740 = vector.load %arg11[%c2_329, %c0_330] : memref<8x16xf32, #tpu.memory_space<vmem>>, vector<1x8xf32>
    tpu.vector_store %arg11[%c2_329, %c0_330], %739 {strides = array<i32>} : memref<8x16xf32, #tpu.memory_space<vmem>>, vector<1x8xf32>,
    %741 = vector.extract_strided_slice %728 {offsets = [6, 0], sizes = [1, 8], strides = [1, 1]} : vector<8x8xf32> to vector<1x8xf32>
    %742 = vector.extract_strided_slice %728 {offsets = [7, 0], sizes = [1, 8], strides = [1, 1]} : vector<8x8xf32> to vector<1x8xf32>
    %743 = arith.maximumf %741, %742 : vector<1x8xf32>
    %c3_331 = arith.constant 3 : index
    %c0_332 = arith.constant 0 : index
    %744 = vector.load %arg11[%c3_331, %c0_332] : memref<8x16xf32, #tpu.memory_space<vmem>>, vector<1x8xf32>
    tpu.vector_store %arg11[%c3_331, %c0_332], %743 {strides = array<i32>} : memref<8x16xf32, #tpu.memory_space<vmem>>, vector<1x8xf32>,
    %c0_333 = arith.constant 0 : index
    %c0_334 = arith.constant 0 : index
    %745 = vector.load %arg11[%c0_333, %c0_334] : memref<8x16xf32, #tpu.memory_space<vmem>>, vector<4x1xf32>
    %c0_335 = arith.constant 0 : index
    %c1_336 = arith.constant 1 : index
    %746 = vector.load %arg11[%c0_335, %c1_336] : memref<8x16xf32, #tpu.memory_space<vmem>>, vector<4x1xf32>
    %747 = arith.maximumf %745, %746 : vector<4x1xf32>
    %c0_337 = arith.constant 0 : index
    %c4_338 = arith.constant 4 : index
    %748 = vector.load %arg12[%c0_337, %c4_338] : memref<8x16xf32, #tpu.memory_space<vmem>>, vector<4x1xf32>
    tpu.vector_store %arg12[%c0_337, %c4_338], %747 {strides = array<i32>} : memref<8x16xf32, #tpu.memory_space<vmem>>, vector<4x1xf32>,
    %c0_339 = arith.constant 0 : index
    %c2_340 = arith.constant 2 : index
    %749 = vector.load %arg11[%c0_339, %c2_340] : memref<8x16xf32, #tpu.memory_space<vmem>>, vector<4x1xf32>
    %c0_341 = arith.constant 0 : index
    %c3_342 = arith.constant 3 : index
    %750 = vector.load %arg11[%c0_341, %c3_342] : memref<8x16xf32, #tpu.memory_space<vmem>>, vector<4x1xf32>
    %751 = arith.maximumf %749, %750 : vector<4x1xf32>
    %c0_343 = arith.constant 0 : index
    %c5_344 = arith.constant 5 : index
    %752 = vector.load %arg12[%c0_343, %c5_344] : memref<8x16xf32, #tpu.memory_space<vmem>>, vector<4x1xf32>
    tpu.vector_store %arg12[%c0_343, %c5_344], %751 {strides = array<i32>} : memref<8x16xf32, #tpu.memory_space<vmem>>, vector<4x1xf32>,
    %c0_345 = arith.constant 0 : index
    %c4_346 = arith.constant 4 : index
    %753 = vector.load %arg11[%c0_345, %c4_346] : memref<8x16xf32, #tpu.memory_space<vmem>>, vector<4x1xf32>
    %c0_347 = arith.constant 0 : index
    %c5_348 = arith.constant 5 : index
    %754 = vector.load %arg11[%c0_347, %c5_348] : memref<8x16xf32, #tpu.memory_space<vmem>>, vector<4x1xf32>
    %755 = arith.maximumf %753, %754 : vector<4x1xf32>
    %c0_349 = arith.constant 0 : index
    %c6_350 = arith.constant 6 : index
    %756 = vector.load %arg12[%c0_349, %c6_350] : memref<8x16xf32, #tpu.memory_space<vmem>>, vector<4x1xf32>
    tpu.vector_store %arg12[%c0_349, %c6_350], %755 {strides = array<i32>} : memref<8x16xf32, #tpu.memory_space<vmem>>, vector<4x1xf32>,
    %c0_351 = arith.constant 0 : index
    %c6_352 = arith.constant 6 : index
    %757 = vector.load %arg11[%c0_351, %c6_352] : memref<8x16xf32, #tpu.memory_space<vmem>>, vector<4x1xf32>
    %c0_353 = arith.constant 0 : index
    %c7_354 = arith.constant 7 : index
    %758 = vector.load %arg11[%c0_353, %c7_354] : memref<8x16xf32, #tpu.memory_space<vmem>>, vector<4x1xf32>
    %759 = arith.maximumf %757, %758 : vector<4x1xf32>
    %c0_355 = arith.constant 0 : index
    %c7_356 = arith.constant 7 : index
    %760 = vector.load %arg12[%c0_355, %c7_356] : memref<8x16xf32, #tpu.memory_space<vmem>>, vector<4x1xf32>
    tpu.vector_store %arg12[%c0_355, %c7_356], %759 {strides = array<i32>} : memref<8x16xf32, #tpu.memory_space<vmem>>, vector<4x1xf32>,
    %cst_357 = arith.constant 0.000000e+00 : f32
    %761 = vector.broadcast %cst_357 : f32 to vector<8x8xf32>
    %c0_358 = arith.constant 0 : index
    %c0_359 = arith.constant 0 : index
    %c0_360 = arith.constant 0 : index
    %762 = vector.load %arg10[%c0_358, %c0_359, %c0_360] : memref<3x10x10xf32, #tpu.memory_space<vmem>>, vector<1x10x10xf32>
    %763 = vector.shape_cast %762 : vector<1x10x10xf32> to vector<10x10xf32>
    %c54 = arith.constant 54 : index
    %764 = memref.load %arg4[%c54] : memref<81xf32, #tpu.memory_space<smem>>
    %765 = vector.extract_strided_slice %763 {offsets = [0, 0], sizes = [8, 8], strides = [1, 1]} : vector<10x10xf32> to vector<8x8xf32>
    %766 = vector.broadcast %764 : f32 to vector<8x8xf32>
    %767 = arith.mulf %766, %765 : vector<8x8xf32>
    %768 = arith.addf %761, %767 : vector<8x8xf32>
    %c55 = arith.constant 55 : index
    %769 = memref.load %arg4[%c55] : memref<81xf32, #tpu.memory_space<smem>>
    %770 = vector.extract_strided_slice %763 {offsets = [0, 1], sizes = [8, 8], strides = [1, 1]} : vector<10x10xf32> to vector<8x8xf32>
    %771 = vector.broadcast %769 : f32 to vector<8x8xf32>
    %772 = arith.mulf %771, %770 : vector<8x8xf32>
    %773 = arith.addf %768, %772 : vector<8x8xf32>
    %c56 = arith.constant 56 : index
    %774 = memref.load %arg4[%c56] : memref<81xf32, #tpu.memory_space<smem>>
    %775 = vector.extract_strided_slice %763 {offsets = [0, 2], sizes = [8, 8], strides = [1, 1]} : vector<10x10xf32> to vector<8x8xf32>
    %776 = vector.broadcast %774 : f32 to vector<8x8xf32>
    %777 = arith.mulf %776, %775 : vector<8x8xf32>
    %778 = arith.addf %773, %777 : vector<8x8xf32>
    %c57 = arith.constant 57 : index
    %779 = memref.load %arg4[%c57] : memref<81xf32, #tpu.memory_space<smem>>
    %780 = vector.extract_strided_slice %763 {offsets = [1, 0], sizes = [8, 8], strides = [1, 1]} : vector<10x10xf32> to vector<8x8xf32>
    %781 = vector.broadcast %779 : f32 to vector<8x8xf32>
    %782 = arith.mulf %781, %780 : vector<8x8xf32>
    %783 = arith.addf %778, %782 : vector<8x8xf32>
    %c58 = arith.constant 58 : index
    %784 = memref.load %arg4[%c58] : memref<81xf32, #tpu.memory_space<smem>>
    %785 = vector.extract_strided_slice %763 {offsets = [1, 1], sizes = [8, 8], strides = [1, 1]} : vector<10x10xf32> to vector<8x8xf32>
    %786 = vector.broadcast %784 : f32 to vector<8x8xf32>
    %787 = arith.mulf %786, %785 : vector<8x8xf32>
    %788 = arith.addf %783, %787 : vector<8x8xf32>
    %c59 = arith.constant 59 : index
    %789 = memref.load %arg4[%c59] : memref<81xf32, #tpu.memory_space<smem>>
    %790 = vector.extract_strided_slice %763 {offsets = [1, 2], sizes = [8, 8], strides = [1, 1]} : vector<10x10xf32> to vector<8x8xf32>
    %791 = vector.broadcast %789 : f32 to vector<8x8xf32>
    %792 = arith.mulf %791, %790 : vector<8x8xf32>
    %793 = arith.addf %788, %792 : vector<8x8xf32>
    %c60 = arith.constant 60 : index
    %794 = memref.load %arg4[%c60] : memref<81xf32, #tpu.memory_space<smem>>
    %795 = vector.extract_strided_slice %763 {offsets = [2, 0], sizes = [8, 8], strides = [1, 1]} : vector<10x10xf32> to vector<8x8xf32>
    %796 = vector.broadcast %794 : f32 to vector<8x8xf32>
    %797 = arith.mulf %796, %795 : vector<8x8xf32>
    %798 = arith.addf %793, %797 : vector<8x8xf32>
    %c61 = arith.constant 61 : index
    %799 = memref.load %arg4[%c61] : memref<81xf32, #tpu.memory_space<smem>>
    %800 = vector.extract_strided_slice %763 {offsets = [2, 1], sizes = [8, 8], strides = [1, 1]} : vector<10x10xf32> to vector<8x8xf32>
    %801 = vector.broadcast %799 : f32 to vector<8x8xf32>
    %802 = arith.mulf %801, %800 : vector<8x8xf32>
    %803 = arith.addf %798, %802 : vector<8x8xf32>
    %c62 = arith.constant 62 : index
    %804 = memref.load %arg4[%c62] : memref<81xf32, #tpu.memory_space<smem>>
    %805 = vector.extract_strided_slice %763 {offsets = [2, 2], sizes = [8, 8], strides = [1, 1]} : vector<10x10xf32> to vector<8x8xf32>
    %806 = vector.broadcast %804 : f32 to vector<8x8xf32>
    %807 = arith.mulf %806, %805 : vector<8x8xf32>
    %808 = arith.addf %803, %807 : vector<8x8xf32>
    %c1_361 = arith.constant 1 : index
    %c0_362 = arith.constant 0 : index
    %c0_363 = arith.constant 0 : index
    %809 = vector.load %arg10[%c1_361, %c0_362, %c0_363] : memref<3x10x10xf32, #tpu.memory_space<vmem>>, vector<1x10x10xf32>
    %810 = vector.shape_cast %809 : vector<1x10x10xf32> to vector<10x10xf32>
    %c63 = arith.constant 63 : index
    %811 = memref.load %arg4[%c63] : memref<81xf32, #tpu.memory_space<smem>>
    %812 = vector.extract_strided_slice %810 {offsets = [0, 0], sizes = [8, 8], strides = [1, 1]} : vector<10x10xf32> to vector<8x8xf32>
    %813 = vector.broadcast %811 : f32 to vector<8x8xf32>
    %814 = arith.mulf %813, %812 : vector<8x8xf32>
    %815 = arith.addf %808, %814 : vector<8x8xf32>
    %c64 = arith.constant 64 : index
    %816 = memref.load %arg4[%c64] : memref<81xf32, #tpu.memory_space<smem>>
    %817 = vector.extract_strided_slice %810 {offsets = [0, 1], sizes = [8, 8], strides = [1, 1]} : vector<10x10xf32> to vector<8x8xf32>
    %818 = vector.broadcast %816 : f32 to vector<8x8xf32>
    %819 = arith.mulf %818, %817 : vector<8x8xf32>
    %820 = arith.addf %815, %819 : vector<8x8xf32>
    %c65 = arith.constant 65 : index
    %821 = memref.load %arg4[%c65] : memref<81xf32, #tpu.memory_space<smem>>
    %822 = vector.extract_strided_slice %810 {offsets = [0, 2], sizes = [8, 8], strides = [1, 1]} : vector<10x10xf32> to vector<8x8xf32>
    %823 = vector.broadcast %821 : f32 to vector<8x8xf32>
    %824 = arith.mulf %823, %822 : vector<8x8xf32>
    %825 = arith.addf %820, %824 : vector<8x8xf32>
    %c66 = arith.constant 66 : index
    %826 = memref.load %arg4[%c66] : memref<81xf32, #tpu.memory_space<smem>>
    %827 = vector.extract_strided_slice %810 {offsets = [1, 0], sizes = [8, 8], strides = [1, 1]} : vector<10x10xf32> to vector<8x8xf32>
    %828 = vector.broadcast %826 : f32 to vector<8x8xf32>
    %829 = arith.mulf %828, %827 : vector<8x8xf32>
    %830 = arith.addf %825, %829 : vector<8x8xf32>
    %c67 = arith.constant 67 : index
    %831 = memref.load %arg4[%c67] : memref<81xf32, #tpu.memory_space<smem>>
    %832 = vector.extract_strided_slice %810 {offsets = [1, 1], sizes = [8, 8], strides = [1, 1]} : vector<10x10xf32> to vector<8x8xf32>
    %833 = vector.broadcast %831 : f32 to vector<8x8xf32>
    %834 = arith.mulf %833, %832 : vector<8x8xf32>
    %835 = arith.addf %830, %834 : vector<8x8xf32>
    %c68 = arith.constant 68 : index
    %836 = memref.load %arg4[%c68] : memref<81xf32, #tpu.memory_space<smem>>
    %837 = vector.extract_strided_slice %810 {offsets = [1, 2], sizes = [8, 8], strides = [1, 1]} : vector<10x10xf32> to vector<8x8xf32>
    %838 = vector.broadcast %836 : f32 to vector<8x8xf32>
    %839 = arith.mulf %838, %837 : vector<8x8xf32>
    %840 = arith.addf %835, %839 : vector<8x8xf32>
    %c69 = arith.constant 69 : index
    %841 = memref.load %arg4[%c69] : memref<81xf32, #tpu.memory_space<smem>>
    %842 = vector.extract_strided_slice %810 {offsets = [2, 0], sizes = [8, 8], strides = [1, 1]} : vector<10x10xf32> to vector<8x8xf32>
    %843 = vector.broadcast %841 : f32 to vector<8x8xf32>
    %844 = arith.mulf %843, %842 : vector<8x8xf32>
    %845 = arith.addf %840, %844 : vector<8x8xf32>
    %c70 = arith.constant 70 : index
    %846 = memref.load %arg4[%c70] : memref<81xf32, #tpu.memory_space<smem>>
    %847 = vector.extract_strided_slice %810 {offsets = [2, 1], sizes = [8, 8], strides = [1, 1]} : vector<10x10xf32> to vector<8x8xf32>
    %848 = vector.broadcast %846 : f32 to vector<8x8xf32>
    %849 = arith.mulf %848, %847 : vector<8x8xf32>
    %850 = arith.addf %845, %849 : vector<8x8xf32>
    %c71 = arith.constant 71 : index
    %851 = memref.load %arg4[%c71] : memref<81xf32, #tpu.memory_space<smem>>
    %852 = vector.extract_strided_slice %810 {offsets = [2, 2], sizes = [8, 8], strides = [1, 1]} : vector<10x10xf32> to vector<8x8xf32>
    %853 = vector.broadcast %851 : f32 to vector<8x8xf32>
    %854 = arith.mulf %853, %852 : vector<8x8xf32>
    %855 = arith.addf %850, %854 : vector<8x8xf32>
    %c2_364 = arith.constant 2 : index
    %c0_365 = arith.constant 0 : index
    %c0_366 = arith.constant 0 : index
    %856 = vector.load %arg10[%c2_364, %c0_365, %c0_366] : memref<3x10x10xf32, #tpu.memory_space<vmem>>, vector<1x10x10xf32>
    %857 = vector.shape_cast %856 : vector<1x10x10xf32> to vector<10x10xf32>
    %c72 = arith.constant 72 : index
    %858 = memref.load %arg4[%c72] : memref<81xf32, #tpu.memory_space<smem>>
    %859 = vector.extract_strided_slice %857 {offsets = [0, 0], sizes = [8, 8], strides = [1, 1]} : vector<10x10xf32> to vector<8x8xf32>
    %860 = vector.broadcast %858 : f32 to vector<8x8xf32>
    %861 = arith.mulf %860, %859 : vector<8x8xf32>
    %862 = arith.addf %855, %861 : vector<8x8xf32>
    %c73 = arith.constant 73 : index
    %863 = memref.load %arg4[%c73] : memref<81xf32, #tpu.memory_space<smem>>
    %864 = vector.extract_strided_slice %857 {offsets = [0, 1], sizes = [8, 8], strides = [1, 1]} : vector<10x10xf32> to vector<8x8xf32>
    %865 = vector.broadcast %863 : f32 to vector<8x8xf32>
    %866 = arith.mulf %865, %864 : vector<8x8xf32>
    %867 = arith.addf %862, %866 : vector<8x8xf32>
    %c74 = arith.constant 74 : index
    %868 = memref.load %arg4[%c74] : memref<81xf32, #tpu.memory_space<smem>>
    %869 = vector.extract_strided_slice %857 {offsets = [0, 2], sizes = [8, 8], strides = [1, 1]} : vector<10x10xf32> to vector<8x8xf32>
    %870 = vector.broadcast %868 : f32 to vector<8x8xf32>
    %871 = arith.mulf %870, %869 : vector<8x8xf32>
    %872 = arith.addf %867, %871 : vector<8x8xf32>
    %c75 = arith.constant 75 : index
    %873 = memref.load %arg4[%c75] : memref<81xf32, #tpu.memory_space<smem>>
    %874 = vector.extract_strided_slice %857 {offsets = [1, 0], sizes = [8, 8], strides = [1, 1]} : vector<10x10xf32> to vector<8x8xf32>
    %875 = vector.broadcast %873 : f32 to vector<8x8xf32>
    %876 = arith.mulf %875, %874 : vector<8x8xf32>
    %877 = arith.addf %872, %876 : vector<8x8xf32>
    %c76 = arith.constant 76 : index
    %878 = memref.load %arg4[%c76] : memref<81xf32, #tpu.memory_space<smem>>
    %879 = vector.extract_strided_slice %857 {offsets = [1, 1], sizes = [8, 8], strides = [1, 1]} : vector<10x10xf32> to vector<8x8xf32>
    %880 = vector.broadcast %878 : f32 to vector<8x8xf32>
    %881 = arith.mulf %880, %879 : vector<8x8xf32>
    %882 = arith.addf %877, %881 : vector<8x8xf32>
    %c77 = arith.constant 77 : index
    %883 = memref.load %arg4[%c77] : memref<81xf32, #tpu.memory_space<smem>>
    %884 = vector.extract_strided_slice %857 {offsets = [1, 2], sizes = [8, 8], strides = [1, 1]} : vector<10x10xf32> to vector<8x8xf32>
    %885 = vector.broadcast %883 : f32 to vector<8x8xf32>
    %886 = arith.mulf %885, %884 : vector<8x8xf32>
    %887 = arith.addf %882, %886 : vector<8x8xf32>
    %c78 = arith.constant 78 : index
    %888 = memref.load %arg4[%c78] : memref<81xf32, #tpu.memory_space<smem>>
    %889 = vector.extract_strided_slice %857 {offsets = [2, 0], sizes = [8, 8], strides = [1, 1]} : vector<10x10xf32> to vector<8x8xf32>
    %890 = vector.broadcast %888 : f32 to vector<8x8xf32>
    %891 = arith.mulf %890, %889 : vector<8x8xf32>
    %892 = arith.addf %887, %891 : vector<8x8xf32>
    %c79 = arith.constant 79 : index
    %893 = memref.load %arg4[%c79] : memref<81xf32, #tpu.memory_space<smem>>
    %894 = vector.extract_strided_slice %857 {offsets = [2, 1], sizes = [8, 8], strides = [1, 1]} : vector<10x10xf32> to vector<8x8xf32>
    %895 = vector.broadcast %893 : f32 to vector<8x8xf32>
    %896 = arith.mulf %895, %894 : vector<8x8xf32>
    %897 = arith.addf %892, %896 : vector<8x8xf32>
    %c80 = arith.constant 80 : index
    %898 = memref.load %arg4[%c80] : memref<81xf32, #tpu.memory_space<smem>>
    %899 = vector.extract_strided_slice %857 {offsets = [2, 2], sizes = [8, 8], strides = [1, 1]} : vector<10x10xf32> to vector<8x8xf32>
    %900 = vector.broadcast %898 : f32 to vector<8x8xf32>
    %901 = arith.mulf %900, %899 : vector<8x8xf32>
    %902 = arith.addf %897, %901 : vector<8x8xf32>
    %c2_367 = arith.constant 2 : index
    %903 = memref.load %arg5[%c2_367] : memref<3xf32, #tpu.memory_space<smem>>
    %904 = vector.broadcast %903 : f32 to vector<8x8xf32>
    %905 = arith.addf %902, %904 : vector<8x8xf32>
    %cst_368 = arith.constant 0.000000e+00 : f32
    %906 = vector.broadcast %cst_368 : f32 to vector<8x8xf32>
    %907 = arith.maximumf %905, %906 : vector<8x8xf32>
    %908 = vector.extract_strided_slice %907 {offsets = [0, 0], sizes = [1, 8], strides = [1, 1]} : vector<8x8xf32> to vector<1x8xf32>
    %909 = vector.extract_strided_slice %907 {offsets = [1, 0], sizes = [1, 8], strides = [1, 1]} : vector<8x8xf32> to vector<1x8xf32>
    %910 = arith.maximumf %908, %909 : vector<1x8xf32>
    %c0_369 = arith.constant 0 : index
    %c0_370 = arith.constant 0 : index
    %911 = vector.load %arg11[%c0_369, %c0_370] : memref<8x16xf32, #tpu.memory_space<vmem>>, vector<1x8xf32>
    tpu.vector_store %arg11[%c0_369, %c0_370], %910 {strides = array<i32>} : memref<8x16xf32, #tpu.memory_space<vmem>>, vector<1x8xf32>,
    %912 = vector.extract_strided_slice %907 {offsets = [2, 0], sizes = [1, 8], strides = [1, 1]} : vector<8x8xf32> to vector<1x8xf32>
    %913 = vector.extract_strided_slice %907 {offsets = [3, 0], sizes = [1, 8], strides = [1, 1]} : vector<8x8xf32> to vector<1x8xf32>
    %914 = arith.maximumf %912, %913 : vector<1x8xf32>
    %c1_371 = arith.constant 1 : index
    %c0_372 = arith.constant 0 : index
    %915 = vector.load %arg11[%c1_371, %c0_372] : memref<8x16xf32, #tpu.memory_space<vmem>>, vector<1x8xf32>
    tpu.vector_store %arg11[%c1_371, %c0_372], %914 {strides = array<i32>} : memref<8x16xf32, #tpu.memory_space<vmem>>, vector<1x8xf32>,
    %916 = vector.extract_strided_slice %907 {offsets = [4, 0], sizes = [1, 8], strides = [1, 1]} : vector<8x8xf32> to vector<1x8xf32>
    %917 = vector.extract_strided_slice %907 {offsets = [5, 0], sizes = [1, 8], strides = [1, 1]} : vector<8x8xf32> to vector<1x8xf32>
    %918 = arith.maximumf %916, %917 : vector<1x8xf32>
    %c2_373 = arith.constant 2 : index
    %c0_374 = arith.constant 0 : index
    %919 = vector.load %arg11[%c2_373, %c0_374] : memref<8x16xf32, #tpu.memory_space<vmem>>, vector<1x8xf32>
    tpu.vector_store %arg11[%c2_373, %c0_374], %918 {strides = array<i32>} : memref<8x16xf32, #tpu.memory_space<vmem>>, vector<1x8xf32>,
    %920 = vector.extract_strided_slice %907 {offsets = [6, 0], sizes = [1, 8], strides = [1, 1]} : vector<8x8xf32> to vector<1x8xf32>
    %921 = vector.extract_strided_slice %907 {offsets = [7, 0], sizes = [1, 8], strides = [1, 1]} : vector<8x8xf32> to vector<1x8xf32>
    %922 = arith.maximumf %920, %921 : vector<1x8xf32>
    %c3_375 = arith.constant 3 : index
    %c0_376 = arith.constant 0 : index
    %923 = vector.load %arg11[%c3_375, %c0_376] : memref<8x16xf32, #tpu.memory_space<vmem>>, vector<1x8xf32>
    tpu.vector_store %arg11[%c3_375, %c0_376], %922 {strides = array<i32>} : memref<8x16xf32, #tpu.memory_space<vmem>>, vector<1x8xf32>,
    %c0_377 = arith.constant 0 : index
    %c0_378 = arith.constant 0 : index
    %924 = vector.load %arg11[%c0_377, %c0_378] : memref<8x16xf32, #tpu.memory_space<vmem>>, vector<4x1xf32>
    %c0_379 = arith.constant 0 : index
    %c1_380 = arith.constant 1 : index
    %925 = vector.load %arg11[%c0_379, %c1_380] : memref<8x16xf32, #tpu.memory_space<vmem>>, vector<4x1xf32>
    %926 = arith.maximumf %924, %925 : vector<4x1xf32>
    %c0_381 = arith.constant 0 : index
    %c8_382 = arith.constant 8 : index
    %927 = vector.load %arg12[%c0_381, %c8_382] : memref<8x16xf32, #tpu.memory_space<vmem>>, vector<4x1xf32>
    tpu.vector_store %arg12[%c0_381, %c8_382], %926 {strides = array<i32>} : memref<8x16xf32, #tpu.memory_space<vmem>>, vector<4x1xf32>,
    %c0_383 = arith.constant 0 : index
    %c2_384 = arith.constant 2 : index
    %928 = vector.load %arg11[%c0_383, %c2_384] : memref<8x16xf32, #tpu.memory_space<vmem>>, vector<4x1xf32>
    %c0_385 = arith.constant 0 : index
    %c3_386 = arith.constant 3 : index
    %929 = vector.load %arg11[%c0_385, %c3_386] : memref<8x16xf32, #tpu.memory_space<vmem>>, vector<4x1xf32>
    %930 = arith.maximumf %928, %929 : vector<4x1xf32>
    %c0_387 = arith.constant 0 : index
    %c9_388 = arith.constant 9 : index
    %931 = vector.load %arg12[%c0_387, %c9_388] : memref<8x16xf32, #tpu.memory_space<vmem>>, vector<4x1xf32>
    tpu.vector_store %arg12[%c0_387, %c9_388], %930 {strides = array<i32>} : memref<8x16xf32, #tpu.memory_space<vmem>>, vector<4x1xf32>,
    %c0_389 = arith.constant 0 : index
    %c4_390 = arith.constant 4 : index
    %932 = vector.load %arg11[%c0_389, %c4_390] : memref<8x16xf32, #tpu.memory_space<vmem>>, vector<4x1xf32>
    %c0_391 = arith.constant 0 : index
    %c5_392 = arith.constant 5 : index
    %933 = vector.load %arg11[%c0_391, %c5_392] : memref<8x16xf32, #tpu.memory_space<vmem>>, vector<4x1xf32>
    %934 = arith.maximumf %932, %933 : vector<4x1xf32>
    %c0_393 = arith.constant 0 : index
    %c10_394 = arith.constant 10 : index
    %935 = vector.load %arg12[%c0_393, %c10_394] : memref<8x16xf32, #tpu.memory_space<vmem>>, vector<4x1xf32>
    tpu.vector_store %arg12[%c0_393, %c10_394], %934 {strides = array<i32>} : memref<8x16xf32, #tpu.memory_space<vmem>>, vector<4x1xf32>,
    %c0_395 = arith.constant 0 : index
    %c6_396 = arith.constant 6 : index
    %936 = vector.load %arg11[%c0_395, %c6_396] : memref<8x16xf32, #tpu.memory_space<vmem>>, vector<4x1xf32>
    %c0_397 = arith.constant 0 : index
    %c7_398 = arith.constant 7 : index
    %937 = vector.load %arg11[%c0_397, %c7_398] : memref<8x16xf32, #tpu.memory_space<vmem>>, vector<4x1xf32>
    %938 = arith.maximumf %936, %937 : vector<4x1xf32>
    %c0_399 = arith.constant 0 : index
    %c11_400 = arith.constant 11 : index
    %939 = vector.load %arg12[%c0_399, %c11_400] : memref<8x16xf32, #tpu.memory_space<vmem>>, vector<4x1xf32>
    tpu.vector_store %arg12[%c0_399, %c11_400], %938 {strides = array<i32>} : memref<8x16xf32, #tpu.memory_space<vmem>>, vector<4x1xf32>,
    %c0_401 = arith.constant 0 : index
    %c0_402 = arith.constant 0 : index
    %940 = vector.load %arg12[%c0_401, %c0_402] : memref<8x16xf32, #tpu.memory_space<vmem>>, vector<8x16xf32>
    %c0_403 = arith.constant 0 : index
    %c0_404 = arith.constant 0 : index
    %941 = vector.load %arg6[%c0_403, %c0_404] : memref<16x512xf32, #tpu.memory_space<vmem>>, vector<16x512xf32>
    %cst_405 = arith.constant dense<0.000000e+00> : vector<8x512xf32>
    %942 = tpu.matmul %940, %941, %cst_405 {dimension_numbers = #tpu.dot_dimension_numbers<[1], [0], [0], [1], [0, 0, 1, 1], [], []>} : vector<8x16xf32>, vector<16x512xf32>, vector<8x512xf32> -> vector<8x512xf32>
    %c0_406 = arith.constant 0 : index
    %c0_407 = arith.constant 0 : index
    %943 = vector.load %arg7[%c0_406, %c0_407] : memref<1x128xf32, #tpu.memory_space<vmem>>, vector<1x128xf32>
    %944 = vector.extract_strided_slice %942 {offsets = [0, 0], sizes = [1, 128], strides = [1, 1]} : vector<8x512xf32> to vector<1x128xf32>
    %945 = arith.addf %943, %944 : vector<1x128xf32>
    %946 = vector.extract_strided_slice %942 {offsets = [1, 128], sizes = [1, 128], strides = [1, 1]} : vector<8x512xf32> to vector<1x128xf32>
    %947 = arith.addf %945, %946 : vector<1x128xf32>
    %948 = vector.extract_strided_slice %942 {offsets = [2, 256], sizes = [1, 128], strides = [1, 1]} : vector<8x512xf32> to vector<1x128xf32>
    %949 = arith.addf %947, %948 : vector<1x128xf32>
    %950 = vector.extract_strided_slice %942 {offsets = [3, 384], sizes = [1, 128], strides = [1, 1]} : vector<8x512xf32> to vector<1x128xf32>
    %951 = arith.addf %949, %950 : vector<1x128xf32>
    %c0_408 = arith.constant 0 : index
    %c0_409 = arith.constant 0 : index
    %c0_410 = arith.constant 0 : index
    %952 = vector.load %arg8[%c0_408, %c0_409, %c0_410] : memref<1x1x128xf32, #tpu.memory_space<vmem>>, vector<1x1x128xf32>
    %953 = vector.shape_cast %952 : vector<1x1x128xf32> to vector<1x128xf32>
    %954 = vector.shape_cast %951 : vector<1x128xf32> to vector<1x1x128xf32>
    tpu.vector_store %arg8[%c0_408, %c0_409, %c0_410], %954 {strides = array<i32>} : memref<1x1x128xf32, #tpu.memory_space<vmem>>, vector<1x1x128xf32>,
    return
  }
  func.func @transform_0(%arg0: i32) -> (i32, i32, i32, i32) {
    %c0_i32 = arith.constant 0 : i32
    %c0_i32_0 = arith.constant 0 : i32
    %c0_i32_1 = arith.constant 0 : i32
    %c0_i32_2 = arith.constant 0 : i32
    return %arg0, %c0_i32, %c0_i32_0, %c0_i32_1 : i32, i32, i32, i32
  }
  func.func @transform_1(%arg0: i32) -> i32 {
    %c0_i32 = arith.constant 0 : i32
    %c0_i32_0 = arith.constant 0 : i32
    return %c0_i32 : i32
  }
  func.func @transform_2(%arg0: i32) -> i32 {
    %c0_i32 = arith.constant 0 : i32
    %c0_i32_0 = arith.constant 0 : i32
    return %c0_i32 : i32
  }
  func.func @transform_3(%arg0: i32) -> i32 {
    %c0_i32 = arith.constant 0 : i32
    %c0_i32_0 = arith.constant 0 : i32
    return %c0_i32 : i32
  }
  func.func @transform_4(%arg0: i32) -> i32 {
    %c0_i32 = arith.constant 0 : i32
    %c0_i32_0 = arith.constant 0 : i32
    return %c0_i32 : i32
  }
  func.func @transform_5(%arg0: i32) -> (i32, i32) {
    %c0_i32 = arith.constant 0 : i32
    %c0_i32_0 = arith.constant 0 : i32
    %c0_i32_1 = arith.constant 0 : i32
    return %c0_i32, %c0_i32_0 : i32, i32
  }
  func.func @transform_6(%arg0: i32) -> (i32, i32) {
    %c0_i32 = arith.constant 0 : i32
    %c0_i32_0 = arith.constant 0 : i32
    %c0_i32_1 = arith.constant 0 : i32
    return %c0_i32, %c0_i32_0 : i32, i32
  }
  func.func @transform_7(%arg0: i32) -> (i32, i32, i32) {
    %c0_i32 = arith.constant 0 : i32
    %c0_i32_0 = arith.constant 0 : i32
    %c0_i32_1 = arith.constant 0 : i32
    return %arg0, %c0_i32, %c0_i32_0 : i32, i32, i32
  }
}

</mosaic_0001>

<llo_original>
// kernel: cnn_embedder_forward.1
$region0: #{cnn_embedder_forward.1}
  #allocation0 [shape = 'u32[]', space=smem, size = 0x4, offset = 0x4, fixed_abs, tag = 'smem constant byte address 0x4 - core index']
  #allocation1 [shape = 'u32[144,128]{1,0:T(1,128)}', space=vmem, size = 0x12000, scoped, tag = 'internal scratch']
  #allocation2 [shape = 'f32[18,18]{1,0:T(8,128)}', space=vmem, size = 0x3000, scoped, tag = 'scratch operand']
  #allocation3 [shape = 'f32[3,10,10]{2,1,0:T(8,128)}', space=vmem, size = 0x6000, scoped, tag = 'scratch operand']
  #allocation4 [shape = 'f32[8,16]{1,0:T(8,128)}', space=vmem, size = 0x1000, scoped, tag = 'scratch operand']
  #allocation5 [shape = 'f32[8,16]{1,0:T(8,128)}', space=vmem, size = 0x1000, scoped, tag = 'scratch operand']
  %s0 = inlined_call_operand.vmem [shape: f32[2,1,16,16], index: 0, kind: input, shape index: {}]
  %s1 = inlined_call_operand.vmem [shape: f32[27], index: 1, kind: input, shape index: {}]
  %s2 = inlined_call_operand.vmem [shape: f32[3], index: 2, kind: input, shape index: {}]
  %s3 = inlined_call_operand.vmem [shape: f32[81], index: 3, kind: input, shape index: {}]
  %s4 = inlined_call_operand.vmem [shape: f32[3], index: 4, kind: input, shape index: {}]
  %s5 = inlined_call_operand.vmem [shape: f32[16,512], index: 5, kind: input, shape index: {}]
  %s6 = inlined_call_operand.vmem [shape: f32[1,128], index: 6, kind: input, shape index: {}]
  %s7 = inlined_call_operand.hbm [shape: f32[2,1,128], index: 7, kind: output, shape index: {}]
  %s8 = sld [smem:[#allocation0]]
  $region77: #{cnn_embedder_forward.1} parent=0
    _
  %s10 = ssub.s32 1, %s8
  %s11 = scalar_select 0, %s10, %s8
  $region1: #{cnn_embedder_forward.1} parent=0
    #allocation6 [shape = 'u8[512]{0}', space=smem, size = 0x200, scoped, tag = 'input window, operand 1, single buffered']
    #allocation7 [shape = 's32[2]{0}', space=sflag, size = 0x8, scoped, tag = 'scoped memory for cnn_embedder_forward.1']
    #allocation8 [shape = 's32[2]{0}', space=sflag, size = 0x8, scoped, tag = 'scoped memory for cnn_embedder_forward.1']
    #allocation9 [shape = 'u8[512]{0}', space=smem, size = 0x200, scoped, tag = 'input window, operand 2, single buffered']
    #allocation10 [shape = 's32[1]{0}', space=sflag, size = 0x4, scoped, tag = 'scoped memory for cnn_embedder_forward.1']
    #allocation11 [shape = 'u8[512]{0}', space=smem, size = 0x200, scoped, tag = 'input window, operand 3, single buffered']
    #allocation12 [shape = 'u8[512]{0}', space=smem, size = 0x200, scoped, tag = 'input window, operand 4, single buffered']
    #allocation13 [shape = 's32[1]{0}', space=sflag, size = 0x4, scoped, tag = 'scoped memory for cnn_embedder_forward.1']
    #allocation14 [shape = 'u8[1024]{0}', space=vmem, size = 0x400, scoped, tag = 'output window, operand 0']
    %12 = vsyncpa [#allocation8], 0
    %13 = vsyncpa [#allocation10], 0
    %14 = vsyncpa [#allocation13], 0
    %15 = vsyncpa [#allocation7], 0
    %s16 = scalar_lea.sflag [#allocation7], 1
    %17 = vsyncpa %s16, 0
    loop: start=0, step=1, limit=4
    $region2: #{cnn_embedder_forward.1} parent=1 // loop_pre_header
      _
    $region3: #{cnn_embedder_forward.1} parent=1 // loop_header
      %s19 = sphi 0, %s23
      %p20 = scmp.ge.s32.totalorder %s19, 4
      %s29 = sphi 0, %s31
      %s32 = sphi 0, %s29
      %s33 = sphi 0, %s32
      %s49 = sphi 0, %s33
      %s53 = sphi 0, %s53
      %s55 = sphi 0, %s53
      %s56 = sphi 0, %s55
      %s70 = sphi 0, %s56
      %s74 = sphi 0, %s74
      %s76 = sphi 0, %s74
      %s77 = sphi 0, %s76
      %s91 = sphi 0, %s77
      %s95 = sphi 0, %s95
      %s97 = sphi 0, %s95
      %s98 = sphi 0, %s97
      %s112 = sphi 0, %s98
      %s116 = sphi 0, %s116
      %s118 = sphi 0, %s116
      %s119 = sphi 0, %s118
      %s133 = sphi 0, %s119
      %s137 = sphi 0, %s137
      %s139 = sphi 0, %s137
      %s140 = sphi 0, %s139
      %s154 = sphi 0, %s140
      %s158 = sphi 0, %s158
      %s160 = sphi 0, %s158
      %s161 = sphi 0, %s160
      %s175 = sphi 0, %s161
      %s181 = sphi 0, %s183
      %s184 = sphi 0, %s181
      %s185 = sphi 0, %s184
      %s201 = sphi 0, %s185
    $region4: #{cnn_embedder_forward.1} parent=1 // loop_header_branch
      %22 = sbr.rel (%p20) target = $region8
    $region5: #{cnn_embedder_forward.1} parent=1 // loop_body
      %s24 = ssub.s32 %s19, 1
      %s25 = ssub.s32 %s19, 2
      %s26 = sadd.s32 %s19, 1
      %s27 = ssub.s32 %s19, %s26
      %p28 = scmp.eq.s32.totalorder %s27, 0
      %s30 = sadd.s32 %s29, 1
      %s31 = scalar_select %p28, %s29, %s30
      %p34 = pneg %p28
      %p35 = scmp.eq.s32.totalorder %s19, 1
      %p36 = por %p34, %p35
      %p37 = scmp.ne.s32.totalorder %s29, %s32
      %p38 = scmp.eq.s32.totalorder %s19, 0
      %p39 = por %p37, %p38
      %p40 = scmp.ne.s32.totalorder %s29, %s32
      %p41 = scmp.eq.s32.totalorder %s24, 1
      %p42 = por %p40, %p41
      %p43 = scmp.ne.s32.totalorder %s32, %s33
      %p44 = scmp.eq.s32.totalorder %s24, 0
      %p45 = por %p43, %p44
      %p46 = scmp.ne.s32.totalorder %s32, %s33
      %p47 = scmp.eq.s32.totalorder %s25, 1
      %p48 = por %p46, %p47
      %p50 = scmp.ne.s32.totalorder %s33, %s49
      %p51 = scmp.eq.s32.totalorder %s25, 0
      %p52 = por %p50, %p51
      %s54 = sadd.s32 %s53, 1
      %p57 = scmp.eq.s32.totalorder %s19, 1
      %p58 = scmp.ne.s32.totalorder %s53, %s55
      %p59 = scmp.eq.s32.totalorder %s19, 0
      %p60 = por %p58, %p59
      %p61 = scmp.ne.s32.totalorder %s53, %s55
      %p62 = scmp.eq.s32.totalorder %s24, 1
      %p63 = por %p61, %p62
      %p64 = scmp.ne.s32.totalorder %s55, %s56
      %p65 = scmp.eq.s32.totalorder %s24, 0
      %p66 = por %p64, %p65
      %p67 = scmp.ne.s32.totalorder %s55, %s56
      %p68 = scmp.eq.s32.totalorder %s25, 1
      %p69 = por %p67, %p68
      %p71 = scmp.ne.s32.totalorder %s56, %s70
      %p72 = scmp.eq.s32.totalorder %s25, 0
      %p73 = por %p71, %p72
      %s75 = sadd.s32 %s74, 1
      %p78 = scmp.eq.s32.totalorder %s19, 1
      %p79 = scmp.ne.s32.totalorder %s74, %s76
      %p80 = scmp.eq.s32.totalorder %s19, 0
      %p81 = por %p79, %p80
      %p82 = scmp.ne.s32.totalorder %s74, %s76
      %p83 = scmp.eq.s32.totalorder %s24, 1
      %p84 = por %p82, %p83
      %p85 = scmp.ne.s32.totalorder %s76, %s77
      %p86 = scmp.eq.s32.totalorder %s24, 0
      %p87 = por %p85, %p86
      %p88 = scmp.ne.s32.totalorder %s76, %s77
      %p89 = scmp.eq.s32.totalorder %s25, 1
      %p90 = por %p88, %p89
      %p92 = scmp.ne.s32.totalorder %s77, %s91
      %p93 = scmp.eq.s32.totalorder %s25, 0
      %p94 = por %p92, %p93
      %s96 = sadd.s32 %s95, 1
      %p99 = scmp.eq.s32.totalorder %s19, 1
      %p100 = scmp.ne.s32.totalorder %s95, %s97
      %p101 = scmp.eq.s32.totalorder %s19, 0
      %p102 = por %p100, %p101
      %p103 = scmp.ne.s32.totalorder %s95, %s97
      %p104 = scmp.eq.s32.totalorder %s24, 1
      %p105 = por %p103, %p104
      %p106 = scmp.ne.s32.totalorder %s97, %s98
      %p107 = scmp.eq.s32.totalorder %s24, 0
      %p108 = por %p106, %p107
      %p109 = scmp.ne.s32.totalorder %s97, %s98
      %p110 = scmp.eq.s32.totalorder %s25, 1
      %p111 = por %p109, %p110
      %p113 = scmp.ne.s32.totalorder %s98, %s112
      %p114 = scmp.eq.s32.totalorder %s25, 0
      %p115 = por %p113, %p114
      %s117 = sadd.s32 %s116, 1
      %p120 = scmp.eq.s32.totalorder %s19, 1
      %p121 = scmp.ne.s32.totalorder %s116, %s118
      %p122 = scmp.eq.s32.totalorder %s19, 0
      %p123 = por %p121, %p122
      %p124 = scmp.ne.s32.totalorder %s116, %s118
      %p125 = scmp.eq.s32.totalorder %s24, 1
      %p126 = por %p124, %p125
      %p127 = scmp.ne.s32.totalorder %s118, %s119
      %p128 = scmp.eq.s32.totalorder %s24, 0
      %p129 = por %p127, %p128
      %p130 = scmp.ne.s32.totalorder %s118, %s119
      %p131 = scmp.eq.s32.totalorder %s25, 1
      %p132 = por %p130, %p131
      %p134 = scmp.ne.s32.totalorder %s119, %s133
      %p135 = scmp.eq.s32.totalorder %s25, 0
      %p136 = por %p134, %p135
      %s138 = sadd.s32 %s137, 1
      %p141 = scmp.eq.s32.totalorder %s19, 1
      %p142 = scmp.ne.s32.totalorder %s137, %s139
      %p143 = scmp.eq.s32.totalorder %s19, 0
      %p144 = por %p142, %p143
      %p145 = scmp.ne.s32.totalorder %s137, %s139
      %p146 = scmp.eq.s32.totalorder %s24, 1
      %p147 = por %p145, %p146
      %p148 = scmp.ne.s32.totalorder %s139, %s140
      %p149 = scmp.eq.s32.totalorder %s24, 0
      %p150 = por %p148, %p149
      %p151 = scmp.ne.s32.totalorder %s139, %s140
      %p152 = scmp.eq.s32.totalorder %s25, 1
      %p153 = por %p151, %p152
      %p155 = scmp.ne.s32.totalorder %s140, %s154
      %p156 = scmp.eq.s32.totalorder %s25, 0
      %p157 = por %p155, %p156
      %s159 = sadd.s32 %s158, 1
      %p162 = scmp.eq.s32.totalorder %s19, 1
      %p163 = scmp.ne.s32.totalorder %s158, %s160
      %p164 = scmp.eq.s32.totalorder %s19, 0
      %p165 = por %p163, %p164
      %p166 = scmp.ne.s32.totalorder %s158, %s160
      %p167 = scmp.eq.s32.totalorder %s24, 1
      %p168 = por %p166, %p167
      %p169 = scmp.ne.s32.totalorder %s160, %s161
      %p170 = scmp.eq.s32.totalorder %s24, 0
      %p171 = por %p169, %p170
      %p172 = scmp.ne.s32.totalorder %s160, %s161
      %p173 = scmp.eq.s32.totalorder %s25, 1
      %p174 = por %p172, %p173
      %p176 = scmp.ne.s32.totalorder %s161, %s175
      %p177 = scmp.eq.s32.totalorder %s25, 0
      %p178 = por %p176, %p177
      %s179 = ssub.s32 %s19, %s26
      %p180 = scmp.eq.s32.totalorder %s179, 0
      %s182 = sadd.s32 %s181, 1
      %s183 = scalar_select %p180, %s181, %s182
      %p186 = pneg %p180
      %p187 = scmp.eq.s32.totalorder %s19, 1
      %p188 = por %p186, %p187
      %p189 = scmp.ne.s32.totalorder %s181, %s184
      %p190 = scmp.eq.s32.totalorder %s19, 0
      %p191 = por %p189, %p190
      %p192 = scmp.ne.s32.totalorder %s181, %s184
      %p193 = scmp.eq.s32.totalorder %s24, 1
      %p194 = por %p192, %p193
      %p195 = scmp.ne.s32.totalorder %s184, %s185
      %p196 = scmp.eq.s32.totalorder %s24, 0
      %p197 = por %p195, %p196
      %p198 = scmp.ne.s32.totalorder %s184, %s185
      %p199 = scmp.eq.s32.totalorder %s25, 1
      %p200 = por %p198, %p199
      %p202 = scmp.ne.s32.totalorder %s185, %s201
      %p203 = scmp.eq.s32.totalorder %s25, 0
      %p204 = por %p202, %p203
      %p205 = scmp.le.s32.totalorder 1, %s19
      %p206 = scmp.lt.s32.totalorder %s19, 3
      %p207 = pnand %p205, %p206
      %p208 = pneg %p207
      // Predicated region
      $region9: #{cnn_embedder_forward.1} parent=5 // pred_check
        _
      $region10: #{cnn_embedder_forward.1} parent=5 // pred_check_branch
        %210 = sbr.rel (%p207) target = $region12
      $region11: #{cnn_embedder_forward.1} parent=5 // pred_region
        %s211 = ssub.s32 %s19, 1
        // Predicated region
        $region13: #{cnn_embedder_forward.1} parent=11 // pred_check
          %p212 = pneg %p66
        $region14: #{cnn_embedder_forward.1} parent=11 // pred_check_branch
          %214 = sbr.rel (%p212) target = $region16
        $region15: #{cnn_embedder_forward.1} parent=11 // pred_region
          %s216 = ssub.s32 16, 16
          %217 = vsyncadd [#allocation8], %s216
          %s219 = sshll.u32 %s1, 4
          %s220 = int_to_ptr.vmem [resolvable:$true] %s219
          %222 = dma.vmem_to_smem %s220, 16, [#allocation6], [#allocation8]
        $region16: #{cnn_embedder_forward.1} parent=11 // pred_fallthru
          _
        // Predicated region
        $region17: #{cnn_embedder_forward.1} parent=11 // pred_check
          %p223 = pneg %p87
        $region18: #{cnn_embedder_forward.1} parent=11 // pred_check_branch
          %225 = sbr.rel (%p223) target = $region20
        $region19: #{cnn_embedder_forward.1} parent=11 // pred_region
          %s227 = ssub.s32 16, 16
          %228 = vsyncadd [#allocation10], %s227
          %s230 = sshll.u32 %s2, 4
          %s231 = int_to_ptr.vmem [resolvable:$true] %s230
          %233 = dma.vmem_to_smem %s231, 16, [#allocation9], [#allocation10]
        $region20: #{cnn_embedder_forward.1} parent=11 // pred_fallthru
          _
        // Predicated region
        $region21: #{cnn_embedder_forward.1} parent=11 // pred_check
          %p234 = pneg %p108
        $region22: #{cnn_embedder_forward.1} parent=11 // pred_check_branch
          %236 = sbr.rel (%p234) target = $region24
        $region23: #{cnn_embedder_forward.1} parent=11 // pred_region
          %s238 = ssub.s32 16, 16
          %239 = vsyncadd [#allocation10], %s238
          %s241 = sshll.u32 %s3, 4
          %s242 = int_to_ptr.vmem [resolvable:$true] %s241
          %244 = dma.vmem_to_smem %s242, 16, [#allocation11], [#allocation10]
        $region24: #{cnn_embedder_forward.1} parent=11 // pred_fallthru
          _
        // Predicated region
        $region25: #{cnn_embedder_forward.1} parent=11 // pred_check
          %p245 = pneg %p129
        $region26: #{cnn_embedder_forward.1} parent=11 // pred_check_branch
          %247 = sbr.rel (%p245) target = $region28
        $region27: #{cnn_embedder_forward.1} parent=11 // pred_region
          %s249 = ssub.s32 16, 16
          %250 = vsyncadd [#allocation13], %s249
          %s252 = sshll.u32 %s4, 4
          %s253 = int_to_ptr.vmem [resolvable:$true] %s252
          %255 = dma.vmem_to_smem %s253, 16, [#allocation12], [#allocation13]
        $region28: #{cnn_embedder_forward.1} parent=11 // pred_fallthru
          _
        // Predicated region
        $region29: #{cnn_embedder_forward.1} parent=11 // pred_check
          %p256 = pneg %p150
        $region30: #{cnn_embedder_forward.1} parent=11 // pred_check_branch
          %258 = sbr.rel (%p256) target = $region32
        $region31: #{cnn_embedder_forward.1} parent=11 // pred_region
          _
        $region32: #{cnn_embedder_forward.1} parent=11 // pred_fallthru
          _
        // Predicated region
        $region33: #{cnn_embedder_forward.1} parent=11 // pred_check
          %p259 = pneg %p171
        $region34: #{cnn_embedder_forward.1} parent=11 // pred_check_branch
          %261 = sbr.rel (%p259) target = $region36
        $region35: #{cnn_embedder_forward.1} parent=11 // pred_region
          _
        $region36: #{cnn_embedder_forward.1} parent=11 // pred_fallthru
          _
      $region12: #{cnn_embedder_forward.1} parent=5 // pred_fallthru
        _
      %p262 = scmp.lt.s32.totalorder %s19, 2
      // Predicated region
      $region37: #{cnn_embedder_forward.1} parent=5 // pred_check
        %p263 = pneg %p262
      $region38: #{cnn_embedder_forward.1} parent=5 // pred_check_branch
        %265 = sbr.rel (%p263) target = $region40
      $region39: #{cnn_embedder_forward.1} parent=5 // pred_region
        // Predicated region
        $region41: #{cnn_embedder_forward.1} parent=39 // pred_check
          %p266 = pneg %p39
        $region42: #{cnn_embedder_forward.1} parent=39 // pred_check_branch
          %268 = sbr.rel (%p266) target = $region44
        $region43: #{cnn_embedder_forward.1} parent=39 // pred_region
          %p269 = scmp.lt.s32.totalorder %s19, 1
          %s270 = scalar_select %p269, %s19, 1
          %s271 = smul.addr %s270, 2
          %s272 = smul.addr %s271, 8
          %s273 = scalar_lea.vmem %s0, %s272
        $region44: #{cnn_embedder_forward.1} parent=39 // pred_fallthru
          _
      $region40: #{cnn_embedder_forward.1} parent=5 // pred_fallthru
        _
      %p274 = scmp.le.s32.totalorder 1, %s19
      %p275 = scmp.lt.s32.totalorder %s19, 3
      %p276 = pnand %p274, %p275
      %p277 = pneg %p276
      // Predicated region
      $region45: #{cnn_embedder_forward.1} parent=5 // pred_check
        _
      $region46: #{cnn_embedder_forward.1} parent=5 // pred_check_branch
        %279 = sbr.rel (%p276) target = $region48
      $region47: #{cnn_embedder_forward.1} parent=5 // pred_region
        %s280 = ssub.s32 %s19, 1
        // Predicated region
        $region49: #{cnn_embedder_forward.1} parent=47 // pred_check
          %p281 = pneg %p66
        $region50: #{cnn_embedder_forward.1} parent=47 // pred_check_branch
          %283 = sbr.rel (%p281) target = $region52
        $region51: #{cnn_embedder_forward.1} parent=47 // pred_region
          %284 = dma.done [#allocation8], 16
        $region52: #{cnn_embedder_forward.1} parent=47 // pred_fallthru
          _
        // Predicated region
        $region53: #{cnn_embedder_forward.1} parent=47 // pred_check
          %p285 = pneg %p87
        $region54: #{cnn_embedder_forward.1} parent=47 // pred_check_branch
          %287 = sbr.rel (%p285) target = $region56
        $region55: #{cnn_embedder_forward.1} parent=47 // pred_region
          %288 = dma.done [#allocation10], 16
        $region56: #{cnn_embedder_forward.1} parent=47 // pred_fallthru
          _
        // Predicated region
        $region57: #{cnn_embedder_forward.1} parent=47 // pred_check
          %p289 = pneg %p108
        $region58: #{cnn_embedder_forward.1} parent=47 // pred_check_branch
          %291 = sbr.rel (%p289) target = $region60
        $region59: #{cnn_embedder_forward.1} parent=47 // pred_region
          %292 = dma.done [#allocation10], 16
        $region60: #{cnn_embedder_forward.1} parent=47 // pred_fallthru
          _
        // Predicated region
        $region61: #{cnn_embedder_forward.1} parent=47 // pred_check
          %p293 = pneg %p129
        $region62: #{cnn_embedder_forward.1} parent=47 // pred_check_branch
          %295 = sbr.rel (%p293) target = $region64
        $region63: #{cnn_embedder_forward.1} parent=47 // pred_region
          %296 = dma.done [#allocation13], 16
        $region64: #{cnn_embedder_forward.1} parent=47 // pred_fallthru
          _
        %297 = sfence
        %p298 = scmp.lt.s32.totalorder %s24, 1
        %s299 = scalar_select %p298, %s24, 1
        %s300 = smul.addr %s299, 2
        %s301 = smul.addr %s300, 8
        %s302 = scalar_lea.vmem %s0, %s301
        %p303 = pneg %p45
        %p304 = pneg %p42
        %p305 = pneg %p66
        %p306 = pneg %p63
        %p307 = pneg %p87
        %p308 = pneg %p84
        %p309 = pneg %p108
        %p310 = pneg %p105
        %p311 = pneg %p129
        %p312 = pneg %p126
        %p313 = pneg %p150
        %p314 = pneg %p147
        %p315 = pneg %p171
        %p316 = pneg %p168
        %p317 = pneg %p197
        %p318 = pneg %p194
        %s319 = sand.u32 %s184, 1
        %s320 = scalar_lea.sflag [#allocation7], %s319
        %s321 = sand.u32 %s184, 1
        %s322 = scalar_lea.vmem [#allocation14], %s321
        %p323 = scmp.lt.s32.totalorder %s24, 1
        %s324 = scalar_select %p323, %s24, 1
        %s325 = smul.addr %s324, 2
        %s326 = smul.addr %s325, 8
        %s327 = scalar_lea.vmem %s0, %s326
        %vm328 = vcmask 146432
        %329 = vst.msk [vmem:[#allocation2] sm:$0xff] %vm328, 0.0
        %330 = vst.msk [vmem:[#allocation2 + $0x8] sm:$0xff] %vm328, 0.0
        %vm331 = vcmask 140288
        %332 = vst.msk [vmem:[#allocation2 + $0x10] sm:$0x3] %vm331, 0.0
        %v333 = vld [vmem:[%s327] sm:$0xff]
        %v334 = vld [vmem:[%s327 + $0x8] sm:$0xff]
        %337 = vrot.lane.b32.xlu0 %v333, 1
        %v338 = vpop.permute.xlu0 %337
        %339 = vrot.lane.b32.xlu0 %v334, 1
        %v340 = vpop.permute.xlu0 %339
        %vm343 = vcmask 138248
        %344 = vst.msk [vmem:[#allocation2 + $0x1] sm:$0xff] %vm343, %v338
        %345 = vst.msk [vmem:[#allocation2 + $0x9] sm:$0xff] %vm343, %v340
        %vm346 = vcmask 80896
        %347 = vst.msk [vmem:[#allocation3] sm:$0xff] %vm346, 0.0
        %vm348 = vcmask 74752
        %349 = vst.msk [vmem:[#allocation3 + $0x8] sm:$0x3] %vm348, 0.0
        %350 = vst.msk [vmem:[#allocation3 + $0x10] sm:$0xff] %vm346, 0.0
        %351 = vst.msk [vmem:[#allocation3 + $0x18] sm:$0x3] %vm348, 0.0
        %352 = vst.msk [vmem:[#allocation3 + $0x20] sm:$0xff] %vm346, 0.0
        %353 = vst.msk [vmem:[#allocation3 + $0x28] sm:$0x3] %vm348, 0.0
        %vm354 = vcmask 130048
        %355 = vst.msk [vmem:[#allocation5] sm:$0xff] %vm354, 0.0
        %v356 = vld [vmem:[#allocation2] sm:$0xff]
        %v357 = vld [vmem:[#allocation2 + $0x8] sm:$0xff]
        %v358 = vld [vmem:[#allocation2 + $0x10] sm:$0x3]
        %s359 = sld [smem:[#allocation6]]
        %v360 = vstv %s359
        %v361 = vmul.f32 %v360, %v356
        %v362 = vmul.f32 %v360, %v357
        %v363 = vadd.f32 %v361, 0.0
        %v364 = vadd.f32 %v362, 0.0
        %s365 = sld [smem:[#allocation6 + $0x1]]
        %v366 = vstv %s365
        %v367 = vmul.f32 %v366, %v356
        %v368 = vmul.f32 %v366, %v357
        %371 = vrot.lane.b32.xlu0 %v367, 127
        %v372 = vpop.permute.xlu0 %371
        %373 = vrot.lane.b32.xlu0 %v368, 127
        %v374 = vpop.permute.xlu0 %373
        %v377 = vadd.f32 %v363, %v372
        %v378 = vadd.f32 %v364, %v374
        %s379 = sld [smem:[#allocation6 + $0x2]]
        %v380 = vstv %s379
        %v381 = vmul.f32 %v380, %v356
        %v382 = vmul.f32 %v380, %v357
        %385 = vrot.lane.b32.xlu0 %v381, 126
        %v386 = vpop.permute.xlu0 %385
        %387 = vrot.lane.b32.xlu0 %v382, 126
        %v388 = vpop.permute.xlu0 %387
        %v391 = vadd.f32 %v377, %v386
        %v392 = vadd.f32 %v378, %v388
        %s393 = sld [smem:[#allocation6 + $0x3]]
        %v394 = vstv %s393
        %v395 = vmul.f32 %v394, %v356
        %v396 = vmul.f32 %v394, %v357
        %v397 = vmul.f32 %v394, %v358
        %vm401 = vcmask 1046528
        %v402 = vrot.slane %v395, 1
        %v403 = vrot.slane %v396, 1
        %v404 = vsel %vm401, %v402, %v403
        %v405 = vrot.slane %v397, 1
        %v406 = vsel %vm401, %v403, %v405
        %v409 = vadd.f32 %v391, %v404
        %v410 = vadd.f32 %v392, %v406
        %s411 = sld [smem:[#allocation6 + $0x4]]
        %v412 = vstv %s411
        %v413 = vmul.f32 %v412, %v356
        %v414 = vmul.f32 %v412, %v357
        %v415 = vmul.f32 %v412, %v358
        %v419 = vrot.slane %v413, 1
        %v420 = vrot.slane %v414, 1
        %v421 = vsel %vm401, %v419, %v420
        %v422 = vrot.slane %v415, 1
        %v423 = vsel %vm401, %v420, %v422
        %424 = vrot.lane.b32.xlu0 %v421, 127
        %v425 = vpop.permute.xlu0 %424
        %426 = vrot.lane.b32.xlu0 %v423, 127
        %v427 = vpop.permute.xlu0 %426
        %v430 = vadd.f32 %v409, %v425
        %v431 = vadd.f32 %v410, %v427
        %s432 = sld [smem:[#allocation6 + $0x5]]
        %v433 = vstv %s432
        %v434 = vmul.f32 %v433, %v356
        %v435 = vmul.f32 %v433, %v357
        %v436 = vmul.f32 %v433, %v358
        %v440 = vrot.slane %v434, 1
        %v441 = vrot.slane %v435, 1
        %v442 = vsel %vm401, %v440, %v441
        %v443 = vrot.slane %v436, 1
        %v444 = vsel %vm401, %v441, %v443
        %445 = vrot.lane.b32.xlu0 %v442, 126
        %v446 = vpop.permute.xlu0 %445
        %447 = vrot.lane.b32.xlu0 %v444, 126
        %v448 = vpop.permute.xlu0 %447
        %v451 = vadd.f32 %v430, %v446
        %v452 = vadd.f32 %v431, %v448
        %s453 = sld [smem:[#allocation6 + $0x6]]
        %v454 = vstv %s453
        %v455 = vmul.f32 %v454, %v356
        %v456 = vmul.f32 %v454, %v357
        %v457 = vmul.f32 %v454, %v358
        %vm461 = vcmask 1045504
        %v462 = vrot.slane %v455, 2
        %v463 = vrot.slane %v456, 2
        %v464 = vsel %vm461, %v462, %v463
        %v465 = vrot.slane %v457, 2
        %v466 = vsel %vm461, %v463, %v465
        %v469 = vadd.f32 %v451, %v464
        %v470 = vadd.f32 %v452, %v466
        %s471 = sld [smem:[#allocation6 + $0x7]]
        %v472 = vstv %s471
        %v473 = vmul.f32 %v472, %v356
        %v474 = vmul.f32 %v472, %v357
        %v475 = vmul.f32 %v472, %v358
        %v479 = vrot.slane %v473, 2
        %v480 = vrot.slane %v474, 2
        %v481 = vsel %vm461, %v479, %v480
        %v482 = vrot.slane %v475, 2
        %v483 = vsel %vm461, %v480, %v482
        %484 = vrot.lane.b32.xlu0 %v481, 127
        %v485 = vpop.permute.xlu0 %484
        %486 = vrot.lane.b32.xlu0 %v483, 127
        %v487 = vpop.permute.xlu0 %486
        %v490 = vadd.f32 %v469, %v485
        %v491 = vadd.f32 %v470, %v487
        %s492 = sld [smem:[#allocation6 + $0x8]]
        %v493 = vstv %s492
        %v494 = vmul.f32 %v493, %v356
        %v495 = vmul.f32 %v493, %v357
        %v496 = vmul.f32 %v493, %v358
        %v500 = vrot.slane %v494, 2
        %v501 = vrot.slane %v495, 2
        %v502 = vsel %vm461, %v500, %v501
        %v503 = vrot.slane %v496, 2
        %v504 = vsel %vm461, %v501, %v503
        %505 = vrot.lane.b32.xlu0 %v502, 126
        %v506 = vpop.permute.xlu0 %505
        %507 = vrot.lane.b32.xlu0 %v504, 126
        %v508 = vpop.permute.xlu0 %507
        %v511 = vadd.f32 %v490, %v506
        %v512 = vadd.f32 %v491, %v508
        %s513 = sld [smem:[#allocation9]]
        %v514 = vstv %s513
        %v515 = vadd.f32 %v511, %v514
        %v516 = vadd.f32 %v512, %v514
        %v517 = vmax.f32 %v515, 0.0
        %v518 = vmax.f32 %v516, 0.0
        %v520 = vrot.slane %v517, 1
        %v522 = vmax.f32 %v517, %v520
        %vm523 = vcmask 122880
        %524 = vst.msk [vmem:[#allocation4] sm:$0x1] %vm523, %v522
        %vm525 = vcmask 124930
        %526 = vst.msk [vmem:[#allocation4 - $0x1] sm:$0x4] %vm525, %v522
        %vm527 = vcmask 126980
        %528 = vst.msk [vmem:[#allocation4 - $0x2] sm:$0x10] %vm527, %v522
        %vm529 = vcmask 129030
        %530 = vst.msk [vmem:[#allocation4 - $0x3] sm:$0x40] %vm529, %v522
        %v532 = vrot.slane %v518, 1
        %v534 = vmax.f32 %v518, %v532
        %535 = vst.msk [vmem:[#allocation4 + $0x4] sm:$0x1] %vm523, %v534
        %536 = vst.msk [vmem:[#allocation4 + $0x3] sm:$0x4] %vm525, %v534
        %537 = vst.msk [vmem:[#allocation4 + $0x2] sm:$0x10] %vm527, %v534
        %538 = vst.msk [vmem:[#allocation4 + $0x1] sm:$0x40] %vm529, %v534
        %v539 = vld [vmem:[#allocation4] sm:$0xff]
        %541 = vrot.lane.b32.xlu0 %v539, 127
        %v542 = vpop.permute.xlu0 %541
        %v544 = vmax.f32 %v539, %v542
        %546 = vrot.lane.b32.xlu0 %v544, 1
        %v547 = vpop.permute.xlu0 %546
        %vm549 = vcmask 15368
        %550 = vst.msk [vmem:[#allocation3 + $0x1] sm:$0xff] %vm549, %v547
        %v551 = vld [vmem:[#allocation4] sm:$0xff]
        %553 = vrot.lane.b32.xlu0 %v551, 127
        %v554 = vpop.permute.xlu0 %553
        %v556 = vmax.f32 %v551, %v554
        %vm557 = vcmask 23568
        %558 = vst.msk [vmem:[#allocation3 + $0x1] sm:$0xff] %vm557, %v556
        %v559 = vld [vmem:[#allocation4] sm:$0xff]
        %561 = vrot.lane.b32.xlu0 %v559, 127
        %v562 = vpop.permute.xlu0 %561
        %v564 = vmax.f32 %v559, %v562
        %566 = vrot.lane.b32.xlu0 %v564, 127
        %v567 = vpop.permute.xlu0 %566
        %vm569 = vcmask 31768
        %570 = vst.msk [vmem:[#allocation3 + $0x1] sm:$0xff] %vm569, %v567
        %v571 = vld [vmem:[#allocation4] sm:$0xff]
        %573 = vrot.lane.b32.xlu0 %v571, 127
        %v574 = vpop.permute.xlu0 %573
        %v576 = vmax.f32 %v571, %v574
        %578 = vrot.lane.b32.xlu0 %v576, 126
        %v579 = vpop.permute.xlu0 %578
        %vm581 = vcmask 39968
        %582 = vst.msk [vmem:[#allocation3 + $0x1] sm:$0xff] %vm581, %v579
        %v583 = vld [vmem:[#allocation4] sm:$0xff]
        %585 = vrot.lane.b32.xlu0 %v583, 127
        %v586 = vpop.permute.xlu0 %585
        %v588 = vmax.f32 %v583, %v586
        %590 = vrot.lane.b32.xlu0 %v588, 125
        %v591 = vpop.permute.xlu0 %590
        %vm593 = vcmask 48168
        %594 = vst.msk [vmem:[#allocation3 + $0x1] sm:$0xff] %vm593, %v591
        %v595 = vld [vmem:[#allocation4] sm:$0xff]
        %597 = vrot.lane.b32.xlu0 %v595, 127
        %v598 = vpop.permute.xlu0 %597
        %v600 = vmax.f32 %v595, %v598
        %602 = vrot.lane.b32.xlu0 %v600, 124
        %v603 = vpop.permute.xlu0 %602
        %vm605 = vcmask 56368
        %606 = vst.msk [vmem:[#allocation3 + $0x1] sm:$0xff] %vm605, %v603
        %v607 = vld [vmem:[#allocation4] sm:$0xff]
        %609 = vrot.lane.b32.xlu0 %v607, 127
        %v610 = vpop.permute.xlu0 %609
        %v612 = vmax.f32 %v607, %v610
        %614 = vrot.lane.b32.xlu0 %v612, 123
        %v615 = vpop.permute.xlu0 %614
        %vm617 = vcmask 64568
        %618 = vst.msk [vmem:[#allocation3 + $0x1] sm:$0xff] %vm617, %v615
        %v619 = vld [vmem:[#allocation4] sm:$0xff]
        %621 = vrot.lane.b32.xlu0 %v619, 127
        %v622 = vpop.permute.xlu0 %621
        %v624 = vmax.f32 %v619, %v622
        %626 = vrot.lane.b32.xlu0 %v624, 122
        %v627 = vpop.permute.xlu0 %626
        %vm629 = vcmask 72768
        %630 = vst.msk [vmem:[#allocation3 + $0x1] sm:$0xff] %vm629, %v627
        %s631 = sld [smem:[#allocation6 + $0x9]]
        %v632 = vstv %s631
        %v633 = vmul.f32 %v632, %v356
        %v634 = vmul.f32 %v632, %v357
        %v635 = vadd.f32 %v633, 0.0
        %v636 = vadd.f32 %v634, 0.0
        %s637 = sld [smem:[#allocation6 + $0xa]]
        %v638 = vstv %s637
        %v639 = vmul.f32 %v638, %v356
        %v640 = vmul.f32 %v638, %v357
        %643 = vrot.lane.b32.xlu0 %v639, 127
        %v644 = vpop.permute.xlu0 %643
        %645 = vrot.lane.b32.xlu0 %v640, 127
        %v646 = vpop.permute.xlu0 %645
        %v649 = vadd.f32 %v635, %v644
        %v650 = vadd.f32 %v636, %v646
        %s651 = sld [smem:[#allocation6 + $0xb]]
        %v652 = vstv %s651
        %v653 = vmul.f32 %v652, %v356
        %v654 = vmul.f32 %v652, %v357
        %657 = vrot.lane.b32.xlu0 %v653, 126
        %v658 = vpop.permute.xlu0 %657
        %659 = vrot.lane.b32.xlu0 %v654, 126
        %v660 = vpop.permute.xlu0 %659
        %v663 = vadd.f32 %v649, %v658
        %v664 = vadd.f32 %v650, %v660
        %s665 = sld [smem:[#allocation6 + $0xc]]
        %v666 = vstv %s665
        %v667 = vmul.f32 %v666, %v356
        %v668 = vmul.f32 %v666, %v357
        %v669 = vmul.f32 %v666, %v358
        %v673 = vrot.slane %v667, 1
        %v674 = vrot.slane %v668, 1
        %v675 = vsel %vm401, %v673, %v674
        %v676 = vrot.slane %v669, 1
        %v677 = vsel %vm401, %v674, %v676
        %v680 = vadd.f32 %v663, %v675
        %v681 = vadd.f32 %v664, %v677
        %s682 = sld [smem:[#allocation6 + $0xd]]
        %v683 = vstv %s682
        %v684 = vmul.f32 %v683, %v356
        %v685 = vmul.f32 %v683, %v357
        %v686 = vmul.f32 %v683, %v358
        %v690 = vrot.slane %v684, 1
        %v691 = vrot.slane %v685, 1
        %v692 = vsel %vm401, %v690, %v691
        %v693 = vrot.slane %v686, 1
        %v694 = vsel %vm401, %v691, %v693
        %695 = vrot.lane.b32.xlu0 %v692, 127
        %v696 = vpop.permute.xlu0 %695
        %697 = vrot.lane.b32.xlu0 %v694, 127
        %v698 = vpop.permute.xlu0 %697
        %v701 = vadd.f32 %v680, %v696
        %v702 = vadd.f32 %v681, %v698
        %s703 = sld [smem:[#allocation6 + $0xe]]
        %v704 = vstv %s703
        %v705 = vmul.f32 %v704, %v356
        %v706 = vmul.f32 %v704, %v357
        %v707 = vmul.f32 %v704, %v358
        %v711 = vrot.slane %v705, 1
        %v712 = vrot.slane %v706, 1
        %v713 = vsel %vm401, %v711, %v712
        %v714 = vrot.slane %v707, 1
        %v715 = vsel %vm401, %v712, %v714
        %716 = vrot.lane.b32.xlu0 %v713, 126
        %v717 = vpop.permute.xlu0 %716
        %718 = vrot.lane.b32.xlu0 %v715, 126
        %v719 = vpop.permute.xlu0 %718
        %v722 = vadd.f32 %v701, %v717
        %v723 = vadd.f32 %v702, %v719
        %s724 = sld [smem:[#allocation6 + $0xf]]
        %v725 = vstv %s724
        %v726 = vmul.f32 %v725, %v356
        %v727 = vmul.f32 %v725, %v357
        %v728 = vmul.f32 %v725, %v358
        %v732 = vrot.slane %v726, 2
        %v733 = vrot.slane %v727, 2
        %v734 = vsel %vm461, %v732, %v733
        %v735 = vrot.slane %v728, 2
        %v736 = vsel %vm461, %v733, %v735
        %v739 = vadd.f32 %v722, %v734
        %v740 = vadd.f32 %v723, %v736
        %s741 = sld [smem:[#allocation6 + $0x10]]
        %v742 = vstv %s741
        %v743 = vmul.f32 %v742, %v356
        %v744 = vmul.f32 %v742, %v357
        %v745 = vmul.f32 %v742, %v358
        %v749 = vrot.slane %v743, 2
        %v750 = vrot.slane %v744, 2
        %v751 = vsel %vm461, %v749, %v750
        %v752 = vrot.slane %v745, 2
        %v753 = vsel %vm461, %v750, %v752
        %754 = vrot.lane.b32.xlu0 %v751, 127
        %v755 = vpop.permute.xlu0 %754
        %756 = vrot.lane.b32.xlu0 %v753, 127
        %v757 = vpop.permute.xlu0 %756
        %v760 = vadd.f32 %v739, %v755
        %v761 = vadd.f32 %v740, %v757
        %s762 = sld [smem:[#allocation6 + $0x11]]
        %v763 = vstv %s762
        %v764 = vmul.f32 %v763, %v356
        %v765 = vmul.f32 %v763, %v357
        %v766 = vmul.f32 %v763, %v358
        %v770 = vrot.slane %v764, 2
        %v771 = vrot.slane %v765, 2
        %v772 = vsel %vm461, %v770, %v771
        %v773 = vrot.slane %v766, 2
        %v774 = vsel %vm461, %v771, %v773
        %775 = vrot.lane.b32.xlu0 %v772, 126
        %v776 = vpop.permute.xlu0 %775
        %777 = vrot.lane.b32.xlu0 %v774, 126
        %v778 = vpop.permute.xlu0 %777
        %v781 = vadd.f32 %v760, %v776
        %v782 = vadd.f32 %v761, %v778
        %s783 = sld [smem:[#allocation9 + $0x1]]
        %v784 = vstv %s783
        %v785 = vadd.f32 %v781, %v784
        %v786 = vadd.f32 %v782, %v784
        %v787 = vmax.f32 %v785, 0.0
        %v788 = vmax.f32 %v786, 0.0
        %v790 = vrot.slane %v787, 1
        %v792 = vmax.f32 %v787, %v790
        %793 = vst.msk [vmem:[#allocation4] sm:$0x1] %vm523, %v792
        %794 = vst.msk [vmem:[#allocation4 - $0x1] sm:$0x4] %vm525, %v792
        %795 = vst.msk [vmem:[#allocation4 - $0x2] sm:$0x10] %vm527, %v792
        %796 = vst.msk [vmem:[#allocation4 - $0x3] sm:$0x40] %vm529, %v792
        %v798 = vrot.slane %v788, 1
        %v800 = vmax.f32 %v788, %v798
        %801 = vst.msk [vmem:[#allocation4 + $0x4] sm:$0x1] %vm523, %v800
        %802 = vst.msk [vmem:[#allocation4 + $0x3] sm:$0x4] %vm525, %v800
        %803 = vst.msk [vmem:[#allocation4 + $0x2] sm:$0x10] %vm527, %v800
        %804 = vst.msk [vmem:[#allocation4 + $0x1] sm:$0x40] %vm529, %v800
        %v805 = vld [vmem:[#allocation4] sm:$0xff]
        %807 = vrot.lane.b32.xlu0 %v805, 127
        %v808 = vpop.permute.xlu0 %807
        %v810 = vmax.f32 %v805, %v808
        %812 = vrot.lane.b32.xlu0 %v810, 1
        %v813 = vpop.permute.xlu0 %812
        %s815 = scalar_lea.vmem [#allocation3], 16
        %816 = vst.msk [vmem:[%s815 + $0x1] sm:$0xff] %vm549, %v813
        %v817 = vld [vmem:[#allocation4] sm:$0xff]
        %819 = vrot.lane.b32.xlu0 %v817, 127
        %v820 = vpop.permute.xlu0 %819
        %v822 = vmax.f32 %v817, %v820
        %823 = vst.msk [vmem:[%s815 + $0x1] sm:$0xff] %vm557, %v822
        %v824 = vld [vmem:[#allocation4] sm:$0xff]
        %826 = vrot.lane.b32.xlu0 %v824, 127
        %v827 = vpop.permute.xlu0 %826
        %v829 = vmax.f32 %v824, %v827
        %831 = vrot.lane.b32.xlu0 %v829, 127
        %v832 = vpop.permute.xlu0 %831
        %834 = vst.msk [vmem:[%s815 + $0x1] sm:$0xff] %vm569, %v832
        %v835 = vld [vmem:[#allocation4] sm:$0xff]
        %837 = vrot.lane.b32.xlu0 %v835, 127
        %v838 = vpop.permute.xlu0 %837
        %v840 = vmax.f32 %v835, %v838
        %842 = vrot.lane.b32.xlu0 %v840, 126
        %v843 = vpop.permute.xlu0 %842
        %845 = vst.msk [vmem:[%s815 + $0x1] sm:$0xff] %vm581, %v843
        %v846 = vld [vmem:[#allocation4] sm:$0xff]
        %848 = vrot.lane.b32.xlu0 %v846, 127
        %v849 = vpop.permute.xlu0 %848
        %v851 = vmax.f32 %v846, %v849
        %853 = vrot.lane.b32.xlu0 %v851, 125
        %v854 = vpop.permute.xlu0 %853
        %856 = vst.msk [vmem:[%s815 + $0x1] sm:$0xff] %vm593, %v854
        %v857 = vld [vmem:[#allocation4] sm:$0xff]
        %859 = vrot.lane.b32.xlu0 %v857, 127
        %v860 = vpop.permute.xlu0 %859
        %v862 = vmax.f32 %v857, %v860
        %864 = vrot.lane.b32.xlu0 %v862, 124
        %v865 = vpop.permute.xlu0 %864
        %867 = vst.msk [vmem:[%s815 + $0x1] sm:$0xff] %vm605, %v865
        %v868 = vld [vmem:[#allocation4] sm:$0xff]
        %870 = vrot.lane.b32.xlu0 %v868, 127
        %v871 = vpop.permute.xlu0 %870
        %v873 = vmax.f32 %v868, %v871
        %875 = vrot.lane.b32.xlu0 %v873, 123
        %v876 = vpop.permute.xlu0 %875
        %878 = vst.msk [vmem:[%s815 + $0x1] sm:$0xff] %vm617, %v876
        %v879 = vld [vmem:[#allocation4] sm:$0xff]
        %881 = vrot.lane.b32.xlu0 %v879, 127
        %v882 = vpop.permute.xlu0 %881
        %v884 = vmax.f32 %v879, %v882
        %886 = vrot.lane.b32.xlu0 %v884, 122
        %v887 = vpop.permute.xlu0 %886
        %889 = vst.msk [vmem:[%s815 + $0x1] sm:$0xff] %vm629, %v887
        %s890 = sld [smem:[#allocation6 + $0x12]]
        %v891 = vstv %s890
        %v892 = vmul.f32 %v891, %v356
        %v893 = vmul.f32 %v891, %v357
        %v894 = vadd.f32 %v892, 0.0
        %v895 = vadd.f32 %v893, 0.0
        %s896 = sld [smem:[#allocation6 + $0x13]]
        %v897 = vstv %s896
        %v898 = vmul.f32 %v897, %v356
        %v899 = vmul.f32 %v897, %v357
        %902 = vrot.lane.b32.xlu0 %v898, 127
        %v903 = vpop.permute.xlu0 %902
        %904 = vrot.lane.b32.xlu0 %v899, 127
        %v905 = vpop.permute.xlu0 %904
        %v908 = vadd.f32 %v894, %v903
        %v909 = vadd.f32 %v895, %v905
        %s910 = sld [smem:[#allocation6 + $0x14]]
        %v911 = vstv %s910
        %v912 = vmul.f32 %v911, %v356
        %v913 = vmul.f32 %v911, %v357
        %916 = vrot.lane.b32.xlu0 %v912, 126
        %v917 = vpop.permute.xlu0 %916
        %918 = vrot.lane.b32.xlu0 %v913, 126
        %v919 = vpop.permute.xlu0 %918
        %v922 = vadd.f32 %v908, %v917
        %v923 = vadd.f32 %v909, %v919
        %s924 = sld [smem:[#allocation6 + $0x15]]
        %v925 = vstv %s924
        %v926 = vmul.f32 %v925, %v356
        %v927 = vmul.f32 %v925, %v357
        %v928 = vmul.f32 %v925, %v358
        %v932 = vrot.slane %v926, 1
        %v933 = vrot.slane %v927, 1
        %v934 = vsel %vm401, %v932, %v933
        %v935 = vrot.slane %v928, 1
        %v936 = vsel %vm401, %v933, %v935
        %v939 = vadd.f32 %v922, %v934
        %v940 = vadd.f32 %v923, %v936
        %s941 = sld [smem:[#allocation6 + $0x16]]
        %v942 = vstv %s941
        %v943 = vmul.f32 %v942, %v356
        %v944 = vmul.f32 %v942, %v357
        %v945 = vmul.f32 %v942, %v358
        %v949 = vrot.slane %v943, 1
        %v950 = vrot.slane %v944, 1
        %v951 = vsel %vm401, %v949, %v950
        %v952 = vrot.slane %v945, 1
        %v953 = vsel %vm401, %v950, %v952
        %954 = vrot.lane.b32.xlu0 %v951, 127
        %v955 = vpop.permute.xlu0 %954
        %956 = vrot.lane.b32.xlu0 %v953, 127
        %v957 = vpop.permute.xlu0 %956
        %v960 = vadd.f32 %v939, %v955
        %v961 = vadd.f32 %v940, %v957
        %s962 = sld [smem:[#allocation6 + $0x17]]
        %v963 = vstv %s962
        %v964 = vmul.f32 %v963, %v356
        %v965 = vmul.f32 %v963, %v357
        %v966 = vmul.f32 %v963, %v358
        %v970 = vrot.slane %v964, 1
        %v971 = vrot.slane %v965, 1
        %v972 = vsel %vm401, %v970, %v971
        %v973 = vrot.slane %v966, 1
        %v974 = vsel %vm401, %v971, %v973
        %975 = vrot.lane.b32.xlu0 %v972, 126
        %v976 = vpop.permute.xlu0 %975
        %977 = vrot.lane.b32.xlu0 %v974, 126
        %v978 = vpop.permute.xlu0 %977
        %v981 = vadd.f32 %v960, %v976
        %v982 = vadd.f32 %v961, %v978
        %s983 = sld [smem:[#allocation6 + $0x18]]
        %v984 = vstv %s983
        %v985 = vmul.f32 %v984, %v356
        %v986 = vmul.f32 %v984, %v357
        %v987 = vmul.f32 %v984, %v358
        %v991 = vrot.slane %v985, 2
        %v992 = vrot.slane %v986, 2
        %v993 = vsel %vm461, %v991, %v992
        %v994 = vrot.slane %v987, 2
        %v995 = vsel %vm461, %v992, %v994
        %v998 = vadd.f32 %v981, %v993
        %v999 = vadd.f32 %v982, %v995
        %s1000 = sld [smem:[#allocation6 + $0x19]]
        %v1001 = vstv %s1000
        %v1002 = vmul.f32 %v1001, %v356
        %v1003 = vmul.f32 %v1001, %v357
        %v1004 = vmul.f32 %v1001, %v358
        %v1008 = vrot.slane %v1002, 2
        %v1009 = vrot.slane %v1003, 2
        %v1010 = vsel %vm461, %v1008, %v1009
        %v1011 = vrot.slane %v1004, 2
        %v1012 = vsel %vm461, %v1009, %v1011
        %1013 = vrot.lane.b32.xlu0 %v1010, 127
        %v1014 = vpop.permute.xlu0 %1013
        %1015 = vrot.lane.b32.xlu0 %v1012, 127
        %v1016 = vpop.permute.xlu0 %1015
        %v1019 = vadd.f32 %v998, %v1014
        %v1020 = vadd.f32 %v999, %v1016
        %s1021 = sld [smem:[#allocation6 + $0x1a]]
        %v1022 = vstv %s1021
        %v1023 = vmul.f32 %v1022, %v356
        %v1024 = vmul.f32 %v1022, %v357
        %v1025 = vmul.f32 %v1022, %v358
        %v1029 = vrot.slane %v1023, 2
        %v1030 = vrot.slane %v1024, 2
        %v1031 = vsel %vm461, %v1029, %v1030
        %v1032 = vrot.slane %v1025, 2
        %v1033 = vsel %vm461, %v1030, %v1032
        %1034 = vrot.lane.b32.xlu0 %v1031, 126
        %v1035 = vpop.permute.xlu0 %1034
        %1036 = vrot.lane.b32.xlu0 %v1033, 126
        %v1037 = vpop.permute.xlu0 %1036
        %v1040 = vadd.f32 %v1019, %v1035
        %v1041 = vadd.f32 %v1020, %v1037
        %s1042 = sld [smem:[#allocation9 + $0x2]]
        %v1043 = vstv %s1042
        %v1044 = vadd.f32 %v1040, %v1043
        %v1045 = vadd.f32 %v1041, %v1043
        %v1046 = vmax.f32 %v1044, 0.0
        %v1047 = vmax.f32 %v1045, 0.0
        %v1049 = vrot.slane %v1046, 1
        %v1051 = vmax.f32 %v1046, %v1049
        %1052 = vst.msk [vmem:[#allocation4] sm:$0x1] %vm523, %v1051
        %1053 = vst.msk [vmem:[#allocation4 - $0x1] sm:$0x4] %vm525, %v1051
        %1054 = vst.msk [vmem:[#allocation4 - $0x2] sm:$0x10] %vm527, %v1051
        %1055 = vst.msk [vmem:[#allocation4 - $0x3] sm:$0x40] %vm529, %v1051
        %v1057 = vrot.slane %v1047, 1
        %v1059 = vmax.f32 %v1047, %v1057
        %1060 = vst.msk [vmem:[#allocation4 + $0x4] sm:$0x1] %vm523, %v1059
        %1061 = vst.msk [vmem:[#allocation4 + $0x3] sm:$0x4] %vm525, %v1059
        %1062 = vst.msk [vmem:[#allocation4 + $0x2] sm:$0x10] %vm527, %v1059
        %1063 = vst.msk [vmem:[#allocation4 + $0x1] sm:$0x40] %vm529, %v1059
        %v1064 = vld [vmem:[#allocation4] sm:$0xff]
        %1066 = vrot.lane.b32.xlu0 %v1064, 127
        %v1067 = vpop.permute.xlu0 %1066
        %v1069 = vmax.f32 %v1064, %v1067
        %1071 = vrot.lane.b32.xlu0 %v1069, 1
        %v1072 = vpop.permute.xlu0 %1071
        %s1074 = scalar_lea.vmem [#allocation3], 32
        %1075 = vst.msk [vmem:[%s1074 + $0x1] sm:$0xff] %vm549, %v1072
        %v1076 = vld [vmem:[#allocation4] sm:$0xff]
        %1078 = vrot.lane.b32.xlu0 %v1076, 127
        %v1079 = vpop.permute.xlu0 %1078
        %v1081 = vmax.f32 %v1076, %v1079
        %1082 = vst.msk [vmem:[%s1074 + $0x1] sm:$0xff] %vm557, %v1081
        %v1083 = vld [vmem:[#allocation4] sm:$0xff]
        %1085 = vrot.lane.b32.xlu0 %v1083, 127
        %v1086 = vpop.permute.xlu0 %1085
        %v1088 = vmax.f32 %v1083, %v1086
        %1090 = vrot.lane.b32.xlu0 %v1088, 127
        %v1091 = vpop.permute.xlu0 %1090
        %1093 = vst.msk [vmem:[%s1074 + $0x1] sm:$0xff] %vm569, %v1091
        %v1094 = vld [vmem:[#allocation4] sm:$0xff]
        %1096 = vrot.lane.b32.xlu0 %v1094, 127
        %v1097 = vpop.permute.xlu0 %1096
        %v1099 = vmax.f32 %v1094, %v1097
        %1101 = vrot.lane.b32.xlu0 %v1099, 126
        %v1102 = vpop.permute.xlu0 %1101
        %1104 = vst.msk [vmem:[%s1074 + $0x1] sm:$0xff] %vm581, %v1102
        %v1105 = vld [vmem:[#allocation4] sm:$0xff]
        %1107 = vrot.lane.b32.xlu0 %v1105, 127
        %v1108 = vpop.permute.xlu0 %1107
        %v1110 = vmax.f32 %v1105, %v1108
        %1112 = vrot.lane.b32.xlu0 %v1110, 125
        %v1113 = vpop.permute.xlu0 %1112
        %1115 = vst.msk [vmem:[%s1074 + $0x1] sm:$0xff] %vm593, %v1113
        %v1116 = vld [vmem:[#allocation4] sm:$0xff]
        %1118 = vrot.lane.b32.xlu0 %v1116, 127
        %v1119 = vpop.permute.xlu0 %1118
        %v1121 = vmax.f32 %v1116, %v1119
        %1123 = vrot.lane.b32.xlu0 %v1121, 124
        %v1124 = vpop.permute.xlu0 %1123
        %1126 = vst.msk [vmem:[%s1074 + $0x1] sm:$0xff] %vm605, %v1124
        %v1127 = vld [vmem:[#allocation4] sm:$0xff]
        %1129 = vrot.lane.b32.xlu0 %v1127, 127
        %v1130 = vpop.permute.xlu0 %1129
        %v1132 = vmax.f32 %v1127, %v1130
        %1134 = vrot.lane.b32.xlu0 %v1132, 123
        %v1135 = vpop.permute.xlu0 %1134
        %1137 = vst.msk [vmem:[%s1074 + $0x1] sm:$0xff] %vm617, %v1135
        %v1138 = vld [vmem:[#allocation4] sm:$0xff]
        %1140 = vrot.lane.b32.xlu0 %v1138, 127
        %v1141 = vpop.permute.xlu0 %1140
        %v1143 = vmax.f32 %v1138, %v1141
        %1145 = vrot.lane.b32.xlu0 %v1143, 122
        %v1146 = vpop.permute.xlu0 %1145
        %1148 = vst.msk [vmem:[%s1074 + $0x1] sm:$0xff] %vm629, %v1146
        %v1149 = vld [vmem:[#allocation3] sm:$0xff]
        %v1150 = vld [vmem:[#allocation3 + $0x8] sm:$0x3]
        %s1151 = sld [smem:[#allocation11]]
        %v1152 = vstv %s1151
        %v1153 = vmul.f32 %v1152, %v1149
        %v1154 = vadd.f32 %v1153, 0.0
        %s1155 = sld [smem:[#allocation11 + $0x1]]
        %v1156 = vstv %s1155
        %v1157 = vmul.f32 %v1156, %v1149
        %1159 = vrot.lane.b32.xlu0 %v1157, 127
        %v1160 = vpop.permute.xlu0 %1159
        %v1162 = vadd.f32 %v1154, %v1160
        %s1163 = sld [smem:[#allocation11 + $0x2]]
        %v1164 = vstv %s1163
        %v1165 = vmul.f32 %v1164, %v1149
        %1167 = vrot.lane.b32.xlu0 %v1165, 126
        %v1168 = vpop.permute.xlu0 %1167
        %v1170 = vadd.f32 %v1162, %v1168
        %s1171 = sld [smem:[#allocation11 + $0x3]]
        %v1172 = vstv %s1171
        %v1173 = vmul.f32 %v1172, %v1149
        %v1174 = vmul.f32 %v1172, %v1150
        %v1177 = vrot.slane %v1173, 1
        %v1178 = vrot.slane %v1174, 1
        %v1179 = vsel %vm401, %v1177, %v1178
        %v1181 = vadd.f32 %v1170, %v1179
        %s1182 = sld [smem:[#allocation11 + $0x4]]
        %v1183 = vstv %s1182
        %v1184 = vmul.f32 %v1183, %v1149
        %v1185 = vmul.f32 %v1183, %v1150
        %v1188 = vrot.slane %v1184, 1
        %v1189 = vrot.slane %v1185, 1
        %v1190 = vsel %vm401, %v1188, %v1189
        %1191 = vrot.lane.b32.xlu0 %v1190, 127
        %v1192 = vpop.permute.xlu0 %1191
        %v1194 = vadd.f32 %v1181, %v1192
        %s1195 = sld [smem:[#allocation11 + $0x5]]
        %v1196 = vstv %s1195
        %v1197 = vmul.f32 %v1196, %v1149
        %v1198 = vmul.f32 %v1196, %v1150
        %v1201 = vrot.slane %v1197, 1
        %v1202 = vrot.slane %v1198, 1
        %v1203 = vsel %vm401, %v1201, %v1202
        %1204 = vrot.lane.b32.xlu0 %v1203, 126
        %v1205 = vpop.permute.xlu0 %1204
        %v1207 = vadd.f32 %v1194, %v1205
        %s1208 = sld [smem:[#allocation11 + $0x6]]
        %v1209 = vstv %s1208
        %v1210 = vmul.f32 %v1209, %v1149
        %v1211 = vmul.f32 %v1209, %v1150
        %v1214 = vrot.slane %v1210, 2
        %v1215 = vrot.slane %v1211, 2
        %v1216 = vsel %vm461, %v1214, %v1215
        %v1218 = vadd.f32 %v1207, %v1216
        %s1219 = sld [smem:[#allocation11 + $0x7]]
        %v1220 = vstv %s1219
        %v1221 = vmul.f32 %v1220, %v1149
        %v1222 = vmul.f32 %v1220, %v1150
        %v1225 = vrot.slane %v1221, 2
        %v1226 = vrot.slane %v1222, 2
        %v1227 = vsel %vm461, %v1225, %v1226
        %1228 = vrot.lane.b32.xlu0 %v1227, 127
        %v1229 = vpop.permute.xlu0 %1228
        %v1231 = vadd.f32 %v1218, %v1229
        %s1232 = sld [smem:[#allocation11 + $0x8]]
        %v1233 = vstv %s1232
        %v1234 = vmul.f32 %v1233, %v1149
        %v1235 = vmul.f32 %v1233, %v1150
        %v1238 = vrot.slane %v1234, 2
        %v1239 = vrot.slane %v1235, 2
        %v1240 = vsel %vm461, %v1238, %v1239
        %1241 = vrot.lane.b32.xlu0 %v1240, 126
        %v1242 = vpop.permute.xlu0 %1241
        %v1244 = vadd.f32 %v1231, %v1242
        %v1245 = vld [vmem:[%s815] sm:$0xff]
        %v1246 = vld [vmem:[%s815 + $0x8] sm:$0x3]
        %s1247 = sld [smem:[#allocation11 + $0x9]]
        %v1248 = vstv %s1247
        %v1249 = vmul.f32 %v1248, %v1245
        %v1250 = vadd.f32 %v1244, %v1249
        %s1251 = sld [smem:[#allocation11 + $0xa]]
        %v1252 = vstv %s1251
        %v1253 = vmul.f32 %v1252, %v1245
        %1255 = vrot.lane.b32.xlu0 %v1253, 127
        %v1256 = vpop.permute.xlu0 %1255
        %v1258 = vadd.f32 %v1250, %v1256
        %s1259 = sld [smem:[#allocation11 + $0xb]]
        %v1260 = vstv %s1259
        %v1261 = vmul.f32 %v1260, %v1245
        %1263 = vrot.lane.b32.xlu0 %v1261, 126
        %v1264 = vpop.permute.xlu0 %1263
        %v1266 = vadd.f32 %v1258, %v1264
        %s1267 = sld [smem:[#allocation11 + $0xc]]
        %v1268 = vstv %s1267
        %v1269 = vmul.f32 %v1268, %v1245
        %v1270 = vmul.f32 %v1268, %v1246
        %v1273 = vrot.slane %v1269, 1
        %v1274 = vrot.slane %v1270, 1
        %v1275 = vsel %vm401, %v1273, %v1274
        %v1277 = vadd.f32 %v1266, %v1275
        %s1278 = sld [smem:[#allocation11 + $0xd]]
        %v1279 = vstv %s1278
        %v1280 = vmul.f32 %v1279, %v1245
        %v1281 = vmul.f32 %v1279, %v1246
        %v1284 = vrot.slane %v1280, 1
        %v1285 = vrot.slane %v1281, 1
        %v1286 = vsel %vm401, %v1284, %v1285
        %1287 = vrot.lane.b32.xlu0 %v1286, 127
        %v1288 = vpop.permute.xlu0 %1287
        %v1290 = vadd.f32 %v1277, %v1288
        %s1291 = sld [smem:[#allocation11 + $0xe]]
        %v1292 = vstv %s1291
        %v1293 = vmul.f32 %v1292, %v1245
        %v1294 = vmul.f32 %v1292, %v1246
        %v1297 = vrot.slane %v1293, 1
        %v1298 = vrot.slane %v1294, 1
        %v1299 = vsel %vm401, %v1297, %v1298
        %1300 = vrot.lane.b32.xlu0 %v1299, 126
        %v1301 = vpop.permute.xlu0 %1300
        %v1303 = vadd.f32 %v1290, %v1301
        %s1304 = sld [smem:[#allocation11 + $0xf]]
        %v1305 = vstv %s1304
        %v1306 = vmul.f32 %v1305, %v1245
        %v1307 = vmul.f32 %v1305, %v1246
        %v1310 = vrot.slane %v1306, 2
        %v1311 = vrot.slane %v1307, 2
        %v1312 = vsel %vm461, %v1310, %v1311
        %v1314 = vadd.f32 %v1303, %v1312
        %s1315 = sld [smem:[#allocation11 + $0x10]]
        %v1316 = vstv %s1315
        %v1317 = vmul.f32 %v1316, %v1245
        %v1318 = vmul.f32 %v1316, %v1246
        %v1321 = vrot.slane %v1317, 2
        %v1322 = vrot.slane %v1318, 2
        %v1323 = vsel %vm461, %v1321, %v1322
        %1324 = vrot.lane.b32.xlu0 %v1323, 127
        %v1325 = vpop.permute.xlu0 %1324
        %v1327 = vadd.f32 %v1314, %v1325
        %s1328 = sld [smem:[#allocation11 + $0x11]]
        %v1329 = vstv %s1328
        %v1330 = vmul.f32 %v1329, %v1245
        %v1331 = vmul.f32 %v1329, %v1246
        %v1334 = vrot.slane %v1330, 2
        %v1335 = vrot.slane %v1331, 2
        %v1336 = vsel %vm461, %v1334, %v1335
        %1337 = vrot.lane.b32.xlu0 %v1336, 126
        %v1338 = vpop.permute.xlu0 %1337
        %v1340 = vadd.f32 %v1327, %v1338
        %v1341 = vld [vmem:[%s1074] sm:$0xff]
        %v1342 = vld [vmem:[%s1074 + $0x8] sm:$0x3]
        %s1343 = sld [smem:[#allocation11 + $0x12]]
        %v1344 = vstv %s1343
        %v1345 = vmul.f32 %v1344, %v1341
        %v1346 = vadd.f32 %v1340, %v1345
        %s1347 = sld [smem:[#allocation11 + $0x13]]
        %v1348 = vstv %s1347
        %v1349 = vmul.f32 %v1348, %v1341
        %1351 = vrot.lane.b32.xlu0 %v1349, 127
        %v1352 = vpop.permute.xlu0 %1351
        %v1354 = vadd.f32 %v1346, %v1352
        %s1355 = sld [smem:[#allocation11 + $0x14]]
        %v1356 = vstv %s1355
        %v1357 = vmul.f32 %v1356, %v1341
        %1359 = vrot.lane.b32.xlu0 %v1357, 126
        %v1360 = vpop.permute.xlu0 %1359
        %v1362 = vadd.f32 %v1354, %v1360
        %s1363 = sld [smem:[#allocation11 + $0x15]]
        %v1364 = vstv %s1363
        %v1365 = vmul.f32 %v1364, %v1341
        %v1366 = vmul.f32 %v1364, %v1342
        %v1369 = vrot.slane %v1365, 1
        %v1370 = vrot.slane %v1366, 1
        %v1371 = vsel %vm401, %v1369, %v1370
        %v1373 = vadd.f32 %v1362, %v1371
        %s1374 = sld [smem:[#allocation11 + $0x16]]
        %v1375 = vstv %s1374
        %v1376 = vmul.f32 %v1375, %v1341
        %v1377 = vmul.f32 %v1375, %v1342
        %v1380 = vrot.slane %v1376, 1
        %v1381 = vrot.slane %v1377, 1
        %v1382 = vsel %vm401, %v1380, %v1381
        %1383 = vrot.lane.b32.xlu0 %v1382, 127
        %v1384 = vpop.permute.xlu0 %1383
        %v1386 = vadd.f32 %v1373, %v1384
        %s1387 = sld [smem:[#allocation11 + $0x17]]
        %v1388 = vstv %s1387
        %v1389 = vmul.f32 %v1388, %v1341
        %v1390 = vmul.f32 %v1388, %v1342
        %v1393 = vrot.slane %v1389, 1
        %v1394 = vrot.slane %v1390, 1
        %v1395 = vsel %vm401, %v1393, %v1394
        %1396 = vrot.lane.b32.xlu0 %v1395, 126
        %v1397 = vpop.permute.xlu0 %1396
        %v1399 = vadd.f32 %v1386, %v1397
        %s1400 = sld [smem:[#allocation11 + $0x18]]
        %v1401 = vstv %s1400
        %v1402 = vmul.f32 %v1401, %v1341
        %v1403 = vmul.f32 %v1401, %v1342
        %v1406 = vrot.slane %v1402, 2
        %v1407 = vrot.slane %v1403, 2
        %v1408 = vsel %vm461, %v1406, %v1407
        %v1410 = vadd.f32 %v1399, %v1408
        %s1411 = sld [smem:[#allocation11 + $0x19]]
        %v1412 = vstv %s1411
        %v1413 = vmul.f32 %v1412, %v1341
        %v1414 = vmul.f32 %v1412, %v1342
        %v1417 = vrot.slane %v1413, 2
        %v1418 = vrot.slane %v1414, 2
        %v1419 = vsel %vm461, %v1417, %v1418
        %1420 = vrot.lane.b32.xlu0 %v1419, 127
        %v1421 = vpop.permute.xlu0 %1420
        %v1423 = vadd.f32 %v1410, %v1421
        %s1424 = sld [smem:[#allocation11 + $0x1a]]
        %v1425 = vstv %s1424
        %v1426 = vmul.f32 %v1425, %v1341
        %v1427 = vmul.f32 %v1425, %v1342
        %v1430 = vrot.slane %v1426, 2
        %v1431 = vrot.slane %v1427, 2
        %v1432 = vsel %vm461, %v1430, %v1431
        %1433 = vrot.lane.b32.xlu0 %v1432, 126
        %v1434 = vpop.permute.xlu0 %1433
        %v1436 = vadd.f32 %v1423, %v1434
        %s1437 = sld [smem:[#allocation12]]
        %v1438 = vstv %s1437
        %v1439 = vadd.f32 %v1436, %v1438
        %v1440 = vmax.f32 %v1439, 0.0
        %v1442 = vrot.slane %v1440, 1
        %v1444 = vmax.f32 %v1440, %v1442
        %vm1445 = vcmask 57344
        %1446 = vst.msk [vmem:[#allocation4] sm:$0x1] %vm1445, %v1444
        %vm1447 = vcmask 59394
        %1448 = vst.msk [vmem:[#allocation4 - $0x1] sm:$0x4] %vm1447, %v1444
        %vm1449 = vcmask 61444
        %1450 = vst.msk [vmem:[#allocation4 - $0x2] sm:$0x10] %vm1449, %v1444
        %vm1451 = vcmask 63494
        %1452 = vst.msk [vmem:[#allocation4 - $0x3] sm:$0x40] %vm1451, %v1444
        %v1453 = vld [vmem:[#allocation4] sm:$0xf]
        %1455 = vrot.lane.b32.xlu0 %v1453, 127
        %v1456 = vpop.permute.xlu0 %1455
        %v1458 = vmax.f32 %v1453, %v1456
        %vm1459 = vcmask 3072
        %1460 = vst.msk [vmem:[#allocation5] sm:$0xf] %vm1459, %v1458
        %v1461 = vld [vmem:[#allocation4] sm:$0xf]
        %1463 = vrot.lane.b32.xlu0 %v1461, 127
        %v1464 = vpop.permute.xlu0 %1463
        %v1466 = vmax.f32 %v1461, %v1464
        %1468 = vrot.lane.b32.xlu0 %v1466, 127
        %v1469 = vpop.permute.xlu0 %1468
        %vm1471 = vcmask 11272
        %1472 = vst.msk [vmem:[#allocation5] sm:$0xf] %vm1471, %v1469
        %v1473 = vld [vmem:[#allocation4] sm:$0xf]
        %1475 = vrot.lane.b32.xlu0 %v1473, 127
        %v1476 = vpop.permute.xlu0 %1475
        %v1478 = vmax.f32 %v1473, %v1476
        %1480 = vrot.lane.b32.xlu0 %v1478, 126
        %v1481 = vpop.permute.xlu0 %1480
        %vm1483 = vcmask 19472
        %1484 = vst.msk [vmem:[#allocation5] sm:$0xf] %vm1483, %v1481
        %v1485 = vld [vmem:[#allocation4] sm:$0xf]
        %1487 = vrot.lane.b32.xlu0 %v1485, 127
        %v1488 = vpop.permute.xlu0 %1487
        %v1490 = vmax.f32 %v1485, %v1488
        %1492 = vrot.lane.b32.xlu0 %v1490, 125
        %v1493 = vpop.permute.xlu0 %1492
        %vm1495 = vcmask 27672
        %1496 = vst.msk [vmem:[#allocation5] sm:$0xf] %vm1495, %v1493
        %v1497 = vld [vmem:[#allocation3] sm:$0xff]
        %v1498 = vld [vmem:[#allocation3 + $0x8] sm:$0x3]
        %s1499 = sld [smem:[#allocation11 + $0x1b]]
        %v1500 = vstv %s1499
        %v1501 = vmul.f32 %v1500, %v1497
        %v1502 = vadd.f32 %v1501, 0.0
        %s1503 = sld [smem:[#allocation11 + $0x1c]]
        %v1504 = vstv %s1503
        %v1505 = vmul.f32 %v1504, %v1497
        %1507 = vrot.lane.b32.xlu0 %v1505, 127
        %v1508 = vpop.permute.xlu0 %1507
        %v1510 = vadd.f32 %v1502, %v1508
        %s1511 = sld [smem:[#allocation11 + $0x1d]]
        %v1512 = vstv %s1511
        %v1513 = vmul.f32 %v1512, %v1497
        %1515 = vrot.lane.b32.xlu0 %v1513, 126
        %v1516 = vpop.permute.xlu0 %1515
        %v1518 = vadd.f32 %v1510, %v1516
        %s1519 = sld [smem:[#allocation11 + $0x1e]]
        %v1520 = vstv %s1519
        %v1521 = vmul.f32 %v1520, %v1497
        %v1522 = vmul.f32 %v1520, %v1498
        %v1525 = vrot.slane %v1521, 1
        %v1526 = vrot.slane %v1522, 1
        %v1527 = vsel %vm401, %v1525, %v1526
        %v1529 = vadd.f32 %v1518, %v1527
        %s1530 = sld [smem:[#allocation11 + $0x1f]]
        %v1531 = vstv %s1530
        %v1532 = vmul.f32 %v1531, %v1497
        %v1533 = vmul.f32 %v1531, %v1498
        %v1536 = vrot.slane %v1532, 1
        %v1537 = vrot.slane %v1533, 1
        %v1538 = vsel %vm401, %v1536, %v1537
        %1539 = vrot.lane.b32.xlu0 %v1538, 127
        %v1540 = vpop.permute.xlu0 %1539
        %v1542 = vadd.f32 %v1529, %v1540
        %s1543 = sld [smem:[#allocation11 + $0x20]]
        %v1544 = vstv %s1543
        %v1545 = vmul.f32 %v1544, %v1497
        %v1546 = vmul.f32 %v1544, %v1498
        %v1549 = vrot.slane %v1545, 1
        %v1550 = vrot.slane %v1546, 1
        %v1551 = vsel %vm401, %v1549, %v1550
        %1552 = vrot.lane.b32.xlu0 %v1551, 126
        %v1553 = vpop.permute.xlu0 %1552
        %v1555 = vadd.f32 %v1542, %v1553
        %s1556 = sld [smem:[#allocation11 + $0x21]]
        %v1557 = vstv %s1556
        %v1558 = vmul.f32 %v1557, %v1497
        %v1559 = vmul.f32 %v1557, %v1498
        %v1562 = vrot.slane %v1558, 2
        %v1563 = vrot.slane %v1559, 2
        %v1564 = vsel %vm461, %v1562, %v1563
        %v1566 = vadd.f32 %v1555, %v1564
        %s1567 = sld [smem:[#allocation11 + $0x22]]
        %v1568 = vstv %s1567
        %v1569 = vmul.f32 %v1568, %v1497
        %v1570 = vmul.f32 %v1568, %v1498
        %v1573 = vrot.slane %v1569, 2
        %v1574 = vrot.slane %v1570, 2
        %v1575 = vsel %vm461, %v1573, %v1574
        %1576 = vrot.lane.b32.xlu0 %v1575, 127
        %v1577 = vpop.permute.xlu0 %1576
        %v1579 = vadd.f32 %v1566, %v1577
        %s1580 = sld [smem:[#allocation11 + $0x23]]
        %v1581 = vstv %s1580
        %v1582 = vmul.f32 %v1581, %v1497
        %v1583 = vmul.f32 %v1581, %v1498
        %v1586 = vrot.slane %v1582, 2
        %v1587 = vrot.slane %v1583, 2
        %v1588 = vsel %vm461, %v1586, %v1587
        %1589 = vrot.lane.b32.xlu0 %v1588, 126
        %v1590 = vpop.permute.xlu0 %1589
        %v1592 = vadd.f32 %v1579, %v1590
        %v1593 = vld [vmem:[%s815] sm:$0xff]
        %v1594 = vld [vmem:[%s815 + $0x8] sm:$0x3]
        %s1595 = sld [smem:[#allocation11 + $0x24]]
        %v1596 = vstv %s1595
        %v1597 = vmul.f32 %v1596, %v1593
        %v1598 = vadd.f32 %v1592, %v1597
        %s1599 = sld [smem:[#allocation11 + $0x25]]
        %v1600 = vstv %s1599
        %v1601 = vmul.f32 %v1600, %v1593
        %1603 = vrot.lane.b32.xlu0 %v1601, 127
        %v1604 = vpop.permute.xlu0 %1603
        %v1606 = vadd.f32 %v1598, %v1604
        %s1607 = sld [smem:[#allocation11 + $0x26]]
        %v1608 = vstv %s1607
        %v1609 = vmul.f32 %v1608, %v1593
        %1611 = vrot.lane.b32.xlu0 %v1609, 126
        %v1612 = vpop.permute.xlu0 %1611
        %v1614 = vadd.f32 %v1606, %v1612
        %s1615 = sld [smem:[#allocation11 + $0x27]]
        %v1616 = vstv %s1615
        %v1617 = vmul.f32 %v1616, %v1593
        %v1618 = vmul.f32 %v1616, %v1594
        %v1621 = vrot.slane %v1617, 1
        %v1622 = vrot.slane %v1618, 1
        %v1623 = vsel %vm401, %v1621, %v1622
        %v1625 = vadd.f32 %v1614, %v1623
        %s1626 = sld [smem:[#allocation11 + $0x28]]
        %v1627 = vstv %s1626
        %v1628 = vmul.f32 %v1627, %v1593
        %v1629 = vmul.f32 %v1627, %v1594
        %v1632 = vrot.slane %v1628, 1
        %v1633 = vrot.slane %v1629, 1
        %v1634 = vsel %vm401, %v1632, %v1633
        %1635 = vrot.lane.b32.xlu0 %v1634, 127
        %v1636 = vpop.permute.xlu0 %1635
        %v1638 = vadd.f32 %v1625, %v1636
        %s1639 = sld [smem:[#allocation11 + $0x29]]
        %v1640 = vstv %s1639
        %v1641 = vmul.f32 %v1640, %v1593
        %v1642 = vmul.f32 %v1640, %v1594
        %v1645 = vrot.slane %v1641, 1
        %v1646 = vrot.slane %v1642, 1
        %v1647 = vsel %vm401, %v1645, %v1646
        %1648 = vrot.lane.b32.xlu0 %v1647, 126
        %v1649 = vpop.permute.xlu0 %1648
        %v1651 = vadd.f32 %v1638, %v1649
        %s1652 = sld [smem:[#allocation11 + $0x2a]]
        %v1653 = vstv %s1652
        %v1654 = vmul.f32 %v1653, %v1593
        %v1655 = vmul.f32 %v1653, %v1594
        %v1658 = vrot.slane %v1654, 2
        %v1659 = vrot.slane %v1655, 2
        %v1660 = vsel %vm461, %v1658, %v1659
        %v1662 = vadd.f32 %v1651, %v1660
        %s1663 = sld [smem:[#allocation11 + $0x2b]]
        %v1664 = vstv %s1663
        %v1665 = vmul.f32 %v1664, %v1593
        %v1666 = vmul.f32 %v1664, %v1594
        %v1669 = vrot.slane %v1665, 2
        %v1670 = vrot.slane %v1666, 2
        %v1671 = vsel %vm461, %v1669, %v1670
        %1672 = vrot.lane.b32.xlu0 %v1671, 127
        %v1673 = vpop.permute.xlu0 %1672
        %v1675 = vadd.f32 %v1662, %v1673
        %s1676 = sld [smem:[#allocation11 + $0x2c]]
        %v1677 = vstv %s1676
        %v1678 = vmul.f32 %v1677, %v1593
        %v1679 = vmul.f32 %v1677, %v1594
        %v1682 = vrot.slane %v1678, 2
        %v1683 = vrot.slane %v1679, 2
        %v1684 = vsel %vm461, %v1682, %v1683
        %1685 = vrot.lane.b32.xlu0 %v1684, 126
        %v1686 = vpop.permute.xlu0 %1685
        %v1688 = vadd.f32 %v1675, %v1686
        %v1689 = vld [vmem:[%s1074] sm:$0xff]
        %v1690 = vld [vmem:[%s1074 + $0x8] sm:$0x3]
        %s1691 = sld [smem:[#allocation11 + $0x2d]]
        %v1692 = vstv %s1691
        %v1693 = vmul.f32 %v1692, %v1689
        %v1694 = vadd.f32 %v1688, %v1693
        %s1695 = sld [smem:[#allocation11 + $0x2e]]
        %v1696 = vstv %s1695
        %v1697 = vmul.f32 %v1696, %v1689
        %1699 = vrot.lane.b32.xlu0 %v1697, 127
        %v1700 = vpop.permute.xlu0 %1699
        %v1702 = vadd.f32 %v1694, %v1700
        %s1703 = sld [smem:[#allocation11 + $0x2f]]
        %v1704 = vstv %s1703
        %v1705 = vmul.f32 %v1704, %v1689
        %1707 = vrot.lane.b32.xlu0 %v1705, 126
        %v1708 = vpop.permute.xlu0 %1707
        %v1710 = vadd.f32 %v1702, %v1708
        %s1711 = sld [smem:[#allocation11 + $0x30]]
        %v1712 = vstv %s1711
        %v1713 = vmul.f32 %v1712, %v1689
        %v1714 = vmul.f32 %v1712, %v1690
        %v1717 = vrot.slane %v1713, 1
        %v1718 = vrot.slane %v1714, 1
        %v1719 = vsel %vm401, %v1717, %v1718
        %v1721 = vadd.f32 %v1710, %v1719
        %s1722 = sld [smem:[#allocation11 + $0x31]]
        %v1723 = vstv %s1722
        %v1724 = vmul.f32 %v1723, %v1689
        %v1725 = vmul.f32 %v1723, %v1690
        %v1728 = vrot.slane %v1724, 1
        %v1729 = vrot.slane %v1725, 1
        %v1730 = vsel %vm401, %v1728, %v1729
        %1731 = vrot.lane.b32.xlu0 %v1730, 127
        %v1732 = vpop.permute.xlu0 %1731
        %v1734 = vadd.f32 %v1721, %v1732
        %s1735 = sld [smem:[#allocation11 + $0x32]]
        %v1736 = vstv %s1735
        %v1737 = vmul.f32 %v1736, %v1689
        %v1738 = vmul.f32 %v1736, %v1690
        %v1741 = vrot.slane %v1737, 1
        %v1742 = vrot.slane %v1738, 1
        %v1743 = vsel %vm401, %v1741, %v1742
        %1744 = vrot.lane.b32.xlu0 %v1743, 126
        %v1745 = vpop.permute.xlu0 %1744
        %v1747 = vadd.f32 %v1734, %v1745
        %s1748 = sld [smem:[#allocation11 + $0x33]]
        %v1749 = vstv %s1748
        %v1750 = vmul.f32 %v1749, %v1689
        %v1751 = vmul.f32 %v1749, %v1690
        %v1754 = vrot.slane %v1750, 2
        %v1755 = vrot.slane %v1751, 2
        %v1756 = vsel %vm461, %v1754, %v1755
        %v1758 = vadd.f32 %v1747, %v1756
        %s1759 = sld [smem:[#allocation11 + $0x34]]
        %v1760 = vstv %s1759
        %v1761 = vmul.f32 %v1760, %v1689
        %v1762 = vmul.f32 %v1760, %v1690
        %v1765 = vrot.slane %v1761, 2
        %v1766 = vrot.slane %v1762, 2
        %v1767 = vsel %vm461, %v1765, %v1766
        %1768 = vrot.lane.b32.xlu0 %v1767, 127
        %v1769 = vpop.permute.xlu0 %1768
        %v1771 = vadd.f32 %v1758, %v1769
        %s1772 = sld [smem:[#allocation11 + $0x35]]
        %v1773 = vstv %s1772
        %v1774 = vmul.f32 %v1773, %v1689
        %v1775 = vmul.f32 %v1773, %v1690
        %v1778 = vrot.slane %v1774, 2
        %v1779 = vrot.slane %v1775, 2
        %v1780 = vsel %vm461, %v1778, %v1779
        %1781 = vrot.lane.b32.xlu0 %v1780, 126
        %v1782 = vpop.permute.xlu0 %1781
        %v1784 = vadd.f32 %v1771, %v1782
        %s1785 = sld [smem:[#allocation12 + $0x1]]
        %v1786 = vstv %s1785
        %v1787 = vadd.f32 %v1784, %v1786
        %v1788 = vmax.f32 %v1787, 0.0
        %v1790 = vrot.slane %v1788, 1
        %v1792 = vmax.f32 %v1788, %v1790
        %1793 = vst.msk [vmem:[#allocation4] sm:$0x1] %vm1445, %v1792
        %1794 = vst.msk [vmem:[#allocation4 - $0x1] sm:$0x4] %vm1447, %v1792
        %1795 = vst.msk [vmem:[#allocation4 - $0x2] sm:$0x10] %vm1449, %v1792
        %1796 = vst.msk [vmem:[#allocation4 - $0x3] sm:$0x40] %vm1451, %v1792
        %v1797 = vld [vmem:[#allocation4] sm:$0xf]
        %1799 = vrot.lane.b32.xlu0 %v1797, 127
        %v1800 = vpop.permute.xlu0 %1799
        %v1802 = vmax.f32 %v1797, %v1800
        %1804 = vrot.lane.b32.xlu0 %v1802, 4
        %v1805 = vpop.permute.xlu0 %1804
        %vm1807 = vcmask 35872
        %1808 = vst.msk [vmem:[#allocation5] sm:$0xf] %vm1807, %v1805
        %v1809 = vld [vmem:[#allocation4] sm:$0xf]
        %1811 = vrot.lane.b32.xlu0 %v1809, 127
        %v1812 = vpop.permute.xlu0 %1811
        %v1814 = vmax.f32 %v1809, %v1812
        %1816 = vrot.lane.b32.xlu0 %v1814, 3
        %v1817 = vpop.permute.xlu0 %1816
        %vm1819 = vcmask 44072
        %1820 = vst.msk [vmem:[#allocation5] sm:$0xf] %vm1819, %v1817
        %v1821 = vld [vmem:[#allocation4] sm:$0xf]
        %1823 = vrot.lane.b32.xlu0 %v1821, 127
        %v1824 = vpop.permute.xlu0 %1823
        %v1826 = vmax.f32 %v1821, %v1824
        %1828 = vrot.lane.b32.xlu0 %v1826, 2
        %v1829 = vpop.permute.xlu0 %1828
        %vm1831 = vcmask 52272
        %1832 = vst.msk [vmem:[#allocation5] sm:$0xf] %vm1831, %v1829
        %v1833 = vld [vmem:[#allocation4] sm:$0xf]
        %1835 = vrot.lane.b32.xlu0 %v1833, 127
        %v1836 = vpop.permute.xlu0 %1835
        %v1838 = vmax.f32 %v1833, %v1836
        %1840 = vrot.lane.b32.xlu0 %v1838, 1
        %v1841 = vpop.permute.xlu0 %1840
        %vm1843 = vcmask 60472
        %1844 = vst.msk [vmem:[#allocation5] sm:$0xf] %vm1843, %v1841
        %v1845 = vld [vmem:[#allocation3] sm:$0xff]
        %v1846 = vld [vmem:[#allocation3 + $0x8] sm:$0x3]
        %s1847 = sld [smem:[#allocation11 + $0x36]]
        %v1848 = vstv %s1847
        %v1849 = vmul.f32 %v1848, %v1845
        %v1850 = vadd.f32 %v1849, 0.0
        %s1851 = sld [smem:[#allocation11 + $0x37]]
        %v1852 = vstv %s1851
        %v1853 = vmul.f32 %v1852, %v1845
        %1855 = vrot.lane.b32.xlu0 %v1853, 127
        %v1856 = vpop.permute.xlu0 %1855
        %v1858 = vadd.f32 %v1850, %v1856
        %s1859 = sld [smem:[#allocation11 + $0x38]]
        %v1860 = vstv %s1859
        %v1861 = vmul.f32 %v1860, %v1845
        %1863 = vrot.lane.b32.xlu0 %v1861, 126
        %v1864 = vpop.permute.xlu0 %1863
        %v1866 = vadd.f32 %v1858, %v1864
        %s1867 = sld [smem:[#allocation11 + $0x39]]
        %v1868 = vstv %s1867
        %v1869 = vmul.f32 %v1868, %v1845
        %v1870 = vmul.f32 %v1868, %v1846
        %v1873 = vrot.slane %v1869, 1
        %v1874 = vrot.slane %v1870, 1
        %v1875 = vsel %vm401, %v1873, %v1874
        %v1877 = vadd.f32 %v1866, %v1875
        %s1878 = sld [smem:[#allocation11 + $0x3a]]
        %v1879 = vstv %s1878
        %v1880 = vmul.f32 %v1879, %v1845
        %v1881 = vmul.f32 %v1879, %v1846
        %v1884 = vrot.slane %v1880, 1
        %v1885 = vrot.slane %v1881, 1
        %v1886 = vsel %vm401, %v1884, %v1885
        %1887 = vrot.lane.b32.xlu0 %v1886, 127
        %v1888 = vpop.permute.xlu0 %1887
        %v1890 = vadd.f32 %v1877, %v1888
        %s1891 = sld [smem:[#allocation11 + $0x3b]]
        %v1892 = vstv %s1891
        %v1893 = vmul.f32 %v1892, %v1845
        %v1894 = vmul.f32 %v1892, %v1846
        %v1897 = vrot.slane %v1893, 1
        %v1898 = vrot.slane %v1894, 1
        %v1899 = vsel %vm401, %v1897, %v1898
        %1900 = vrot.lane.b32.xlu0 %v1899, 126
        %v1901 = vpop.permute.xlu0 %1900
        %v1903 = vadd.f32 %v1890, %v1901
        %s1904 = sld [smem:[#allocation11 + $0x3c]]
        %v1905 = vstv %s1904
        %v1906 = vmul.f32 %v1905, %v1845
        %v1907 = vmul.f32 %v1905, %v1846
        %v1910 = vrot.slane %v1906, 2
        %v1911 = vrot.slane %v1907, 2
        %v1912 = vsel %vm461, %v1910, %v1911
        %v1914 = vadd.f32 %v1903, %v1912
        %s1915 = sld [smem:[#allocation11 + $0x3d]]
        %v1916 = vstv %s1915
        %v1917 = vmul.f32 %v1916, %v1845
        %v1918 = vmul.f32 %v1916, %v1846
        %v1921 = vrot.slane %v1917, 2
        %v1922 = vrot.slane %v1918, 2
        %v1923 = vsel %vm461, %v1921, %v1922
        %1924 = vrot.lane.b32.xlu0 %v1923, 127
        %v1925 = vpop.permute.xlu0 %1924
        %v1927 = vadd.f32 %v1914, %v1925
        %s1928 = sld [smem:[#allocation11 + $0x3e]]
        %v1929 = vstv %s1928
        %v1930 = vmul.f32 %v1929, %v1845
        %v1931 = vmul.f32 %v1929, %v1846
        %v1934 = vrot.slane %v1930, 2
        %v1935 = vrot.slane %v1931, 2
        %v1936 = vsel %vm461, %v1934, %v1935
        %1937 = vrot.lane.b32.xlu0 %v1936, 126
        %v1938 = vpop.permute.xlu0 %1937
        %v1940 = vadd.f32 %v1927, %v1938
        %v1941 = vld [vmem:[%s815] sm:$0xff]
        %v1942 = vld [vmem:[%s815 + $0x8] sm:$0x3]
        %s1943 = sld [smem:[#allocation11 + $0x3f]]
        %v1944 = vstv %s1943
        %v1945 = vmul.f32 %v1944, %v1941
        %v1946 = vadd.f32 %v1940, %v1945
        %s1947 = sld [smem:[#allocation11 + $0x40]]
        %v1948 = vstv %s1947
        %v1949 = vmul.f32 %v1948, %v1941
        %1951 = vrot.lane.b32.xlu0 %v1949, 127
        %v1952 = vpop.permute.xlu0 %1951
        %v1954 = vadd.f32 %v1946, %v1952
        %s1955 = sld [smem:[#allocation11 + $0x41]]
        %v1956 = vstv %s1955
        %v1957 = vmul.f32 %v1956, %v1941
        %1959 = vrot.lane.b32.xlu0 %v1957, 126
        %v1960 = vpop.permute.xlu0 %1959
        %v1962 = vadd.f32 %v1954, %v1960
        %s1963 = sld [smem:[#allocation11 + $0x42]]
        %v1964 = vstv %s1963
        %v1965 = vmul.f32 %v1964, %v1941
        %v1966 = vmul.f32 %v1964, %v1942
        %v1969 = vrot.slane %v1965, 1
        %v1970 = vrot.slane %v1966, 1
        %v1971 = vsel %vm401, %v1969, %v1970
        %v1973 = vadd.f32 %v1962, %v1971
        %s1974 = sld [smem:[#allocation11 + $0x43]]
        %v1975 = vstv %s1974
        %v1976 = vmul.f32 %v1975, %v1941
        %v1977 = vmul.f32 %v1975, %v1942
        %v1980 = vrot.slane %v1976, 1
        %v1981 = vrot.slane %v1977, 1
        %v1982 = vsel %vm401, %v1980, %v1981
        %1983 = vrot.lane.b32.xlu0 %v1982, 127
        %v1984 = vpop.permute.xlu0 %1983
        %v1986 = vadd.f32 %v1973, %v1984
        %s1987 = sld [smem:[#allocation11 + $0x44]]
        %v1988 = vstv %s1987
        %v1989 = vmul.f32 %v1988, %v1941
        %v1990 = vmul.f32 %v1988, %v1942
        %v1993 = vrot.slane %v1989, 1
        %v1994 = vrot.slane %v1990, 1
        %v1995 = vsel %vm401, %v1993, %v1994
        %1996 = vrot.lane.b32.xlu0 %v1995, 126
        %v1997 = vpop.permute.xlu0 %1996
        %v1999 = vadd.f32 %v1986, %v1997
        %s2000 = sld [smem:[#allocation11 + $0x45]]
        %v2001 = vstv %s2000
        %v2002 = vmul.f32 %v2001, %v1941
        %v2003 = vmul.f32 %v2001, %v1942
        %v2006 = vrot.slane %v2002, 2
        %v2007 = vrot.slane %v2003, 2
        %v2008 = vsel %vm461, %v2006, %v2007
        %v2010 = vadd.f32 %v1999, %v2008
        %s2011 = sld [smem:[#allocation11 + $0x46]]
        %v2012 = vstv %s2011
        %v2013 = vmul.f32 %v2012, %v1941
        %v2014 = vmul.f32 %v2012, %v1942
        %v2017 = vrot.slane %v2013, 2
        %v2018 = vrot.slane %v2014, 2
        %v2019 = vsel %vm461, %v2017, %v2018
        %2020 = vrot.lane.b32.xlu0 %v2019, 127
        %v2021 = vpop.permute.xlu0 %2020
        %v2023 = vadd.f32 %v2010, %v2021
        %s2024 = sld [smem:[#allocation11 + $0x47]]
        %v2025 = vstv %s2024
        %v2026 = vmul.f32 %v2025, %v1941
        %v2027 = vmul.f32 %v2025, %v1942
        %v2030 = vrot.slane %v2026, 2
        %v2031 = vrot.slane %v2027, 2
        %v2032 = vsel %vm461, %v2030, %v2031
        %2033 = vrot.lane.b32.xlu0 %v2032, 126
        %v2034 = vpop.permute.xlu0 %2033
        %v2036 = vadd.f32 %v2023, %v2034
        %v2037 = vld [vmem:[%s1074] sm:$0xff]
        %v2038 = vld [vmem:[%s1074 + $0x8] sm:$0x3]
        %s2039 = sld [smem:[#allocation11 + $0x48]]
        %v2040 = vstv %s2039
        %v2041 = vmul.f32 %v2040, %v2037
        %v2042 = vadd.f32 %v2036, %v2041
        %s2043 = sld [smem:[#allocation11 + $0x49]]
        %v2044 = vstv %s2043
        %v2045 = vmul.f32 %v2044, %v2037
        %2047 = vrot.lane.b32.xlu0 %v2045, 127
        %v2048 = vpop.permute.xlu0 %2047
        %v2050 = vadd.f32 %v2042, %v2048
        %s2051 = sld [smem:[#allocation11 + $0x4a]]
        %v2052 = vstv %s2051
        %v2053 = vmul.f32 %v2052, %v2037
        %2055 = vrot.lane.b32.xlu0 %v2053, 126
        %v2056 = vpop.permute.xlu0 %2055
        %v2058 = vadd.f32 %v2050, %v2056
        %s2059 = sld [smem:[#allocation11 + $0x4b]]
        %v2060 = vstv %s2059
        %v2061 = vmul.f32 %v2060, %v2037
        %v2062 = vmul.f32 %v2060, %v2038
        %v2065 = vrot.slane %v2061, 1
        %v2066 = vrot.slane %v2062, 1
        %v2067 = vsel %vm401, %v2065, %v2066
        %v2069 = vadd.f32 %v2058, %v2067
        %s2070 = sld [smem:[#allocation11 + $0x4c]]
        %v2071 = vstv %s2070
        %v2072 = vmul.f32 %v2071, %v2037
        %v2073 = vmul.f32 %v2071, %v2038
        %v2076 = vrot.slane %v2072, 1
        %v2077 = vrot.slane %v2073, 1
        %v2078 = vsel %vm401, %v2076, %v2077
        %2079 = vrot.lane.b32.xlu0 %v2078, 127
        %v2080 = vpop.permute.xlu0 %2079
        %v2082 = vadd.f32 %v2069, %v2080
        %s2083 = sld [smem:[#allocation11 + $0x4d]]
        %v2084 = vstv %s2083
        %v2085 = vmul.f32 %v2084, %v2037
        %v2086 = vmul.f32 %v2084, %v2038
        %v2089 = vrot.slane %v2085, 1
        %v2090 = vrot.slane %v2086, 1
        %v2091 = vsel %vm401, %v2089, %v2090
        %2092 = vrot.lane.b32.xlu0 %v2091, 126
        %v2093 = vpop.permute.xlu0 %2092
        %v2095 = vadd.f32 %v2082, %v2093
        %s2096 = sld [smem:[#allocation11 + $0x4e]]
        %v2097 = vstv %s2096
        %v2098 = vmul.f32 %v2097, %v2037
        %v2099 = vmul.f32 %v2097, %v2038
        %v2102 = vrot.slane %v2098, 2
        %v2103 = vrot.slane %v2099, 2
        %v2104 = vsel %vm461, %v2102, %v2103
        %v2106 = vadd.f32 %v2095, %v2104
        %s2107 = sld [smem:[#allocation11 + $0x4f]]
        %v2108 = vstv %s2107
        %v2109 = vmul.f32 %v2108, %v2037
        %v2110 = vmul.f32 %v2108, %v2038
        %v2113 = vrot.slane %v2109, 2
        %v2114 = vrot.slane %v2110, 2
        %v2115 = vsel %vm461, %v2113, %v2114
        %2116 = vrot.lane.b32.xlu0 %v2115, 127
        %v2117 = vpop.permute.xlu0 %2116
        %v2119 = vadd.f32 %v2106, %v2117
        %s2120 = sld [smem:[#allocation11 + $0x50]]
        %v2121 = vstv %s2120
        %v2122 = vmul.f32 %v2121, %v2037
        %v2123 = vmul.f32 %v2121, %v2038
        %v2126 = vrot.slane %v2122, 2
        %v2127 = vrot.slane %v2123, 2
        %v2128 = vsel %vm461, %v2126, %v2127
        %2129 = vrot.lane.b32.xlu0 %v2128, 126
        %v2130 = vpop.permute.xlu0 %2129
        %v2132 = vadd.f32 %v2119, %v2130
        %s2133 = sld [smem:[#allocation12 + $0x2]]
        %v2134 = vstv %s2133
        %v2135 = vadd.f32 %v2132, %v2134
        %v2136 = vmax.f32 %v2135, 0.0
        %v2138 = vrot.slane %v2136, 1
        %v2140 = vmax.f32 %v2136, %v2138
        %2141 = vst.msk [vmem:[#allocation4] sm:$0x1] %vm1445, %v2140
        %2142 = vst.msk [vmem:[#allocation4 - $0x1] sm:$0x4] %vm1447, %v2140
        %2143 = vst.msk [vmem:[#allocation4 - $0x2] sm:$0x10] %vm1449, %v2140
        %2144 = vst.msk [vmem:[#allocation4 - $0x3] sm:$0x40] %vm1451, %v2140
        %v2145 = vld [vmem:[#allocation4] sm:$0xf]
        %2147 = vrot.lane.b32.xlu0 %v2145, 127
        %v2148 = vpop.permute.xlu0 %2147
        %v2150 = vmax.f32 %v2145, %v2148
        %2152 = vrot.lane.b32.xlu0 %v2150, 8
        %v2153 = vpop.permute.xlu0 %2152
        %vm2155 = vcmask 68672
        %2156 = vst.msk [vmem:[#allocation5] sm:$0xf] %vm2155, %v2153
        %v2157 = vld [vmem:[#allocation4] sm:$0xf]
        %2159 = vrot.lane.b32.xlu0 %v2157, 127
        %v2160 = vpop.permute.xlu0 %2159
        %v2162 = vmax.f32 %v2157, %v2160
        %2164 = vrot.lane.b32.xlu0 %v2162, 7
        %v2165 = vpop.permute.xlu0 %2164
        %vm2167 = vcmask 76872
        %2168 = vst.msk [vmem:[#allocation5] sm:$0xf] %vm2167, %v2165
        %v2169 = vld [vmem:[#allocation4] sm:$0xf]
        %2171 = vrot.lane.b32.xlu0 %v2169, 127
        %v2172 = vpop.permute.xlu0 %2171
        %v2174 = vmax.f32 %v2169, %v2172
        %2176 = vrot.lane.b32.xlu0 %v2174, 6
        %v2177 = vpop.permute.xlu0 %2176
        %vm2179 = vcmask 85072
        %2180 = vst.msk [vmem:[#allocation5] sm:$0xf] %vm2179, %v2177
        %v2181 = vld [vmem:[#allocation4] sm:$0xf]
        %2183 = vrot.lane.b32.xlu0 %v2181, 127
        %v2184 = vpop.permute.xlu0 %2183
        %v2186 = vmax.f32 %v2181, %v2184
        %2188 = vrot.lane.b32.xlu0 %v2186, 5
        %v2189 = vpop.permute.xlu0 %2188
        %vm2191 = vcmask 93272
        %2192 = vst.msk [vmem:[#allocation5] sm:$0xf] %vm2191, %v2189
        %v2193 = vld [vmem:[#allocation5] sm:$0xff]
        %v2194 = vld [vmem:[%s5] sm:$0xff]
        %v2195 = vld [vmem:[%s5 + $0x8] sm:$0xff]
        %v2196 = vld [vmem:[%s5 + $0x10] sm:$0xff]
        %v2197 = vld [vmem:[%s5 + $0x18] sm:$0xff]
        %v2198 = vld [vmem:[%s5 + $0x20] sm:$0xff]
        %v2199 = vld [vmem:[%s5 + $0x28] sm:$0xff]
        %v2200 = vld [vmem:[%s5 + $0x30] sm:$0xff]
        %v2201 = vld [vmem:[%s5 + $0x38] sm:$0xff]
        %v2203 = vsel %vm354, %v2193, 0
        %2205 = vmatprep.subr.mxu0 %v2195
        %2206 = vmatpush1.msra.mxu0 %v2194
        %2207 = vmatprep.subr.mxu0 %v2199
        %2208 = vmatpush1.msra.mxu0 %v2198
        %2209 = vmatprep.subr.mxu0 0.0
        %2210 = vmatpush1.msra.mxu0 0.0
        %2211 = vmatprep.subr.mxu0 0.0
        %2212 = vmatpush1.msra.mxu0 0.0
        %2213 = vmatprep.subr.mxu0 0.0
        %2214 = vmatpush1.msra.mxu0 0.0
        %2215 = vmatprep.subr.mxu0 0.0
        %2216 = vmatpush1.msra.mxu0 0.0
        %2217 = vmatprep.subr.mxu0 0.0
        %2218 = vmatpush1.msra.mxu0 0.0
        %2219 = vmatprep.subr.mxu0 0.0
        %2220 = vmatpush1.msra.mxu0 0.0
        %2221 = vmatprep.subr.mxu0 0.0
        %2222 = vmatpush1.msra.mxu0 0.0
        %2223 = vmatprep.subr.mxu0 0.0
        %2224 = vmatpush1.msra.mxu0 0.0
        %2225 = vmatprep.subr.mxu0 0.0
        %2226 = vmatpush1.msra.mxu0 0.0
        %2227 = vmatprep.subr.mxu0 0.0
        %2228 = vmatpush1.msra.mxu0 0.0
        %2229 = vmatprep.subr.mxu0 0.0
        %2230 = vmatpush1.msra.mxu0 0.0
        %2231 = vmatprep.subr.mxu0 0.0
        %2232 = vmatpush1.msra.mxu0 0.0
        %2233 = vmatprep.subr.mxu0 0.0
        %2234 = vmatpush1.msra.mxu0 0.0
        %2235 = vmatprep.subr.mxu0 0.0
        %2236 = vmatpush1.msra.mxu0 0.0
        %2237 = vmatprep.subr.mxu0 0.0
        %2238 = vmatpush1.msra.mxu0 0.0
        %2239 = vmatprep.subr.mxu0 0.0
        %2240 = vmatpush1.msra.mxu0 0.0
        %2241 = vmatprep.subr.mxu0 0.0
        %2242 = vmatpush1.msra.mxu0 0.0
        %2243 = vmatprep.subr.mxu0 0.0
        %2244 = vmatpush1.msra.mxu0 0.0
        %2245 = vmatprep.subr.mxu0 0.0
        %2246 = vmatpush1.msra.mxu0 0.0
        %2247 = vmatprep.subr.mxu0 0.0
        %2248 = vmatpush1.msra.mxu0 0.0
        %2249 = vmatprep.subr.mxu0 0.0
        %2250 = vmatpush1.msra.mxu0 0.0
        %2251 = vmatprep.subr.mxu0 0.0
        %2252 = vmatpush1.msra.mxu0 0.0
        %2253 = vmatprep.subr.mxu0 0.0
        %2254 = vmatpush1.msra.mxu0 0.0
        %2255 = vmatprep.subr.mxu0 0.0
        %2256 = vmatpush1.msra.mxu0 0.0
        %2257 = vmatprep.subr.mxu0 0.0
        %2258 = vmatpush1.msra.mxu0 0.0
        %2259 = vmatprep.subr.mxu0 0.0
        %2260 = vmatpush1.msra.mxu0 0.0
        %2261 = vmatprep.subr.mxu0 0.0
        %2262 = vmatpush1.msra.mxu0 0.0
        %2263 = vmatprep.subr.mxu0 0.0
        %2264 = vmatpush1.msra.mxu0 0.0
        %2265 = vmatprep.subr.mxu0 0.0
        %2266 = vmatpush1.msra.mxu0 0.0
        %2267 = vmatprep.subr.mxu0 0.0
        %2268 = vmatpush1.msra.mxu0 0.0
        %2269 = vmatprep.mubr.f32.mxu0 0.0
        %2270 = vmatmul.mubr.f32.gmra.mrb[0].mxu0 %v2203
        %v2271 = vpop.f32.mrb[0].mxu0
        %v2272 = vadd.f32 0.0, %v2271
        %v2273 = vpop.f32.mrb[0].mxu0
        %v2274 = vadd.f32 0.0, %v2273
        %2275 = vdwg.mxu0
        %2276 = vmatprep.subr.mxu0 %v2197
        %2277 = vmatpush1.msra.mxu0 %v2196
        %2278 = vmatprep.subr.mxu0 %v2201
        %2279 = vmatpush1.msra.mxu0 %v2200
        %2280 = vmatprep.subr.mxu0 0.0
        %2281 = vmatpush1.msra.mxu0 0.0
        %2282 = vmatprep.subr.mxu0 0.0
        %2283 = vmatpush1.msra.mxu0 0.0
        %2284 = vmatprep.subr.mxu0 0.0
        %2285 = vmatpush1.msra.mxu0 0.0
        %2286 = vmatprep.subr.mxu0 0.0
        %2287 = vmatpush1.msra.mxu0 0.0
        %2288 = vmatprep.subr.mxu0 0.0
        %2289 = vmatpush1.msra.mxu0 0.0
        %2290 = vmatprep.subr.mxu0 0.0
        %2291 = vmatpush1.msra.mxu0 0.0
        %2292 = vmatprep.subr.mxu0 0.0
        %2293 = vmatpush1.msra.mxu0 0.0
        %2294 = vmatprep.subr.mxu0 0.0
        %2295 = vmatpush1.msra.mxu0 0.0
        %2296 = vmatprep.subr.mxu0 0.0
        %2297 = vmatpush1.msra.mxu0 0.0
        %2298 = vmatprep.subr.mxu0 0.0
        %2299 = vmatpush1.msra.mxu0 0.0
        %2300 = vmatprep.subr.mxu0 0.0
        %2301 = vmatpush1.msra.mxu0 0.0
        %2302 = vmatprep.subr.mxu0 0.0
        %2303 = vmatpush1.msra.mxu0 0.0
        %2304 = vmatprep.subr.mxu0 0.0
        %2305 = vmatpush1.msra.mxu0 0.0
        %2306 = vmatprep.subr.mxu0 0.0
        %2307 = vmatpush1.msra.mxu0 0.0
        %2308 = vmatprep.subr.mxu0 0.0
        %2309 = vmatpush1.msra.mxu0 0.0
        %2310 = vmatprep.subr.mxu0 0.0
        %2311 = vmatpush1.msra.mxu0 0.0
        %2312 = vmatprep.subr.mxu0 0.0
        %2313 = vmatpush1.msra.mxu0 0.0
        %2314 = vmatprep.subr.mxu0 0.0
        %2315 = vmatpush1.msra.mxu0 0.0
        %2316 = vmatprep.subr.mxu0 0.0
        %2317 = vmatpush1.msra.mxu0 0.0
        %2318 = vmatprep.subr.mxu0 0.0
        %2319 = vmatpush1.msra.mxu0 0.0
        %2320 = vmatprep.subr.mxu0 0.0
        %2321 = vmatpush1.msra.mxu0 0.0
        %2322 = vmatprep.subr.mxu0 0.0
        %2323 = vmatpush1.msra.mxu0 0.0
        %2324 = vmatprep.subr.mxu0 0.0
        %2325 = vmatpush1.msra.mxu0 0.0
        %2326 = vmatprep.subr.mxu0 0.0
        %2327 = vmatpush1.msra.mxu0 0.0
        %2328 = vmatprep.subr.mxu0 0.0
        %2329 = vmatpush1.msra.mxu0 0.0
        %2330 = vmatprep.subr.mxu0 0.0
        %2331 = vmatpush1.msra.mxu0 0.0
        %2332 = vmatprep.subr.mxu0 0.0
        %2333 = vmatpush1.msra.mxu0 0.0
        %2334 = vmatprep.subr.mxu0 0.0
        %2335 = vmatpush1.msra.mxu0 0.0
        %2336 = vmatprep.subr.mxu0 0.0
        %2337 = vmatpush1.msra.mxu0 0.0
        %2338 = vmatprep.subr.mxu0 0.0
        %2339 = vmatpush1.msra.mxu0 0.0
        %2340 = vmatprep.mubr.f32.mxu0 0.0
        %2341 = vmatmul.mubr.f32.gmra.mrb[0].mxu0 %v2203
        %v2342 = vpop.f32.mrb[0].mxu0
        %v2343 = vadd.f32 0.0, %v2342
        %v2344 = vpop.f32.mrb[0].mxu0
        %v2345 = vadd.f32 0.0, %v2344
        %2346 = vdwg.mxu0
        %v2347 = vld [vmem:[%s6] sm:$0x1]
        %v2348 = vadd.f32 %v2347, %v2272
        %v2351 = vunpack.c.l.s4 1966171168
        %v2352 = vunpack.c.0.s8 %v2351
        %v2353 = vlaneseq
        %v2354 = vshrl.u32 %v2353, 7
        %v2355 = vsub.s32 %v2352, %v2354
        %v2356 = vrot.slane %v2274, %v2355
        %v2357 = vcombine.high %v2356, %v2356
        %v2359 = vunpack.c.l.s4 1966171168
        %v2360 = vunpack.c.0.s8 %v2359
        %v2361 = vlaneseq
        %v2362 = vshrl.u32 %v2361, 7
        %v2363 = vsub.s32 %v2360, %v2362
        %v2364 = vrot.slane %v2357, %v2363
        %v2366 = vadd.f32 %v2348, %v2364
        %v2369 = vunpack.c.l.s4 1966171168
        %v2370 = vunpack.c.0.s8 %v2369
        %v2371 = vlaneseq
        %v2372 = vshrl.u32 %v2371, 7
        %v2373 = vsub.s32 %v2370, %v2372
        %v2374 = vrot.slane %v2343, %v2373
        %v2376 = vunpack.c.l.s4 1966171168
        %v2377 = vunpack.c.0.s8 %v2376
        %v2378 = vlaneseq
        %v2379 = vshrl.u32 %v2378, 7
        %v2380 = vsub.s32 %v2377, %v2379
        %v2381 = vrot.slane %v2374, %v2380
        %v2382 = vcombine.high %v2381, %v2381
        %v2384 = vadd.f32 %v2366, %v2382
        %v2387 = vunpack.c.l.s4 1966171168
        %v2388 = vunpack.c.0.s8 %v2387
        %v2389 = vlaneseq
        %v2390 = vshrl.u32 %v2389, 7
        %v2391 = vsub.s32 %v2388, %v2390
        %v2392 = vrot.slane %v2345, %v2391
        %v2393 = vcombine.high %v2392, %v2392
        %v2395 = vunpack.c.l.s4 1966171168
        %v2396 = vunpack.c.0.s8 %v2395
        %v2397 = vlaneseq
        %v2398 = vshrl.u32 %v2397, 7
        %v2399 = vsub.s32 %v2396, %v2398
        %v2400 = vrot.slane %v2393, %v2399
        %v2401 = vcombine.high %v2400, %v2400
        %v2403 = vadd.f32 %v2384, %v2401
        %2404 = vst [vmem:[%s322] sm:$0x1] %v2403
        %s2405 = sand.u32 %s184, 1
        %s2406 = scalar_lea.sflag [#allocation7], %s2405
        %s2407 = sand.u32 %s184, 1
        %s2408 = scalar_lea.vmem [#allocation14], %s2407
        // Predicated region
        $region65: #{cnn_embedder_forward.1} parent=47 // pred_check
          %p2409 = pneg %p194
        $region66: #{cnn_embedder_forward.1} parent=47 // pred_check_branch
          %2411 = sbr.rel (%p2409) target = $region68
        $region67: #{cnn_embedder_forward.1} parent=47 // pred_region
          %s2413 = ssub.s32 16, 16
          %2414 = vsyncadd %s2406, %s2413
          %s2415 = smul.addr %s24, 16
          %s2416 = scalar_lea.hbm %s7, %s2415
          %s2418 = sshll.u32 %s2408, 4
          %s2419 = int_to_ptr.vmem [resolvable:$true] %s2418
          %2421 = dma.vmem_to_hbm [thread:$0]  %s2419, 16, %s2416, %s2406
        $region68: #{cnn_embedder_forward.1} parent=47 // pred_fallthru
          _
      $region48: #{cnn_embedder_forward.1} parent=5 // pred_fallthru
        _
      %p2422 = scmp.le.s32.totalorder 2, %s19
      // Predicated region
      $region69: #{cnn_embedder_forward.1} parent=5 // pred_check
        %p2423 = pneg %p2422
      $region70: #{cnn_embedder_forward.1} parent=5 // pred_check_branch
        %2425 = sbr.rel (%p2423) target = $region72
      $region71: #{cnn_embedder_forward.1} parent=5 // pred_region
        %s2426 = ssub.s32 %s19, 2
        // Predicated region
        $region73: #{cnn_embedder_forward.1} parent=71 // pred_check
          %p2427 = pneg %p200
        $region74: #{cnn_embedder_forward.1} parent=71 // pred_check_branch
          %2429 = sbr.rel (%p2427) target = $region76
        $region75: #{cnn_embedder_forward.1} parent=71 // pred_region
          %s2430 = sand.u32 %s185, 1
          %s2431 = scalar_lea.sflag [#allocation7], %s2430
          %s2432 = sand.u32 %s185, 1
          %s2433 = scalar_lea.vmem [#allocation14], %s2432
          %2434 = dma.done %s2431, 16
        $region76: #{cnn_embedder_forward.1} parent=71 // pred_fallthru
          _
      $region72: #{cnn_embedder_forward.1} parent=5 // pred_fallthru
        _
    $region6: #{cnn_embedder_forward.1} parent=1 // loop_footer
      %s23 = sadd.s32 1, %s19
    $region7: #{cnn_embedder_forward.1} parent=1 // loop_footer_branch
      %18 = sbr.rel target = $region3
    $region8: #{cnn_embedder_forward.1} parent=1 // loop_exit
      _
    %2435 = vsyncpa [#allocation7], 1
    %s2436 = scalar_lea.sflag [#allocation7], 1
    %2437 = vsyncpa %s2436, 1
    %2438 = vsyncpa [#allocation8], 1
    %s2439 = scalar_lea.sflag [#allocation8], 1
    %2440 = vsyncpa %s2439, 1
    %2441 = vsyncpa [#allocation10], 1
    %2442 = vsyncpa [#allocation13], 1

</llo_original>
